<compile_context>
chip_gen: v6e
topology: v6e:2x2x1
jax: 0.10.0
libtpu: 0.0.40
codegen_flags: <defaults>
</compile_context>

<pallas_src>
import math
import functools

import jax
import jax.numpy as jnp
from jax import lax
from jax.experimental import pallas as pl
from jax.experimental.pallas import tpu as pltpu


LANE = 128      # pad gate hidden dims to multiples of the 128-lane vreg width
SUBLANE = 8     # pad batch to multiples of the 8-sublane (f32) vreg height


def _round_up(x, m):
    return ((x + m - 1) // m) * m


def _pad_gate_rows(w, h, hp):
    """w: [4*h, X] in PyTorch (i, f, g, o) chunk order -> [4*hp, X], each gate
    chunk zero-padded from h to hp rows (padded units stay exactly zero)."""
    if h == hp:
        return w
    x_dim = w.shape[1]
    w4 = w.reshape(4, h, x_dim)
    w4 = jnp.pad(w4, ((0, 0), (0, hp - h), (0, 0)))
    return w4.reshape(4 * hp, x_dim)


def _pad_gate_vec(b, h, hp):
    if h == hp:
        return b
    b4 = b.reshape(4, h)
    b4 = jnp.pad(b4, ((0, 0), (0, hp - h)))
    return b4.reshape(4 * hp)


# -----------------------------------------------------------------------------
# Fused 2-layer LSTM kernel.
# Grid = (batch_shard, time_chunk).  xp1 already contains x @ Wih1^T + bias1.
# Per time step: ONE block matmul  [Bs, H1p+H2p] x [H1p+H2p, 4*H2p+4*H1p]
# produces layer-2 gates AND next-step layer-1 recurrence (carried as r1).
# (c1, h2, c2, r1) persist across time chunks in VMEM scratch.
# -----------------------------------------------------------------------------
def fused_lstm2_kernel(xp1_ref, wbig_ref, b2_ref, out_ref,
                       c1_sc, h2_sc, c2_sc, r1_sc, *, H1p, H2p, t_chunk):
    @pl.when(pl.program_id(1) == 0)
    def _():
        c1_sc[...] = jnp.zeros_like(c1_sc)
        h2_sc[...] = jnp.zeros_like(h2_sc)
        c2_sc[...] = jnp.zeros_like(c2_sc)
        r1_sc[...] = jnp.zeros_like(r1_sc)

    Bs = out_ref.shape[1]
    wbig = wbig_ref[...]                                      # [H1p+H2p, 4*H2p+4*H1p]
    # Hoisted bias broadcast (JAX does not CSE broadcast_in_dim in the loop).
    b2_b = jnp.broadcast_to(b2_ref[...], (Bs, 4 * H2p))

    def cell(gates, c_prev, hp):
        # Lane-aligned full-vreg slices (hp is a multiple of 128).
        i_g = jax.nn.sigmoid(gates[:, 0 * hp:1 * hp])
        f_g = jax.nn.sigmoid(gates[:, 1 * hp:2 * hp])
        g_g = jnp.tanh(gates[:, 2 * hp:3 * hp])
        o_g = jax.nn.sigmoid(gates[:, 3 * hp:4 * hp])
        c_new = f_g * c_prev + i_g * g_g
        h_new = o_g * jnp.tanh(c_new)
        return h_new, c_new

    def step(t, carry):
        c1, h2, c2, r1 = carry

        # Layer 1: input projection + bias pre-folded into xp1; recurrence r1
        # was produced by the PREVIOUS step's fused matmul (zero at t=0).
        g1 = xp1_ref[t] + r1
        h1, c1 = cell(g1, c1, H1p)

        # One fused block matmul: layer-2 gates + next-step layer-1 recurrence.
        big = jnp.dot(
            jnp.concatenate([h1, h2], axis=1).astype(wbig.dtype),
            wbig, preferred_element_type=jnp.float32)         # [Bs, 4*H2p+4*H1p]

        g2 = big[:, :4 * H2p] + b2_b
        h2, c2 = cell(g2, c2, H2p)

        out_ref[t] = h2                                       # lane-dense store
        r1 = big[:, 4 * H2p:]                                 # carried to t+1
        return (c1, h2, c2, r1)

    carry = (c1_sc[...], h2_sc[...], c2_sc[...], r1_sc[...])
    carry = lax.fori_loop(0, t_chunk, step, carry, unroll=True)
    c1_sc[...] = carry[0]
    h2_sc[...] = carry[1]
    c2_sc[...] = carry[2]
    r1_sc[...] = carry[3]


def fused_lstm2(x_tbd, layer1, layer2, *, matmul_dtype=jnp.bfloat16):
    """Run both stacked LSTM layers.  x_tbd: time-major [T, B, D_in].
    Returns [T, B, H2] (unpadded)."""
    T, B, _ = x_tbd.shape
    w_ih1, w_hh1, b_ih1, b_hh1 = layer1
    w_ih2, w_hh2, b_ih2, b_hh2 = layer2
    H1 = w_hh1.shape[1]
    H2 = w_hh2.shape[1]

    H1p = _round_up(H1, LANE)
    H2p = _round_up(H2, LANE)
    Bp = _round_up(B, SUBLANE)

    # Batch shards: 2-way "parallel" split (megacore on v7x) when each half is
    # still a multiple of 8 sublanes; otherwise a single shard.
    n_b = 2 if (Bp >= 2 * SUBLANE and Bp % (2 * SUBLANE) == 0) else 1
    Bs = Bp // n_b

    # Time chunks: whole (small) sequence per chunk up to 16 steps; pad T so
    # chunks divide it (padded steps are sliced off and never read).
    t_chunk = min(T, 16)
    Tp = _round_up(T, t_chunk)
    n_t = Tp // t_chunk

    x = jnp.pad(x_tbd.astype(jnp.float32),
                ((0, Tp - T), (0, Bp - B), (0, 0)))

    # --- layer-1 params: gate-padded, pre-transposed for right-multiply ------
    wih1_t = jnp.transpose(_pad_gate_rows(w_ih1, H1, H1p)).astype(matmul_dtype)  # [D, 4*H1p]
    whh1_t = jnp.transpose(
        _pad_gate_rows(jnp.pad(w_hh1, ((0, 0), (0, H1p - H1))), H1, H1p)
    ).astype(matmul_dtype)                                                       # [H1p, 4*H1p]
    b1 = _pad_gate_vec(b_ih1 + b_hh1, H1, H1p).astype(jnp.float32)[None, None, :]

    # --- layer-2 params -------------------------------------------------------
    wih2_t = jnp.transpose(
        _pad_gate_rows(jnp.pad(w_ih2, ((0, 0), (0, H1p - H1))), H2, H2p)
    ).astype(matmul_dtype)                                                       # [H1p, 4*H2p]
    whh2_t = jnp.transpose(
        _pad_gate_rows(jnp.pad(w_hh2, ((0, 0), (0, H2p - H2))), H2, H2p)
    ).astype(matmul_dtype)                                                       # [H2p, 4*H2p]
    b2 = _pad_gate_vec(b_ih2 + b_hh2, H2, H2p).astype(jnp.float32)[None, :]      # [1, 4*H2p]

    # Block weight  W_big = [[wih2_t, whh1_t], [whh2_t, 0]].
    wbig = jnp.concatenate(
        [jnp.concatenate([wih2_t, whh1_t], axis=1),
         jnp.concatenate([whh2_t,
                          jnp.zeros((H2p, 4 * H1p), matmul_dtype)], axis=1)],
        axis=0)                                                                  # [H1p+H2p, 4*H2p+4*H1p]

    # Hoisted layer-1 input projection: one big GEMM with M = Tp*Bp, bf16
    # operands + f32 accumulation, bias folded.  Stored f32 (added to f32 gate
    # math inside the kernel).
    xp1 = jnp.einsum("tbd,dh->tbh", x.astype(matmul_dtype), wih1_t,
                     preferred_element_type=jnp.float32) + b1                    # [Tp, Bp, 4*H1p]

    kernel = functools.partial(fused_lstm2_kernel,
                               H1p=H1p, H2p=H2p, t_chunk=t_chunk)

    # Explicit scoped-VMEM budget: weights + double-buffered xp1/out blocks +
    # scratch carries, with headroom (cap below v7x's 64 MiB physical VMEM).
    vmem_need = (
        wbig.size * wbig.dtype.itemsize
        + b2.size * 4
        + 2 * t_chunk * Bs * 4 * H1p * 4        # xp1 block, 2-deep buffering
        + 2 * t_chunk * Bs * H2p * 4            # out block, 2-deep buffering
        + Bs * (H1p + 2 * H2p + 4 * H1p) * 4    # scratch carries
    )
    vmem_limit = int(min(64 * 1024 * 1024,
                         max(2 * vmem_need + (2 << 20), 16 * 1024 * 1024)))

    out = pl.pallas_call(
        kernel,
        out_shape=jax.ShapeDtypeStruct((Tp, Bp, H2p), jnp.float32),
        grid_spec=pltpu.PrefetchScalarGridSpec(
            num_scalar_prefetch=0,
            grid=(n_b, n_t),
            in_specs=[
                pl.BlockSpec((t_chunk, Bs, 4 * H1p), lambda b, t: (t, b, 0)),
                pl.BlockSpec((H1p + H2p, 4 * H2p + 4 * H1p), lambda b, t: (0, 0)),
                pl.BlockSpec((1, 4 * H2p), lambda b, t: (0, 0)),
            ],
            out_specs=pl.BlockSpec((t_chunk, Bs, H2p), lambda b, t: (t, b, 0)),
            scratch_shapes=[
                pltpu.VMEM((Bs, H1p), jnp.float32),       # c1
                pltpu.VMEM((Bs, H2p), jnp.float32),       # h2
                pltpu.VMEM((Bs, H2p), jnp.float32),       # c2
                pltpu.VMEM((Bs, 4 * H1p), jnp.float32),   # r1 (h1 @ Whh1^T carry)
            ],
        ),
        compiler_params=pltpu.CompilerParams(
            dimension_semantics=("parallel", "arbitrary"),
            vmem_limit_bytes=vmem_limit,
        ),
    )(xp1, wbig, b2)

    return out[:T, :B, :H2]


# -----------------------------------------------------------------------------
# MANN forward (glue in plain JAX, hot path in the fused Pallas kernel).
# -----------------------------------------------------------------------------
def mann_forward(params, input_images, input_labels, num_classes, samples_per_class):
    N = num_classes
    K = samples_per_class
    B = input_images.shape[0]
    T = (K + 1) * N

    # Zero out the labels of the final (query) set: last N rows of each
    # batch's flattened N*(K+1) block  <=>  labels[:, K, :, :] = 0.
    labels = input_labels.at[:, K, :, :].set(0.0)

    x = jnp.concatenate([input_images, labels], axis=-1)        # [B, K+1, N, dim+N]
    x = x.reshape(B, T, -1)                                     # [B, T, D]
    x = jnp.transpose(x, (1, 0, 2))                             # time-major [T, B, D]

    h2 = fused_lstm2(x, params["layer1"], params["layer2"])     # [T, B, N]

    out = jnp.transpose(h2, (1, 0, 2)).reshape(B, K + 1, N, N)
    return out.astype(jnp.float32)


# -----------------------------------------------------------------------------
# Pure-JAX f32 reference (lax.scan LSTM) for correctness checking.
# -----------------------------------------------------------------------------
def _lstm_ref(x_tbd, w_ih, w_hh, b_ih, b_hh):
    _, B, _ = x_tbd.shape
    H = w_hh.shape[1]

    def step(carry, x_t):
        h, c = carry
        gates = x_t @ w_ih.T + h @ w_hh.T + b_ih + b_hh
        i, f, g, o = jnp.split(gates, 4, axis=-1)
        c = jax.nn.sigmoid(f) * c + jax.nn.sigmoid(i) * jnp.tanh(g)
        h = jax.nn.sigmoid(o) * jnp.tanh(c)
        return (h, c), h

    init = (jnp.zeros((B, H), jnp.float32), jnp.zeros((B, H), jnp.float32))
    _, hs = lax.scan(step, init, x_tbd)
    return hs


def mann_forward_ref(params, input_images, input_labels, num_classes, samples_per_class):
    N, K = num_classes, samples_per_class
    B = input_images.shape[0]
    labels = input_labels.at[:, K, :, :].set(0.0)
    x = jnp.concatenate([input_images, labels], axis=-1).reshape(B, (K + 1) * N, -1)
    x = jnp.transpose(x, (1, 0, 2)).astype(jnp.float32)
    h1 = _lstm_ref(x, *params["layer1"])
    h2 = _lstm_ref(h1, *params["layer2"])
    return jnp.transpose(h2, (1, 0, 2)).reshape(B, K + 1, N, N)


# -----------------------------------------------------------------------------
# Deterministic parameter init (mirrors nn.LSTM shapes + the module's init:
# xavier_uniform on weight_ih, zeros on both biases, PyTorch-default
# uniform(-1/sqrt(H), 1/sqrt(H)) on weight_hh).
# -----------------------------------------------------------------------------
def init_lstm_params(key, input_dim, hidden_dim):
    k_ih, k_hh = jax.random.split(key)
    bound_ih = math.sqrt(6.0 / (input_dim + 4 * hidden_dim))
    w_ih = jax.random.uniform(
        k_ih, (4 * hidden_dim, input_dim), jnp.float32, -bound_ih, bound_ih
    )
    bound_hh = 1.0 / math.sqrt(hidden_dim)
    w_hh = jax.random.uniform(
        k_hh, (4 * hidden_dim, hidden_dim), jnp.float32, -bound_hh, bound_hh
    )
    b_ih = jnp.zeros((4 * hidden_dim,), jnp.float32)
    b_hh = jnp.zeros((4 * hidden_dim,), jnp.float32)
    return (w_ih, w_hh, b_ih, b_hh)


if __name__ == "__main__":
    # Small shapes consistent with the module's forward contract.
    B = 2                 # batch
    N = 4                 # num_classes
    K = 1                 # samples_per_class  -> seq len = (K+1)*N = 8
    INPUT_SIZE = 64       # flattened image dim (784 in the original)
    MODEL_SIZE = 32       # LSTM1 hidden size (128 in the original)

    key = jax.random.PRNGKey(0)
    k_img, k_lab, k_l1, k_l2 = jax.random.split(key, 4)

    input_images = jax.random.normal(k_img, (B, K + 1, N, INPUT_SIZE), jnp.float32)
    label_idx = jax.random.randint(k_lab, (B, K + 1, N), 0, N)
    input_labels = jax.nn.one_hot(label_idx, N, dtype=jnp.float32)   # [B, K+1, N, N]

    params = {
        "layer1": init_lstm_params(k_l1, N + INPUT_SIZE, MODEL_SIZE),
        "layer2": init_lstm_params(k_l2, MODEL_SIZE, N),
    }

    fwd = jax.jit(
        functools.partial(mann_forward, num_classes=N, samples_per_class=K)
    )
    out = fwd(params, input_images, input_labels)
    out = jax.block_until_ready(out)

    assert out.shape == (B, K + 1, N, N), out.shape
    assert out.dtype == jnp.float32
    assert bool(jnp.all(jnp.isfinite(out)))

    # Correctness vs. pure-JAX f32 reference (bf16 matmul operands inside the
    # kernel and in the hoisted GEMM, f32 accumulation -> loose tolerance).
    ref = mann_forward_ref(params, input_images, input_labels, N, K)
    max_err = float(jnp.max(jnp.abs(out - ref)))
    assert max_err < 5e-2, f"max abs error vs reference: {max_err}"

    print("KERNEL_OK")
</pallas_src>

<mosaic_0001>
module attributes {stable_mosaic.version = 11 : i64} {
  func.func @fused_lstm2_kernel(%arg0: i32, %arg1: i32, %arg2: memref<8x8x512xf32, #tpu.memory_space<vmem>>, %arg3: memref<256x1024xbf16, #tpu.memory_space<vmem>>, %arg4: memref<1x512xf32, #tpu.memory_space<vmem>>, %arg5: memref<8x8x128xf32, #tpu.memory_space<vmem>>, %arg6: memref<8x128xf32, #tpu.memory_space<vmem>>, %arg7: memref<8x128xf32, #tpu.memory_space<vmem>>, %arg8: memref<8x128xf32, #tpu.memory_space<vmem>>, %arg9: memref<8x512xf32, #tpu.memory_space<vmem>>) attributes {dimension_semantics = [#tpu.dimension_semantics<parallel>, #tpu.dimension_semantics<arbitrary>], iteration_bounds = array<i64: 1, 1>, scalar_prefetch = 0 : i64, scratch_operands = 4 : i64, tpu.core_type = #tpu.core_type<tc>, window_params = [{transform_indices = @transform_0, window_bounds = array<i64: 8, 8, 512>}, {pipeline_mode = #tpu.pipeline_mode<synchronous>, transform_indices = @transform_1, window_bounds = array<i64: 256, 1024>}, {pipeline_mode = #tpu.pipeline_mode<synchronous>, transform_indices = @transform_2, window_bounds = array<i64: 1, 512>}, {transform_indices = @transform_3, window_bounds = array<i64: 8, 8, 128>}]} {
    %c0_i32 = arith.constant 0 : i32
    %0 = arith.cmpi eq, %arg1, %c0_i32 : i32
    %1 = arith.extui %0 : i1 to i32
    %c0_i32_0 = arith.constant 0 : i32
    %2 = arith.cmpi ne, %1, %c0_i32_0 : i32
    scf.if %2 {
      %cst_108 = arith.constant 0.000000e+00 : f32
      %527 = vector.broadcast %cst_108 : f32 to vector<8x128xf32>
      %c0_109 = arith.constant 0 : index
      %c0_110 = arith.constant 0 : index
      %528 = vector.load %arg6[%c0_109, %c0_110] : memref<8x128xf32, #tpu.memory_space<vmem>>, vector<8x128xf32>
      tpu.vector_store %arg6[%c0_109, %c0_110], %527 {strides = array<i32>} : memref<8x128xf32, #tpu.memory_space<vmem>>, vector<8x128xf32>,
      %cst_111 = arith.constant 0.000000e+00 : f32
      %529 = vector.broadcast %cst_111 : f32 to vector<8x128xf32>
      %c0_112 = arith.constant 0 : index
      %c0_113 = arith.constant 0 : index
      %530 = vector.load %arg7[%c0_112, %c0_113] : memref<8x128xf32, #tpu.memory_space<vmem>>, vector<8x128xf32>
      tpu.vector_store %arg7[%c0_112, %c0_113], %529 {strides = array<i32>} : memref<8x128xf32, #tpu.memory_space<vmem>>, vector<8x128xf32>,
      %cst_114 = arith.constant 0.000000e+00 : f32
      %531 = vector.broadcast %cst_114 : f32 to vector<8x128xf32>
      %c0_115 = arith.constant 0 : index
      %c0_116 = arith.constant 0 : index
      %532 = vector.load %arg8[%c0_115, %c0_116] : memref<8x128xf32, #tpu.memory_space<vmem>>, vector<8x128xf32>
      tpu.vector_store %arg8[%c0_115, %c0_116], %531 {strides = array<i32>} : memref<8x128xf32, #tpu.memory_space<vmem>>, vector<8x128xf32>,
      %cst_117 = arith.constant 0.000000e+00 : f32
      %533 = vector.broadcast %cst_117 : f32 to vector<8x512xf32>
      %c0_118 = arith.constant 0 : index
      %c0_119 = arith.constant 0 : index
      %534 = vector.load %arg9[%c0_118, %c0_119] : memref<8x512xf32, #tpu.memory_space<vmem>>, vector<8x512xf32>
      tpu.vector_store %arg9[%c0_118, %c0_119], %533 {strides = array<i32>} : memref<8x512xf32, #tpu.memory_space<vmem>>, vector<8x512xf32>,
    } else {
    }
    %c0 = arith.constant 0 : index
    %c0_1 = arith.constant 0 : index
    %3 = vector.load %arg3[%c0, %c0_1] : memref<256x1024xbf16, #tpu.memory_space<vmem>>, vector<256x1024xbf16>
    %c0_2 = arith.constant 0 : index
    %c0_3 = arith.constant 0 : index
    %4 = vector.load %arg4[%c0_2, %c0_3] : memref<1x512xf32, #tpu.memory_space<vmem>>, vector<1x512xf32>
    %5 = vector.shape_cast %4 : vector<1x512xf32> to vector<1x512xf32>
    %6 = vector.broadcast %5 : vector<1x512xf32> to vector<8x512xf32>
    %c0_4 = arith.constant 0 : index
    %c0_5 = arith.constant 0 : index
    %7 = vector.load %arg6[%c0_4, %c0_5] : memref<8x128xf32, #tpu.memory_space<vmem>>, vector<8x128xf32>
    %c0_6 = arith.constant 0 : index
    %c0_7 = arith.constant 0 : index
    %8 = vector.load %arg7[%c0_6, %c0_7] : memref<8x128xf32, #tpu.memory_space<vmem>>, vector<8x128xf32>
    %c0_8 = arith.constant 0 : index
    %c0_9 = arith.constant 0 : index
    %9 = vector.load %arg8[%c0_8, %c0_9] : memref<8x128xf32, #tpu.memory_space<vmem>>, vector<8x128xf32>
    %c0_10 = arith.constant 0 : index
    %c0_11 = arith.constant 0 : index
    %10 = vector.load %arg9[%c0_10, %c0_11] : memref<8x512xf32, #tpu.memory_space<vmem>>, vector<8x512xf32>
    %c0_i32_12 = arith.constant 0 : i32
    %11 = arith.index_cast %c0_i32_12 : i32 to index
    %c0_13 = arith.constant 0 : index
    %c0_14 = arith.constant 0 : index
    %12 = vector.load %arg2[%11, %c0_13, %c0_14] : memref<8x8x512xf32, #tpu.memory_space<vmem>>, vector<1x8x512xf32>
    %13 = vector.shape_cast %12 : vector<1x8x512xf32> to vector<8x512xf32>
    %14 = arith.addf %13, %10 : vector<8x512xf32>
    %15 = vector.extract_strided_slice %14 {offsets = [0, 0], sizes = [8, 128], strides = [1, 1]} : vector<8x512xf32> to vector<8x128xf32>
    %16 = arith.negf %15 : vector<8x128xf32>
    %17 = math.exp %16 : vector<8x128xf32>
    %cst = arith.constant 1.000000e+00 : f32
    %18 = vector.broadcast %cst : f32 to vector<8x128xf32>
    %19 = arith.addf %18, %17 : vector<8x128xf32>
    %20 = arith.divf %18, %19 : vector<8x128xf32>
    %21 = vector.extract_strided_slice %14 {offsets = [0, 128], sizes = [8, 128], strides = [1, 1]} : vector<8x512xf32> to vector<8x128xf32>
    %22 = arith.negf %21 : vector<8x128xf32>
    %23 = math.exp %22 : vector<8x128xf32>
    %cst_15 = arith.constant 1.000000e+00 : f32
    %24 = vector.broadcast %cst_15 : f32 to vector<8x128xf32>
    %25 = arith.addf %24, %23 : vector<8x128xf32>
    %26 = arith.divf %24, %25 : vector<8x128xf32>
    %27 = vector.extract_strided_slice %14 {offsets = [0, 256], sizes = [8, 128], strides = [1, 1]} : vector<8x512xf32> to vector<8x128xf32>
    %28 = math.tanh %27 : vector<8x128xf32>
    %29 = vector.extract_strided_slice %14 {offsets = [0, 384], sizes = [8, 128], strides = [1, 1]} : vector<8x512xf32> to vector<8x128xf32>
    %30 = arith.negf %29 : vector<8x128xf32>
    %31 = math.exp %30 : vector<8x128xf32>
    %cst_16 = arith.constant 1.000000e+00 : f32
    %32 = vector.broadcast %cst_16 : f32 to vector<8x128xf32>
    %33 = arith.addf %32, %31 : vector<8x128xf32>
    %34 = arith.divf %32, %33 : vector<8x128xf32>
    %35 = arith.mulf %26, %7 : vector<8x128xf32>
    %36 = arith.mulf %20, %28 : vector<8x128xf32>
    %37 = arith.addf %35, %36 : vector<8x128xf32>
    %38 = math.tanh %37 : vector<8x128xf32>
    %39 = arith.mulf %34, %38 : vector<8x128xf32>
    %40 = tpu.concatenate %39, %8 in 1 : vector<8x128xf32>, vector<8x128xf32> -> vector<8x256xf32>
    %41 = arith.truncf %40 : vector<8x256xf32> to vector<8x256xbf16>
    %cst_17 = arith.constant dense<0.000000e+00> : vector<8x1024xf32>
    %42 = tpu.matmul %41, %3, %cst_17 {dimension_numbers = #tpu.dot_dimension_numbers<[1], [0], [0], [1], [0, 0, 1, 1], [], []>} : vector<8x256xbf16>, vector<256x1024xbf16>, vector<8x1024xf32> -> vector<8x1024xf32>
    %43 = vector.extract_strided_slice %42 {offsets = [0, 0], sizes = [8, 512], strides = [1, 1]} : vector<8x1024xf32> to vector<8x512xf32>
    %44 = arith.addf %43, %6 : vector<8x512xf32>
    %45 = vector.extract_strided_slice %44 {offsets = [0, 0], sizes = [8, 128], strides = [1, 1]} : vector<8x512xf32> to vector<8x128xf32>
    %46 = arith.negf %45 : vector<8x128xf32>
    %47 = math.exp %46 : vector<8x128xf32>
    %cst_18 = arith.constant 1.000000e+00 : f32
    %48 = vector.broadcast %cst_18 : f32 to vector<8x128xf32>
    %49 = arith.addf %48, %47 : vector<8x128xf32>
    %50 = arith.divf %48, %49 : vector<8x128xf32>
    %51 = vector.extract_strided_slice %44 {offsets = [0, 128], sizes = [8, 128], strides = [1, 1]} : vector<8x512xf32> to vector<8x128xf32>
    %52 = arith.negf %51 : vector<8x128xf32>
    %53 = math.exp %52 : vector<8x128xf32>
    %cst_19 = arith.constant 1.000000e+00 : f32
    %54 = vector.broadcast %cst_19 : f32 to vector<8x128xf32>
    %55 = arith.addf %54, %53 : vector<8x128xf32>
    %56 = arith.divf %54, %55 : vector<8x128xf32>
    %57 = vector.extract_strided_slice %44 {offsets = [0, 256], sizes = [8, 128], strides = [1, 1]} : vector<8x512xf32> to vector<8x128xf32>
    %58 = math.tanh %57 : vector<8x128xf32>
    %59 = vector.extract_strided_slice %44 {offsets = [0, 384], sizes = [8, 128], strides = [1, 1]} : vector<8x512xf32> to vector<8x128xf32>
    %60 = arith.negf %59 : vector<8x128xf32>
    %61 = math.exp %60 : vector<8x128xf32>
    %cst_20 = arith.constant 1.000000e+00 : f32
    %62 = vector.broadcast %cst_20 : f32 to vector<8x128xf32>
    %63 = arith.addf %62, %61 : vector<8x128xf32>
    %64 = arith.divf %62, %63 : vector<8x128xf32>
    %65 = arith.mulf %56, %9 : vector<8x128xf32>
    %66 = arith.mulf %50, %58 : vector<8x128xf32>
    %67 = arith.addf %65, %66 : vector<8x128xf32>
    %68 = math.tanh %67 : vector<8x128xf32>
    %69 = arith.mulf %64, %68 : vector<8x128xf32>
    %70 = arith.index_cast %c0_i32_12 : i32 to index
    %c0_21 = arith.constant 0 : index
    %c0_22 = arith.constant 0 : index
    %71 = vector.load %arg5[%70, %c0_21, %c0_22] : memref<8x8x128xf32, #tpu.memory_space<vmem>>, vector<1x8x128xf32>
    %72 = vector.shape_cast %71 : vector<1x8x128xf32> to vector<8x128xf32>
    %73 = vector.shape_cast %69 : vector<8x128xf32> to vector<1x8x128xf32>
    tpu.vector_store %arg5[%70, %c0_21, %c0_22], %73 {strides = array<i32>} : memref<8x8x128xf32, #tpu.memory_space<vmem>>, vector<1x8x128xf32>,
    %74 = vector.extract_strided_slice %42 {offsets = [0, 512], sizes = [8, 512], strides = [1, 1]} : vector<8x1024xf32> to vector<8x512xf32>
    %c1_i32 = arith.constant 1 : i32
    %75 = arith.index_cast %c1_i32 : i32 to index
    %c0_23 = arith.constant 0 : index
    %c0_24 = arith.constant 0 : index
    %76 = vector.load %arg2[%75, %c0_23, %c0_24] : memref<8x8x512xf32, #tpu.memory_space<vmem>>, vector<1x8x512xf32>
    %77 = vector.shape_cast %76 : vector<1x8x512xf32> to vector<8x512xf32>
    %78 = arith.addf %77, %74 : vector<8x512xf32>
    %79 = vector.extract_strided_slice %78 {offsets = [0, 0], sizes = [8, 128], strides = [1, 1]} : vector<8x512xf32> to vector<8x128xf32>
    %80 = arith.negf %79 : vector<8x128xf32>
    %81 = math.exp %80 : vector<8x128xf32>
    %cst_25 = arith.constant 1.000000e+00 : f32
    %82 = vector.broadcast %cst_25 : f32 to vector<8x128xf32>
    %83 = arith.addf %82, %81 : vector<8x128xf32>
    %84 = arith.divf %82, %83 : vector<8x128xf32>
    %85 = vector.extract_strided_slice %78 {offsets = [0, 128], sizes = [8, 128], strides = [1, 1]} : vector<8x512xf32> to vector<8x128xf32>
    %86 = arith.negf %85 : vector<8x128xf32>
    %87 = math.exp %86 : vector<8x128xf32>
    %cst_26 = arith.constant 1.000000e+00 : f32
    %88 = vector.broadcast %cst_26 : f32 to vector<8x128xf32>
    %89 = arith.addf %88, %87 : vector<8x128xf32>
    %90 = arith.divf %88, %89 : vector<8x128xf32>
    %91 = vector.extract_strided_slice %78 {offsets = [0, 256], sizes = [8, 128], strides = [1, 1]} : vector<8x512xf32> to vector<8x128xf32>
    %92 = math.tanh %91 : vector<8x128xf32>
    %93 = vector.extract_strided_slice %78 {offsets = [0, 384], sizes = [8, 128], strides = [1, 1]} : vector<8x512xf32> to vector<8x128xf32>
    %94 = arith.negf %93 : vector<8x128xf32>
    %95 = math.exp %94 : vector<8x128xf32>
    %cst_27 = arith.constant 1.000000e+00 : f32
    %96 = vector.broadcast %cst_27 : f32 to vector<8x128xf32>
    %97 = arith.addf %96, %95 : vector<8x128xf32>
    %98 = arith.divf %96, %97 : vector<8x128xf32>
    %99 = arith.mulf %90, %37 : vector<8x128xf32>
    %100 = arith.mulf %84, %92 : vector<8x128xf32>
    %101 = arith.addf %99, %100 : vector<8x128xf32>
    %102 = math.tanh %101 : vector<8x128xf32>
    %103 = arith.mulf %98, %102 : vector<8x128xf32>
    %104 = tpu.concatenate %103, %69 in 1 : vector<8x128xf32>, vector<8x128xf32> -> vector<8x256xf32>
    %105 = arith.truncf %104 : vector<8x256xf32> to vector<8x256xbf16>
    %cst_28 = arith.constant dense<0.000000e+00> : vector<8x1024xf32>
    %106 = tpu.matmul %105, %3, %cst_28 {dimension_numbers = #tpu.dot_dimension_numbers<[1], [0], [0], [1], [0, 0, 1, 1], [], []>} : vector<8x256xbf16>, vector<256x1024xbf16>, vector<8x1024xf32> -> vector<8x1024xf32>
    %107 = vector.extract_strided_slice %106 {offsets = [0, 0], sizes = [8, 512], strides = [1, 1]} : vector<8x1024xf32> to vector<8x512xf32>
    %108 = arith.addf %107, %6 : vector<8x512xf32>
    %109 = vector.extract_strided_slice %108 {offsets = [0, 0], sizes = [8, 128], strides = [1, 1]} : vector<8x512xf32> to vector<8x128xf32>
    %110 = arith.negf %109 : vector<8x128xf32>
    %111 = math.exp %110 : vector<8x128xf32>
    %cst_29 = arith.constant 1.000000e+00 : f32
    %112 = vector.broadcast %cst_29 : f32 to vector<8x128xf32>
    %113 = arith.addf %112, %111 : vector<8x128xf32>
    %114 = arith.divf %112, %113 : vector<8x128xf32>
    %115 = vector.extract_strided_slice %108 {offsets = [0, 128], sizes = [8, 128], strides = [1, 1]} : vector<8x512xf32> to vector<8x128xf32>
    %116 = arith.negf %115 : vector<8x128xf32>
    %117 = math.exp %116 : vector<8x128xf32>
    %cst_30 = arith.constant 1.000000e+00 : f32
    %118 = vector.broadcast %cst_30 : f32 to vector<8x128xf32>
    %119 = arith.addf %118, %117 : vector<8x128xf32>
    %120 = arith.divf %118, %119 : vector<8x128xf32>
    %121 = vector.extract_strided_slice %108 {offsets = [0, 256], sizes = [8, 128], strides = [1, 1]} : vector<8x512xf32> to vector<8x128xf32>
    %122 = math.tanh %121 : vector<8x128xf32>
    %123 = vector.extract_strided_slice %108 {offsets = [0, 384], sizes = [8, 128], strides = [1, 1]} : vector<8x512xf32> to vector<8x128xf32>
    %124 = arith.negf %123 : vector<8x128xf32>
    %125 = math.exp %124 : vector<8x128xf32>
    %cst_31 = arith.constant 1.000000e+00 : f32
    %126 = vector.broadcast %cst_31 : f32 to vector<8x128xf32>
    %127 = arith.addf %126, %125 : vector<8x128xf32>
    %128 = arith.divf %126, %127 : vector<8x128xf32>
    %129 = arith.mulf %120, %67 : vector<8x128xf32>
    %130 = arith.mulf %114, %122 : vector<8x128xf32>
    %131 = arith.addf %129, %130 : vector<8x128xf32>
    %132 = math.tanh %131 : vector<8x128xf32>
    %133 = arith.mulf %128, %132 : vector<8x128xf32>
    %134 = arith.index_cast %c1_i32 : i32 to index
    %c0_32 = arith.constant 0 : index
    %c0_33 = arith.constant 0 : index
    %135 = vector.load %arg5[%134, %c0_32, %c0_33] : memref<8x8x128xf32, #tpu.memory_space<vmem>>, vector<1x8x128xf32>
    %136 = vector.shape_cast %135 : vector<1x8x128xf32> to vector<8x128xf32>
    %137 = vector.shape_cast %133 : vector<8x128xf32> to vector<1x8x128xf32>
    tpu.vector_store %arg5[%134, %c0_32, %c0_33], %137 {strides = array<i32>} : memref<8x8x128xf32, #tpu.memory_space<vmem>>, vector<1x8x128xf32>,
    %138 = vector.extract_strided_slice %106 {offsets = [0, 512], sizes = [8, 512], strides = [1, 1]} : vector<8x1024xf32> to vector<8x512xf32>
    %c2_i32 = arith.constant 2 : i32
    %139 = arith.index_cast %c2_i32 : i32 to index
    %c0_34 = arith.constant 0 : index
    %c0_35 = arith.constant 0 : index
    %140 = vector.load %arg2[%139, %c0_34, %c0_35] : memref<8x8x512xf32, #tpu.memory_space<vmem>>, vector<1x8x512xf32>
    %141 = vector.shape_cast %140 : vector<1x8x512xf32> to vector<8x512xf32>
    %142 = arith.addf %141, %138 : vector<8x512xf32>
    %143 = vector.extract_strided_slice %142 {offsets = [0, 0], sizes = [8, 128], strides = [1, 1]} : vector<8x512xf32> to vector<8x128xf32>
    %144 = arith.negf %143 : vector<8x128xf32>
    %145 = math.exp %144 : vector<8x128xf32>
    %cst_36 = arith.constant 1.000000e+00 : f32
    %146 = vector.broadcast %cst_36 : f32 to vector<8x128xf32>
    %147 = arith.addf %146, %145 : vector<8x128xf32>
    %148 = arith.divf %146, %147 : vector<8x128xf32>
    %149 = vector.extract_strided_slice %142 {offsets = [0, 128], sizes = [8, 128], strides = [1, 1]} : vector<8x512xf32> to vector<8x128xf32>
    %150 = arith.negf %149 : vector<8x128xf32>
    %151 = math.exp %150 : vector<8x128xf32>
    %cst_37 = arith.constant 1.000000e+00 : f32
    %152 = vector.broadcast %cst_37 : f32 to vector<8x128xf32>
    %153 = arith.addf %152, %151 : vector<8x128xf32>
    %154 = arith.divf %152, %153 : vector<8x128xf32>
    %155 = vector.extract_strided_slice %142 {offsets = [0, 256], sizes = [8, 128], strides = [1, 1]} : vector<8x512xf32> to vector<8x128xf32>
    %156 = math.tanh %155 : vector<8x128xf32>
    %157 = vector.extract_strided_slice %142 {offsets = [0, 384], sizes = [8, 128], strides = [1, 1]} : vector<8x512xf32> to vector<8x128xf32>
    %158 = arith.negf %157 : vector<8x128xf32>
    %159 = math.exp %158 : vector<8x128xf32>
    %cst_38 = arith.constant 1.000000e+00 : f32
    %160 = vector.broadcast %cst_38 : f32 to vector<8x128xf32>
    %161 = arith.addf %160, %159 : vector<8x128xf32>
    %162 = arith.divf %160, %161 : vector<8x128xf32>
    %163 = arith.mulf %154, %101 : vector<8x128xf32>
    %164 = arith.mulf %148, %156 : vector<8x128xf32>
    %165 = arith.addf %163, %164 : vector<8x128xf32>
    %166 = math.tanh %165 : vector<8x128xf32>
    %167 = arith.mulf %162, %166 : vector<8x128xf32>
    %168 = tpu.concatenate %167, %133 in 1 : vector<8x128xf32>, vector<8x128xf32> -> vector<8x256xf32>
    %169 = arith.truncf %168 : vector<8x256xf32> to vector<8x256xbf16>
    %cst_39 = arith.constant dense<0.000000e+00> : vector<8x1024xf32>
    %170 = tpu.matmul %169, %3, %cst_39 {dimension_numbers = #tpu.dot_dimension_numbers<[1], [0], [0], [1], [0, 0, 1, 1], [], []>} : vector<8x256xbf16>, vector<256x1024xbf16>, vector<8x1024xf32> -> vector<8x1024xf32>
    %171 = vector.extract_strided_slice %170 {offsets = [0, 0], sizes = [8, 512], strides = [1, 1]} : vector<8x1024xf32> to vector<8x512xf32>
    %172 = arith.addf %171, %6 : vector<8x512xf32>
    %173 = vector.extract_strided_slice %172 {offsets = [0, 0], sizes = [8, 128], strides = [1, 1]} : vector<8x512xf32> to vector<8x128xf32>
    %174 = arith.negf %173 : vector<8x128xf32>
    %175 = math.exp %174 : vector<8x128xf32>
    %cst_40 = arith.constant 1.000000e+00 : f32
    %176 = vector.broadcast %cst_40 : f32 to vector<8x128xf32>
    %177 = arith.addf %176, %175 : vector<8x128xf32>
    %178 = arith.divf %176, %177 : vector<8x128xf32>
    %179 = vector.extract_strided_slice %172 {offsets = [0, 128], sizes = [8, 128], strides = [1, 1]} : vector<8x512xf32> to vector<8x128xf32>
    %180 = arith.negf %179 : vector<8x128xf32>
    %181 = math.exp %180 : vector<8x128xf32>
    %cst_41 = arith.constant 1.000000e+00 : f32
    %182 = vector.broadcast %cst_41 : f32 to vector<8x128xf32>
    %183 = arith.addf %182, %181 : vector<8x128xf32>
    %184 = arith.divf %182, %183 : vector<8x128xf32>
    %185 = vector.extract_strided_slice %172 {offsets = [0, 256], sizes = [8, 128], strides = [1, 1]} : vector<8x512xf32> to vector<8x128xf32>
    %186 = math.tanh %185 : vector<8x128xf32>
    %187 = vector.extract_strided_slice %172 {offsets = [0, 384], sizes = [8, 128], strides = [1, 1]} : vector<8x512xf32> to vector<8x128xf32>
    %188 = arith.negf %187 : vector<8x128xf32>
    %189 = math.exp %188 : vector<8x128xf32>
    %cst_42 = arith.constant 1.000000e+00 : f32
    %190 = vector.broadcast %cst_42 : f32 to vector<8x128xf32>
    %191 = arith.addf %190, %189 : vector<8x128xf32>
    %192 = arith.divf %190, %191 : vector<8x128xf32>
    %193 = arith.mulf %184, %131 : vector<8x128xf32>
    %194 = arith.mulf %178, %186 : vector<8x128xf32>
    %195 = arith.addf %193, %194 : vector<8x128xf32>
    %196 = math.tanh %195 : vector<8x128xf32>
    %197 = arith.mulf %192, %196 : vector<8x128xf32>
    %198 = arith.index_cast %c2_i32 : i32 to index
    %c0_43 = arith.constant 0 : index
    %c0_44 = arith.constant 0 : index
    %199 = vector.load %arg5[%198, %c0_43, %c0_44] : memref<8x8x128xf32, #tpu.memory_space<vmem>>, vector<1x8x128xf32>
    %200 = vector.shape_cast %199 : vector<1x8x128xf32> to vector<8x128xf32>
    %201 = vector.shape_cast %197 : vector<8x128xf32> to vector<1x8x128xf32>
    tpu.vector_store %arg5[%198, %c0_43, %c0_44], %201 {strides = array<i32>} : memref<8x8x128xf32, #tpu.memory_space<vmem>>, vector<1x8x128xf32>,
    %202 = vector.extract_strided_slice %170 {offsets = [0, 512], sizes = [8, 512], strides = [1, 1]} : vector<8x1024xf32> to vector<8x512xf32>
    %c3_i32 = arith.constant 3 : i32
    %203 = arith.index_cast %c3_i32 : i32 to index
    %c0_45 = arith.constant 0 : index
    %c0_46 = arith.constant 0 : index
    %204 = vector.load %arg2[%203, %c0_45, %c0_46] : memref<8x8x512xf32, #tpu.memory_space<vmem>>, vector<1x8x512xf32>
    %205 = vector.shape_cast %204 : vector<1x8x512xf32> to vector<8x512xf32>
    %206 = arith.addf %205, %202 : vector<8x512xf32>
    %207 = vector.extract_strided_slice %206 {offsets = [0, 0], sizes = [8, 128], strides = [1, 1]} : vector<8x512xf32> to vector<8x128xf32>
    %208 = arith.negf %207 : vector<8x128xf32>
    %209 = math.exp %208 : vector<8x128xf32>
    %cst_47 = arith.constant 1.000000e+00 : f32
    %210 = vector.broadcast %cst_47 : f32 to vector<8x128xf32>
    %211 = arith.addf %210, %209 : vector<8x128xf32>
    %212 = arith.divf %210, %211 : vector<8x128xf32>
    %213 = vector.extract_strided_slice %206 {offsets = [0, 128], sizes = [8, 128], strides = [1, 1]} : vector<8x512xf32> to vector<8x128xf32>
    %214 = arith.negf %213 : vector<8x128xf32>
    %215 = math.exp %214 : vector<8x128xf32>
    %cst_48 = arith.constant 1.000000e+00 : f32
    %216 = vector.broadcast %cst_48 : f32 to vector<8x128xf32>
    %217 = arith.addf %216, %215 : vector<8x128xf32>
    %218 = arith.divf %216, %217 : vector<8x128xf32>
    %219 = vector.extract_strided_slice %206 {offsets = [0, 256], sizes = [8, 128], strides = [1, 1]} : vector<8x512xf32> to vector<8x128xf32>
    %220 = math.tanh %219 : vector<8x128xf32>
    %221 = vector.extract_strided_slice %206 {offsets = [0, 384], sizes = [8, 128], strides = [1, 1]} : vector<8x512xf32> to vector<8x128xf32>
    %222 = arith.negf %221 : vector<8x128xf32>
    %223 = math.exp %222 : vector<8x128xf32>
    %cst_49 = arith.constant 1.000000e+00 : f32
    %224 = vector.broadcast %cst_49 : f32 to vector<8x128xf32>
    %225 = arith.addf %224, %223 : vector<8x128xf32>
    %226 = arith.divf %224, %225 : vector<8x128xf32>
    %227 = arith.mulf %218, %165 : vector<8x128xf32>
    %228 = arith.mulf %212, %220 : vector<8x128xf32>
    %229 = arith.addf %227, %228 : vector<8x128xf32>
    %230 = math.tanh %229 : vector<8x128xf32>
    %231 = arith.mulf %226, %230 : vector<8x128xf32>
    %232 = tpu.concatenate %231, %197 in 1 : vector<8x128xf32>, vector<8x128xf32> -> vector<8x256xf32>
    %233 = arith.truncf %232 : vector<8x256xf32> to vector<8x256xbf16>
    %cst_50 = arith.constant dense<0.000000e+00> : vector<8x1024xf32>
    %234 = tpu.matmul %233, %3, %cst_50 {dimension_numbers = #tpu.dot_dimension_numbers<[1], [0], [0], [1], [0, 0, 1, 1], [], []>} : vector<8x256xbf16>, vector<256x1024xbf16>, vector<8x1024xf32> -> vector<8x1024xf32>
    %235 = vector.extract_strided_slice %234 {offsets = [0, 0], sizes = [8, 512], strides = [1, 1]} : vector<8x1024xf32> to vector<8x512xf32>
    %236 = arith.addf %235, %6 : vector<8x512xf32>
    %237 = vector.extract_strided_slice %236 {offsets = [0, 0], sizes = [8, 128], strides = [1, 1]} : vector<8x512xf32> to vector<8x128xf32>
    %238 = arith.negf %237 : vector<8x128xf32>
    %239 = math.exp %238 : vector<8x128xf32>
    %cst_51 = arith.constant 1.000000e+00 : f32
    %240 = vector.broadcast %cst_51 : f32 to vector<8x128xf32>
    %241 = arith.addf %240, %239 : vector<8x128xf32>
    %242 = arith.divf %240, %241 : vector<8x128xf32>
    %243 = vector.extract_strided_slice %236 {offsets = [0, 128], sizes = [8, 128], strides = [1, 1]} : vector<8x512xf32> to vector<8x128xf32>
    %244 = arith.negf %243 : vector<8x128xf32>
    %245 = math.exp %244 : vector<8x128xf32>
    %cst_52 = arith.constant 1.000000e+00 : f32
    %246 = vector.broadcast %cst_52 : f32 to vector<8x128xf32>
    %247 = arith.addf %246, %245 : vector<8x128xf32>
    %248 = arith.divf %246, %247 : vector<8x128xf32>
    %249 = vector.extract_strided_slice %236 {offsets = [0, 256], sizes = [8, 128], strides = [1, 1]} : vector<8x512xf32> to vector<8x128xf32>
    %250 = math.tanh %249 : vector<8x128xf32>
    %251 = vector.extract_strided_slice %236 {offsets = [0, 384], sizes = [8, 128], strides = [1, 1]} : vector<8x512xf32> to vector<8x128xf32>
    %252 = arith.negf %251 : vector<8x128xf32>
    %253 = math.exp %252 : vector<8x128xf32>
    %cst_53 = arith.constant 1.000000e+00 : f32
    %254 = vector.broadcast %cst_53 : f32 to vector<8x128xf32>
    %255 = arith.addf %254, %253 : vector<8x128xf32>
    %256 = arith.divf %254, %255 : vector<8x128xf32>
    %257 = arith.mulf %248, %195 : vector<8x128xf32>
    %258 = arith.mulf %242, %250 : vector<8x128xf32>
    %259 = arith.addf %257, %258 : vector<8x128xf32>
    %260 = math.tanh %259 : vector<8x128xf32>
    %261 = arith.mulf %256, %260 : vector<8x128xf32>
    %262 = arith.index_cast %c3_i32 : i32 to index
    %c0_54 = arith.constant 0 : index
    %c0_55 = arith.constant 0 : index
    %263 = vector.load %arg5[%262, %c0_54, %c0_55] : memref<8x8x128xf32, #tpu.memory_space<vmem>>, vector<1x8x128xf32>
    %264 = vector.shape_cast %263 : vector<1x8x128xf32> to vector<8x128xf32>
    %265 = vector.shape_cast %261 : vector<8x128xf32> to vector<1x8x128xf32>
    tpu.vector_store %arg5[%262, %c0_54, %c0_55], %265 {strides = array<i32>} : memref<8x8x128xf32, #tpu.memory_space<vmem>>, vector<1x8x128xf32>,
    %266 = vector.extract_strided_slice %234 {offsets = [0, 512], sizes = [8, 512], strides = [1, 1]} : vector<8x1024xf32> to vector<8x512xf32>
    %c4_i32 = arith.constant 4 : i32
    %267 = arith.index_cast %c4_i32 : i32 to index
    %c0_56 = arith.constant 0 : index
    %c0_57 = arith.constant 0 : index
    %268 = vector.load %arg2[%267, %c0_56, %c0_57] : memref<8x8x512xf32, #tpu.memory_space<vmem>>, vector<1x8x512xf32>
    %269 = vector.shape_cast %268 : vector<1x8x512xf32> to vector<8x512xf32>
    %270 = arith.addf %269, %266 : vector<8x512xf32>
    %271 = vector.extract_strided_slice %270 {offsets = [0, 0], sizes = [8, 128], strides = [1, 1]} : vector<8x512xf32> to vector<8x128xf32>
    %272 = arith.negf %271 : vector<8x128xf32>
    %273 = math.exp %272 : vector<8x128xf32>
    %cst_58 = arith.constant 1.000000e+00 : f32
    %274 = vector.broadcast %cst_58 : f32 to vector<8x128xf32>
    %275 = arith.addf %274, %273 : vector<8x128xf32>
    %276 = arith.divf %274, %275 : vector<8x128xf32>
    %277 = vector.extract_strided_slice %270 {offsets = [0, 128], sizes = [8, 128], strides = [1, 1]} : vector<8x512xf32> to vector<8x128xf32>
    %278 = arith.negf %277 : vector<8x128xf32>
    %279 = math.exp %278 : vector<8x128xf32>
    %cst_59 = arith.constant 1.000000e+00 : f32
    %280 = vector.broadcast %cst_59 : f32 to vector<8x128xf32>
    %281 = arith.addf %280, %279 : vector<8x128xf32>
    %282 = arith.divf %280, %281 : vector<8x128xf32>
    %283 = vector.extract_strided_slice %270 {offsets = [0, 256], sizes = [8, 128], strides = [1, 1]} : vector<8x512xf32> to vector<8x128xf32>
    %284 = math.tanh %283 : vector<8x128xf32>
    %285 = vector.extract_strided_slice %270 {offsets = [0, 384], sizes = [8, 128], strides = [1, 1]} : vector<8x512xf32> to vector<8x128xf32>
    %286 = arith.negf %285 : vector<8x128xf32>
    %287 = math.exp %286 : vector<8x128xf32>
    %cst_60 = arith.constant 1.000000e+00 : f32
    %288 = vector.broadcast %cst_60 : f32 to vector<8x128xf32>
    %289 = arith.addf %288, %287 : vector<8x128xf32>
    %290 = arith.divf %288, %289 : vector<8x128xf32>
    %291 = arith.mulf %282, %229 : vector<8x128xf32>
    %292 = arith.mulf %276, %284 : vector<8x128xf32>
    %293 = arith.addf %291, %292 : vector<8x128xf32>
    %294 = math.tanh %293 : vector<8x128xf32>
    %295 = arith.mulf %290, %294 : vector<8x128xf32>
    %296 = tpu.concatenate %295, %261 in 1 : vector<8x128xf32>, vector<8x128xf32> -> vector<8x256xf32>
    %297 = arith.truncf %296 : vector<8x256xf32> to vector<8x256xbf16>
    %cst_61 = arith.constant dense<0.000000e+00> : vector<8x1024xf32>
    %298 = tpu.matmul %297, %3, %cst_61 {dimension_numbers = #tpu.dot_dimension_numbers<[1], [0], [0], [1], [0, 0, 1, 1], [], []>} : vector<8x256xbf16>, vector<256x1024xbf16>, vector<8x1024xf32> -> vector<8x1024xf32>
    %299 = vector.extract_strided_slice %298 {offsets = [0, 0], sizes = [8, 512], strides = [1, 1]} : vector<8x1024xf32> to vector<8x512xf32>
    %300 = arith.addf %299, %6 : vector<8x512xf32>
    %301 = vector.extract_strided_slice %300 {offsets = [0, 0], sizes = [8, 128], strides = [1, 1]} : vector<8x512xf32> to vector<8x128xf32>
    %302 = arith.negf %301 : vector<8x128xf32>
    %303 = math.exp %302 : vector<8x128xf32>
    %cst_62 = arith.constant 1.000000e+00 : f32
    %304 = vector.broadcast %cst_62 : f32 to vector<8x128xf32>
    %305 = arith.addf %304, %303 : vector<8x128xf32>
    %306 = arith.divf %304, %305 : vector<8x128xf32>
    %307 = vector.extract_strided_slice %300 {offsets = [0, 128], sizes = [8, 128], strides = [1, 1]} : vector<8x512xf32> to vector<8x128xf32>
    %308 = arith.negf %307 : vector<8x128xf32>
    %309 = math.exp %308 : vector<8x128xf32>
    %cst_63 = arith.constant 1.000000e+00 : f32
    %310 = vector.broadcast %cst_63 : f32 to vector<8x128xf32>
    %311 = arith.addf %310, %309 : vector<8x128xf32>
    %312 = arith.divf %310, %311 : vector<8x128xf32>
    %313 = vector.extract_strided_slice %300 {offsets = [0, 256], sizes = [8, 128], strides = [1, 1]} : vector<8x512xf32> to vector<8x128xf32>
    %314 = math.tanh %313 : vector<8x128xf32>
    %315 = vector.extract_strided_slice %300 {offsets = [0, 384], sizes = [8, 128], strides = [1, 1]} : vector<8x512xf32> to vector<8x128xf32>
    %316 = arith.negf %315 : vector<8x128xf32>
    %317 = math.exp %316 : vector<8x128xf32>
    %cst_64 = arith.constant 1.000000e+00 : f32
    %318 = vector.broadcast %cst_64 : f32 to vector<8x128xf32>
    %319 = arith.addf %318, %317 : vector<8x128xf32>
    %320 = arith.divf %318, %319 : vector<8x128xf32>
    %321 = arith.mulf %312, %259 : vector<8x128xf32>
    %322 = arith.mulf %306, %314 : vector<8x128xf32>
    %323 = arith.addf %321, %322 : vector<8x128xf32>
    %324 = math.tanh %323 : vector<8x128xf32>
    %325 = arith.mulf %320, %324 : vector<8x128xf32>
    %326 = arith.index_cast %c4_i32 : i32 to index
    %c0_65 = arith.constant 0 : index
    %c0_66 = arith.constant 0 : index
    %327 = vector.load %arg5[%326, %c0_65, %c0_66] : memref<8x8x128xf32, #tpu.memory_space<vmem>>, vector<1x8x128xf32>
    %328 = vector.shape_cast %327 : vector<1x8x128xf32> to vector<8x128xf32>
    %329 = vector.shape_cast %325 : vector<8x128xf32> to vector<1x8x128xf32>
    tpu.vector_store %arg5[%326, %c0_65, %c0_66], %329 {strides = array<i32>} : memref<8x8x128xf32, #tpu.memory_space<vmem>>, vector<1x8x128xf32>,
    %330 = vector.extract_strided_slice %298 {offsets = [0, 512], sizes = [8, 512], strides = [1, 1]} : vector<8x1024xf32> to vector<8x512xf32>
    %c5_i32 = arith.constant 5 : i32
    %331 = arith.index_cast %c5_i32 : i32 to index
    %c0_67 = arith.constant 0 : index
    %c0_68 = arith.constant 0 : index
    %332 = vector.load %arg2[%331, %c0_67, %c0_68] : memref<8x8x512xf32, #tpu.memory_space<vmem>>, vector<1x8x512xf32>
    %333 = vector.shape_cast %332 : vector<1x8x512xf32> to vector<8x512xf32>
    %334 = arith.addf %333, %330 : vector<8x512xf32>
    %335 = vector.extract_strided_slice %334 {offsets = [0, 0], sizes = [8, 128], strides = [1, 1]} : vector<8x512xf32> to vector<8x128xf32>
    %336 = arith.negf %335 : vector<8x128xf32>
    %337 = math.exp %336 : vector<8x128xf32>
    %cst_69 = arith.constant 1.000000e+00 : f32
    %338 = vector.broadcast %cst_69 : f32 to vector<8x128xf32>
    %339 = arith.addf %338, %337 : vector<8x128xf32>
    %340 = arith.divf %338, %339 : vector<8x128xf32>
    %341 = vector.extract_strided_slice %334 {offsets = [0, 128], sizes = [8, 128], strides = [1, 1]} : vector<8x512xf32> to vector<8x128xf32>
    %342 = arith.negf %341 : vector<8x128xf32>
    %343 = math.exp %342 : vector<8x128xf32>
    %cst_70 = arith.constant 1.000000e+00 : f32
    %344 = vector.broadcast %cst_70 : f32 to vector<8x128xf32>
    %345 = arith.addf %344, %343 : vector<8x128xf32>
    %346 = arith.divf %344, %345 : vector<8x128xf32>
    %347 = vector.extract_strided_slice %334 {offsets = [0, 256], sizes = [8, 128], strides = [1, 1]} : vector<8x512xf32> to vector<8x128xf32>
    %348 = math.tanh %347 : vector<8x128xf32>
    %349 = vector.extract_strided_slice %334 {offsets = [0, 384], sizes = [8, 128], strides = [1, 1]} : vector<8x512xf32> to vector<8x128xf32>
    %350 = arith.negf %349 : vector<8x128xf32>
    %351 = math.exp %350 : vector<8x128xf32>
    %cst_71 = arith.constant 1.000000e+00 : f32
    %352 = vector.broadcast %cst_71 : f32 to vector<8x128xf32>
    %353 = arith.addf %352, %351 : vector<8x128xf32>
    %354 = arith.divf %352, %353 : vector<8x128xf32>
    %355 = arith.mulf %346, %293 : vector<8x128xf32>
    %356 = arith.mulf %340, %348 : vector<8x128xf32>
    %357 = arith.addf %355, %356 : vector<8x128xf32>
    %358 = math.tanh %357 : vector<8x128xf32>
    %359 = arith.mulf %354, %358 : vector<8x128xf32>
    %360 = tpu.concatenate %359, %325 in 1 : vector<8x128xf32>, vector<8x128xf32> -> vector<8x256xf32>
    %361 = arith.truncf %360 : vector<8x256xf32> to vector<8x256xbf16>
    %cst_72 = arith.constant dense<0.000000e+00> : vector<8x1024xf32>
    %362 = tpu.matmul %361, %3, %cst_72 {dimension_numbers = #tpu.dot_dimension_numbers<[1], [0], [0], [1], [0, 0, 1, 1], [], []>} : vector<8x256xbf16>, vector<256x1024xbf16>, vector<8x1024xf32> -> vector<8x1024xf32>
    %363 = vector.extract_strided_slice %362 {offsets = [0, 0], sizes = [8, 512], strides = [1, 1]} : vector<8x1024xf32> to vector<8x512xf32>
    %364 = arith.addf %363, %6 : vector<8x512xf32>
    %365 = vector.extract_strided_slice %364 {offsets = [0, 0], sizes = [8, 128], strides = [1, 1]} : vector<8x512xf32> to vector<8x128xf32>
    %366 = arith.negf %365 : vector<8x128xf32>
    %367 = math.exp %366 : vector<8x128xf32>
    %cst_73 = arith.constant 1.000000e+00 : f32
    %368 = vector.broadcast %cst_73 : f32 to vector<8x128xf32>
    %369 = arith.addf %368, %367 : vector<8x128xf32>
    %370 = arith.divf %368, %369 : vector<8x128xf32>
    %371 = vector.extract_strided_slice %364 {offsets = [0, 128], sizes = [8, 128], strides = [1, 1]} : vector<8x512xf32> to vector<8x128xf32>
    %372 = arith.negf %371 : vector<8x128xf32>
    %373 = math.exp %372 : vector<8x128xf32>
    %cst_74 = arith.constant 1.000000e+00 : f32
    %374 = vector.broadcast %cst_74 : f32 to vector<8x128xf32>
    %375 = arith.addf %374, %373 : vector<8x128xf32>
    %376 = arith.divf %374, %375 : vector<8x128xf32>
    %377 = vector.extract_strided_slice %364 {offsets = [0, 256], sizes = [8, 128], strides = [1, 1]} : vector<8x512xf32> to vector<8x128xf32>
    %378 = math.tanh %377 : vector<8x128xf32>
    %379 = vector.extract_strided_slice %364 {offsets = [0, 384], sizes = [8, 128], strides = [1, 1]} : vector<8x512xf32> to vector<8x128xf32>
    %380 = arith.negf %379 : vector<8x128xf32>
    %381 = math.exp %380 : vector<8x128xf32>
    %cst_75 = arith.constant 1.000000e+00 : f32
    %382 = vector.broadcast %cst_75 : f32 to vector<8x128xf32>
    %383 = arith.addf %382, %381 : vector<8x128xf32>
    %384 = arith.divf %382, %383 : vector<8x128xf32>
    %385 = arith.mulf %376, %323 : vector<8x128xf32>
    %386 = arith.mulf %370, %378 : vector<8x128xf32>
    %387 = arith.addf %385, %386 : vector<8x128xf32>
    %388 = math.tanh %387 : vector<8x128xf32>
    %389 = arith.mulf %384, %388 : vector<8x128xf32>
    %390 = arith.index_cast %c5_i32 : i32 to index
    %c0_76 = arith.constant 0 : index
    %c0_77 = arith.constant 0 : index
    %391 = vector.load %arg5[%390, %c0_76, %c0_77] : memref<8x8x128xf32, #tpu.memory_space<vmem>>, vector<1x8x128xf32>
    %392 = vector.shape_cast %391 : vector<1x8x128xf32> to vector<8x128xf32>
    %393 = vector.shape_cast %389 : vector<8x128xf32> to vector<1x8x128xf32>
    tpu.vector_store %arg5[%390, %c0_76, %c0_77], %393 {strides = array<i32>} : memref<8x8x128xf32, #tpu.memory_space<vmem>>, vector<1x8x128xf32>,
    %394 = vector.extract_strided_slice %362 {offsets = [0, 512], sizes = [8, 512], strides = [1, 1]} : vector<8x1024xf32> to vector<8x512xf32>
    %c6_i32 = arith.constant 6 : i32
    %395 = arith.index_cast %c6_i32 : i32 to index
    %c0_78 = arith.constant 0 : index
    %c0_79 = arith.constant 0 : index
    %396 = vector.load %arg2[%395, %c0_78, %c0_79] : memref<8x8x512xf32, #tpu.memory_space<vmem>>, vector<1x8x512xf32>
    %397 = vector.shape_cast %396 : vector<1x8x512xf32> to vector<8x512xf32>
    %398 = arith.addf %397, %394 : vector<8x512xf32>
    %399 = vector.extract_strided_slice %398 {offsets = [0, 0], sizes = [8, 128], strides = [1, 1]} : vector<8x512xf32> to vector<8x128xf32>
    %400 = arith.negf %399 : vector<8x128xf32>
    %401 = math.exp %400 : vector<8x128xf32>
    %cst_80 = arith.constant 1.000000e+00 : f32
    %402 = vector.broadcast %cst_80 : f32 to vector<8x128xf32>
    %403 = arith.addf %402, %401 : vector<8x128xf32>
    %404 = arith.divf %402, %403 : vector<8x128xf32>
    %405 = vector.extract_strided_slice %398 {offsets = [0, 128], sizes = [8, 128], strides = [1, 1]} : vector<8x512xf32> to vector<8x128xf32>
    %406 = arith.negf %405 : vector<8x128xf32>
    %407 = math.exp %406 : vector<8x128xf32>
    %cst_81 = arith.constant 1.000000e+00 : f32
    %408 = vector.broadcast %cst_81 : f32 to vector<8x128xf32>
    %409 = arith.addf %408, %407 : vector<8x128xf32>
    %410 = arith.divf %408, %409 : vector<8x128xf32>
    %411 = vector.extract_strided_slice %398 {offsets = [0, 256], sizes = [8, 128], strides = [1, 1]} : vector<8x512xf32> to vector<8x128xf32>
    %412 = math.tanh %411 : vector<8x128xf32>
    %413 = vector.extract_strided_slice %398 {offsets = [0, 384], sizes = [8, 128], strides = [1, 1]} : vector<8x512xf32> to vector<8x128xf32>
    %414 = arith.negf %413 : vector<8x128xf32>
    %415 = math.exp %414 : vector<8x128xf32>
    %cst_82 = arith.constant 1.000000e+00 : f32
    %416 = vector.broadcast %cst_82 : f32 to vector<8x128xf32>
    %417 = arith.addf %416, %415 : vector<8x128xf32>
    %418 = arith.divf %416, %417 : vector<8x128xf32>
    %419 = arith.mulf %410, %357 : vector<8x128xf32>
    %420 = arith.mulf %404, %412 : vector<8x128xf32>
    %421 = arith.addf %419, %420 : vector<8x128xf32>
    %422 = math.tanh %421 : vector<8x128xf32>
    %423 = arith.mulf %418, %422 : vector<8x128xf32>
    %424 = tpu.concatenate %423, %389 in 1 : vector<8x128xf32>, vector<8x128xf32> -> vector<8x256xf32>
    %425 = arith.truncf %424 : vector<8x256xf32> to vector<8x256xbf16>
    %cst_83 = arith.constant dense<0.000000e+00> : vector<8x1024xf32>
    %426 = tpu.matmul %425, %3, %cst_83 {dimension_numbers = #tpu.dot_dimension_numbers<[1], [0], [0], [1], [0, 0, 1, 1], [], []>} : vector<8x256xbf16>, vector<256x1024xbf16>, vector<8x1024xf32> -> vector<8x1024xf32>
    %427 = vector.extract_strided_slice %426 {offsets = [0, 0], sizes = [8, 512], strides = [1, 1]} : vector<8x1024xf32> to vector<8x512xf32>
    %428 = arith.addf %427, %6 : vector<8x512xf32>
    %429 = vector.extract_strided_slice %428 {offsets = [0, 0], sizes = [8, 128], strides = [1, 1]} : vector<8x512xf32> to vector<8x128xf32>
    %430 = arith.negf %429 : vector<8x128xf32>
    %431 = math.exp %430 : vector<8x128xf32>
    %cst_84 = arith.constant 1.000000e+00 : f32
    %432 = vector.broadcast %cst_84 : f32 to vector<8x128xf32>
    %433 = arith.addf %432, %431 : vector<8x128xf32>
    %434 = arith.divf %432, %433 : vector<8x128xf32>
    %435 = vector.extract_strided_slice %428 {offsets = [0, 128], sizes = [8, 128], strides = [1, 1]} : vector<8x512xf32> to vector<8x128xf32>
    %436 = arith.negf %435 : vector<8x128xf32>
    %437 = math.exp %436 : vector<8x128xf32>
    %cst_85 = arith.constant 1.000000e+00 : f32
    %438 = vector.broadcast %cst_85 : f32 to vector<8x128xf32>
    %439 = arith.addf %438, %437 : vector<8x128xf32>
    %440 = arith.divf %438, %439 : vector<8x128xf32>
    %441 = vector.extract_strided_slice %428 {offsets = [0, 256], sizes = [8, 128], strides = [1, 1]} : vector<8x512xf32> to vector<8x128xf32>
    %442 = math.tanh %441 : vector<8x128xf32>
    %443 = vector.extract_strided_slice %428 {offsets = [0, 384], sizes = [8, 128], strides = [1, 1]} : vector<8x512xf32> to vector<8x128xf32>
    %444 = arith.negf %443 : vector<8x128xf32>
    %445 = math.exp %444 : vector<8x128xf32>
    %cst_86 = arith.constant 1.000000e+00 : f32
    %446 = vector.broadcast %cst_86 : f32 to vector<8x128xf32>
    %447 = arith.addf %446, %445 : vector<8x128xf32>
    %448 = arith.divf %446, %447 : vector<8x128xf32>
    %449 = arith.mulf %440, %387 : vector<8x128xf32>
    %450 = arith.mulf %434, %442 : vector<8x128xf32>
    %451 = arith.addf %449, %450 : vector<8x128xf32>
    %452 = math.tanh %451 : vector<8x128xf32>
    %453 = arith.mulf %448, %452 : vector<8x128xf32>
    %454 = arith.index_cast %c6_i32 : i32 to index
    %c0_87 = arith.constant 0 : index
    %c0_88 = arith.constant 0 : index
    %455 = vector.load %arg5[%454, %c0_87, %c0_88] : memref<8x8x128xf32, #tpu.memory_space<vmem>>, vector<1x8x128xf32>
    %456 = vector.shape_cast %455 : vector<1x8x128xf32> to vector<8x128xf32>
    %457 = vector.shape_cast %453 : vector<8x128xf32> to vector<1x8x128xf32>
    tpu.vector_store %arg5[%454, %c0_87, %c0_88], %457 {strides = array<i32>} : memref<8x8x128xf32, #tpu.memory_space<vmem>>, vector<1x8x128xf32>,
    %458 = vector.extract_strided_slice %426 {offsets = [0, 512], sizes = [8, 512], strides = [1, 1]} : vector<8x1024xf32> to vector<8x512xf32>
    %c7_i32 = arith.constant 7 : i32
    %459 = arith.index_cast %c7_i32 : i32 to index
    %c0_89 = arith.constant 0 : index
    %c0_90 = arith.constant 0 : index
    %460 = vector.load %arg2[%459, %c0_89, %c0_90] : memref<8x8x512xf32, #tpu.memory_space<vmem>>, vector<1x8x512xf32>
    %461 = vector.shape_cast %460 : vector<1x8x512xf32> to vector<8x512xf32>
    %462 = arith.addf %461, %458 : vector<8x512xf32>
    %463 = vector.extract_strided_slice %462 {offsets = [0, 0], sizes = [8, 128], strides = [1, 1]} : vector<8x512xf32> to vector<8x128xf32>
    %464 = arith.negf %463 : vector<8x128xf32>
    %465 = math.exp %464 : vector<8x128xf32>
    %cst_91 = arith.constant 1.000000e+00 : f32
    %466 = vector.broadcast %cst_91 : f32 to vector<8x128xf32>
    %467 = arith.addf %466, %465 : vector<8x128xf32>
    %468 = arith.divf %466, %467 : vector<8x128xf32>
    %469 = vector.extract_strided_slice %462 {offsets = [0, 128], sizes = [8, 128], strides = [1, 1]} : vector<8x512xf32> to vector<8x128xf32>
    %470 = arith.negf %469 : vector<8x128xf32>
    %471 = math.exp %470 : vector<8x128xf32>
    %cst_92 = arith.constant 1.000000e+00 : f32
    %472 = vector.broadcast %cst_92 : f32 to vector<8x128xf32>
    %473 = arith.addf %472, %471 : vector<8x128xf32>
    %474 = arith.divf %472, %473 : vector<8x128xf32>
    %475 = vector.extract_strided_slice %462 {offsets = [0, 256], sizes = [8, 128], strides = [1, 1]} : vector<8x512xf32> to vector<8x128xf32>
    %476 = math.tanh %475 : vector<8x128xf32>
    %477 = vector.extract_strided_slice %462 {offsets = [0, 384], sizes = [8, 128], strides = [1, 1]} : vector<8x512xf32> to vector<8x128xf32>
    %478 = arith.negf %477 : vector<8x128xf32>
    %479 = math.exp %478 : vector<8x128xf32>
    %cst_93 = arith.constant 1.000000e+00 : f32
    %480 = vector.broadcast %cst_93 : f32 to vector<8x128xf32>
    %481 = arith.addf %480, %479 : vector<8x128xf32>
    %482 = arith.divf %480, %481 : vector<8x128xf32>
    %483 = arith.mulf %474, %421 : vector<8x128xf32>
    %484 = arith.mulf %468, %476 : vector<8x128xf32>
    %485 = arith.addf %483, %484 : vector<8x128xf32>
    %486 = math.tanh %485 : vector<8x128xf32>
    %487 = arith.mulf %482, %486 : vector<8x128xf32>
    %488 = tpu.concatenate %487, %453 in 1 : vector<8x128xf32>, vector<8x128xf32> -> vector<8x256xf32>
    %489 = arith.truncf %488 : vector<8x256xf32> to vector<8x256xbf16>
    %cst_94 = arith.constant dense<0.000000e+00> : vector<8x1024xf32>
    %490 = tpu.matmul %489, %3, %cst_94 {dimension_numbers = #tpu.dot_dimension_numbers<[1], [0], [0], [1], [0, 0, 1, 1], [], []>} : vector<8x256xbf16>, vector<256x1024xbf16>, vector<8x1024xf32> -> vector<8x1024xf32>
    %491 = vector.extract_strided_slice %490 {offsets = [0, 0], sizes = [8, 512], strides = [1, 1]} : vector<8x1024xf32> to vector<8x512xf32>
    %492 = arith.addf %491, %6 : vector<8x512xf32>
    %493 = vector.extract_strided_slice %492 {offsets = [0, 0], sizes = [8, 128], strides = [1, 1]} : vector<8x512xf32> to vector<8x128xf32>
    %494 = arith.negf %493 : vector<8x128xf32>
    %495 = math.exp %494 : vector<8x128xf32>
    %cst_95 = arith.constant 1.000000e+00 : f32
    %496 = vector.broadcast %cst_95 : f32 to vector<8x128xf32>
    %497 = arith.addf %496, %495 : vector<8x128xf32>
    %498 = arith.divf %496, %497 : vector<8x128xf32>
    %499 = vector.extract_strided_slice %492 {offsets = [0, 128], sizes = [8, 128], strides = [1, 1]} : vector<8x512xf32> to vector<8x128xf32>
    %500 = arith.negf %499 : vector<8x128xf32>
    %501 = math.exp %500 : vector<8x128xf32>
    %cst_96 = arith.constant 1.000000e+00 : f32
    %502 = vector.broadcast %cst_96 : f32 to vector<8x128xf32>
    %503 = arith.addf %502, %501 : vector<8x128xf32>
    %504 = arith.divf %502, %503 : vector<8x128xf32>
    %505 = vector.extract_strided_slice %492 {offsets = [0, 256], sizes = [8, 128], strides = [1, 1]} : vector<8x512xf32> to vector<8x128xf32>
    %506 = math.tanh %505 : vector<8x128xf32>
    %507 = vector.extract_strided_slice %492 {offsets = [0, 384], sizes = [8, 128], strides = [1, 1]} : vector<8x512xf32> to vector<8x128xf32>
    %508 = arith.negf %507 : vector<8x128xf32>
    %509 = math.exp %508 : vector<8x128xf32>
    %cst_97 = arith.constant 1.000000e+00 : f32
    %510 = vector.broadcast %cst_97 : f32 to vector<8x128xf32>
    %511 = arith.addf %510, %509 : vector<8x128xf32>
    %512 = arith.divf %510, %511 : vector<8x128xf32>
    %513 = arith.mulf %504, %451 : vector<8x128xf32>
    %514 = arith.mulf %498, %506 : vector<8x128xf32>
    %515 = arith.addf %513, %514 : vector<8x128xf32>
    %516 = math.tanh %515 : vector<8x128xf32>
    %517 = arith.mulf %512, %516 : vector<8x128xf32>
    %518 = arith.index_cast %c7_i32 : i32 to index
    %c0_98 = arith.constant 0 : index
    %c0_99 = arith.constant 0 : index
    %519 = vector.load %arg5[%518, %c0_98, %c0_99] : memref<8x8x128xf32, #tpu.memory_space<vmem>>, vector<1x8x128xf32>
    %520 = vector.shape_cast %519 : vector<1x8x128xf32> to vector<8x128xf32>
    %521 = vector.shape_cast %517 : vector<8x128xf32> to vector<1x8x128xf32>
    tpu.vector_store %arg5[%518, %c0_98, %c0_99], %521 {strides = array<i32>} : memref<8x8x128xf32, #tpu.memory_space<vmem>>, vector<1x8x128xf32>,
    %522 = vector.extract_strided_slice %490 {offsets = [0, 512], sizes = [8, 512], strides = [1, 1]} : vector<8x1024xf32> to vector<8x512xf32>
    %c8_i32 = arith.constant 8 : i32
    %c0_100 = arith.constant 0 : index
    %c0_101 = arith.constant 0 : index
    %523 = vector.load %arg6[%c0_100, %c0_101] : memref<8x128xf32, #tpu.memory_space<vmem>>, vector<8x128xf32>
    tpu.vector_store %arg6[%c0_100, %c0_101], %485 {strides = array<i32>} : memref<8x128xf32, #tpu.memory_space<vmem>>, vector<8x128xf32>,
    %c0_102 = arith.constant 0 : index
    %c0_103 = arith.constant 0 : index
    %524 = vector.load %arg7[%c0_102, %c0_103] : memref<8x128xf32, #tpu.memory_space<vmem>>, vector<8x128xf32>
    tpu.vector_store %arg7[%c0_102, %c0_103], %517 {strides = array<i32>} : memref<8x128xf32, #tpu.memory_space<vmem>>, vector<8x128xf32>,
    %c0_104 = arith.constant 0 : index
    %c0_105 = arith.constant 0 : index
    %525 = vector.load %arg8[%c0_104, %c0_105] : memref<8x128xf32, #tpu.memory_space<vmem>>, vector<8x128xf32>
    tpu.vector_store %arg8[%c0_104, %c0_105], %515 {strides = array<i32>} : memref<8x128xf32, #tpu.memory_space<vmem>>, vector<8x128xf32>,
    %c0_106 = arith.constant 0 : index
    %c0_107 = arith.constant 0 : index
    %526 = vector.load %arg9[%c0_106, %c0_107] : memref<8x512xf32, #tpu.memory_space<vmem>>, vector<8x512xf32>
    tpu.vector_store %arg9[%c0_106, %c0_107], %522 {strides = array<i32>} : memref<8x512xf32, #tpu.memory_space<vmem>>, vector<8x512xf32>,
    return
  }
  func.func @transform_0(%arg0: i32, %arg1: i32) -> (i32, i32, i32) {
    %c0_i32 = arith.constant 0 : i32
    %c0_i32_0 = arith.constant 0 : i32
    return %arg1, %arg0, %c0_i32 : i32, i32, i32
  }
  func.func @transform_1(%arg0: i32, %arg1: i32) -> (i32, i32) {
    %c0_i32 = arith.constant 0 : i32
    %c0_i32_0 = arith.constant 0 : i32
    %c0_i32_1 = arith.constant 0 : i32
    return %c0_i32, %c0_i32_0 : i32, i32
  }
  func.func @transform_2(%arg0: i32, %arg1: i32) -> (i32, i32) {
    %c0_i32 = arith.constant 0 : i32
    %c0_i32_0 = arith.constant 0 : i32
    %c0_i32_1 = arith.constant 0 : i32
    return %c0_i32, %c0_i32_0 : i32, i32
  }
  func.func @transform_3(%arg0: i32, %arg1: i32) -> (i32, i32, i32) {
    %c0_i32 = arith.constant 0 : i32
    %c0_i32_0 = arith.constant 0 : i32
    return %arg1, %arg0, %c0_i32 : i32, i32, i32
  }
}

</mosaic_0001>

<llo_original>
// kernel: mann_forward.1
$region0: #{mann_forward.1}
  #allocation0 [shape = 'u32[]', space=smem, size = 0x4, offset = 0x4, fixed_abs, tag = 'smem constant byte address 0x4 - core index']
  #allocation1 [shape = 'u32[144,128]{1,0:T(1,128)}', space=vmem, size = 0x12000, scoped, tag = 'internal scratch']
  #allocation2 [shape = 'f32[8,128]{1,0:T(8,128)}', space=vmem, size = 0x1000, scoped, tag = 'scratch operand']
  #allocation3 [shape = 'f32[8,128]{1,0:T(8,128)}', space=vmem, size = 0x1000, scoped, tag = 'scratch operand']
  #allocation4 [shape = 'f32[8,128]{1,0:T(8,128)}', space=vmem, size = 0x1000, scoped, tag = 'scratch operand']
  #allocation5 [shape = 'f32[8,512]{1,0:T(8,128)}', space=vmem, size = 0x4000, scoped, tag = 'scratch operand']
  %s0 = inlined_call_operand.vmem [shape: f32[8,8,512], index: 0, kind: input, shape index: {}]
  %s1 = inlined_call_operand.vmem [shape: bf16[256,1024], index: 1, kind: input, shape index: {}]
  %s2 = inlined_call_operand.vmem [shape: f32[1,512], index: 2, kind: input, shape index: {}]
  %s3 = inlined_call_operand.vmem [shape: f32[8,8,128], index: 3, kind: output, shape index: {}]
  %s4 = sld [smem:[#allocation0]]
  $region26: #{mann_forward.1} parent=0
    _
  %s6 = ssub.s32 1, %s4
  %s7 = scalar_select 0, %s6, %s4
  // Predicated region
  $region2: #{mann_forward.1} parent=0 // pred_check
    _
  $region3: #{mann_forward.1} parent=0 // pred_check_branch
    %9 = sbr.rel (0) target = $region5
  $region4: #{mann_forward.1} parent=0 // pred_region
    _
  $region5: #{mann_forward.1} parent=0 // pred_fallthru
    _
  // Predicated region
  $region6: #{mann_forward.1} parent=0 // pred_check
    _
  $region7: #{mann_forward.1} parent=0 // pred_check_branch
    %11 = sbr.rel (0) target = $region9
  $region8: #{mann_forward.1} parent=0 // pred_region
    _
  $region9: #{mann_forward.1} parent=0 // pred_fallthru
    _
  // Predicated region
  $region10: #{mann_forward.1} parent=0 // pred_check
    _
  $region11: #{mann_forward.1} parent=0 // pred_check_branch
    %13 = sbr.rel (0) target = $region13
  $region12: #{mann_forward.1} parent=0 // pred_region
    _
  $region13: #{mann_forward.1} parent=0 // pred_fallthru
    _
  %p14 = scmp.eq.s32.totalorder 0, 0
  // Predicated region
  $region14: #{mann_forward.1} parent=0 // pred_check
    %p15 = pneg %p14
  $region15: #{mann_forward.1} parent=0 // pred_check_branch
    %17 = sbr.rel (%p15) target = $region17
  $region16: #{mann_forward.1} parent=0 // pred_region
    %18 = vst [vmem:[#allocation2] sm:$0xff] 0.0
    %19 = vst [vmem:[#allocation3] sm:$0xff] 0.0
    %20 = vst [vmem:[#allocation4] sm:$0xff] 0.0
    %21 = vst [vmem:[#allocation5] sm:$0xff] 0.0
    %22 = vst [vmem:[#allocation5 + $0x8] sm:$0xff] 0.0
    %23 = vst [vmem:[#allocation5 + $0x10] sm:$0xff] 0.0
    %24 = vst [vmem:[#allocation5 + $0x18] sm:$0xff] 0.0
  $region17: #{mann_forward.1} parent=0 // pred_fallthru
    _
  %v25 = vld [vmem:[%s1] sm:$0xff]
  %v26 = vld [vmem:[%s1 + $0x8] sm:$0xff]
  %v27 = vld [vmem:[%s1 + $0x10] sm:$0xff]
  %v28 = vld [vmem:[%s1 + $0x18] sm:$0xff]
  %v29 = vld [vmem:[%s1 + $0x20] sm:$0xff]
  %v30 = vld [vmem:[%s1 + $0x28] sm:$0xff]
  %v31 = vld [vmem:[%s1 + $0x30] sm:$0xff]
  %v32 = vld [vmem:[%s1 + $0x38] sm:$0xff]
  %v33 = vld [vmem:[%s1 + $0x40] sm:$0xff]
  %v34 = vld [vmem:[%s1 + $0x48] sm:$0xff]
  %v35 = vld [vmem:[%s1 + $0x50] sm:$0xff]
  %v36 = vld [vmem:[%s1 + $0x58] sm:$0xff]
  %v37 = vld [vmem:[%s1 + $0x60] sm:$0xff]
  %v38 = vld [vmem:[%s1 + $0x68] sm:$0xff]
  %v39 = vld [vmem:[%s1 + $0x70] sm:$0xff]
  %v40 = vld [vmem:[%s1 + $0x78] sm:$0xff]
  %v41 = vld [vmem:[%s1 + $0x80] sm:$0xff]
  %v42 = vld [vmem:[%s1 + $0x88] sm:$0xff]
  %v43 = vld [vmem:[%s1 + $0x90] sm:$0xff]
  %v44 = vld [vmem:[%s1 + $0x98] sm:$0xff]
  %v45 = vld [vmem:[%s1 + $0xa0] sm:$0xff]
  %v46 = vld [vmem:[%s1 + $0xa8] sm:$0xff]
  %v47 = vld [vmem:[%s1 + $0xb0] sm:$0xff]
  %v48 = vld [vmem:[%s1 + $0xb8] sm:$0xff]
  %v49 = vld [vmem:[%s1 + $0xc0] sm:$0xff]
  %v50 = vld [vmem:[%s1 + $0xc8] sm:$0xff]
  %v51 = vld [vmem:[%s1 + $0xd0] sm:$0xff]
  %v52 = vld [vmem:[%s1 + $0xd8] sm:$0xff]
  %v53 = vld [vmem:[%s1 + $0xe0] sm:$0xff]
  %v54 = vld [vmem:[%s1 + $0xe8] sm:$0xff]
  %v55 = vld [vmem:[%s1 + $0xf0] sm:$0xff]
  %v56 = vld [vmem:[%s1 + $0xf8] sm:$0xff]
  %v57 = vld [vmem:[%s1 + $0x100] sm:$0xff]
  %v58 = vld [vmem:[%s1 + $0x108] sm:$0xff]
  %v59 = vld [vmem:[%s1 + $0x110] sm:$0xff]
  %v60 = vld [vmem:[%s1 + $0x118] sm:$0xff]
  %v61 = vld [vmem:[%s1 + $0x120] sm:$0xff]
  %v62 = vld [vmem:[%s1 + $0x128] sm:$0xff]
  %v63 = vld [vmem:[%s1 + $0x130] sm:$0xff]
  %v64 = vld [vmem:[%s1 + $0x138] sm:$0xff]
  %v65 = vld [vmem:[%s1 + $0x140] sm:$0xff]
  %v66 = vld [vmem:[%s1 + $0x148] sm:$0xff]
  %v67 = vld [vmem:[%s1 + $0x150] sm:$0xff]
  %v68 = vld [vmem:[%s1 + $0x158] sm:$0xff]
  %v69 = vld [vmem:[%s1 + $0x160] sm:$0xff]
  %v70 = vld [vmem:[%s1 + $0x168] sm:$0xff]
  %v71 = vld [vmem:[%s1 + $0x170] sm:$0xff]
  %v72 = vld [vmem:[%s1 + $0x178] sm:$0xff]
  %v73 = vld [vmem:[%s1 + $0x180] sm:$0xff]
  %v74 = vld [vmem:[%s1 + $0x188] sm:$0xff]
  %v75 = vld [vmem:[%s1 + $0x190] sm:$0xff]
  %v76 = vld [vmem:[%s1 + $0x198] sm:$0xff]
  %v77 = vld [vmem:[%s1 + $0x1a0] sm:$0xff]
  %v78 = vld [vmem:[%s1 + $0x1a8] sm:$0xff]
  %v79 = vld [vmem:[%s1 + $0x1b0] sm:$0xff]
  %v80 = vld [vmem:[%s1 + $0x1b8] sm:$0xff]
  %v81 = vld [vmem:[%s1 + $0x1c0] sm:$0xff]
  %v82 = vld [vmem:[%s1 + $0x1c8] sm:$0xff]
  %v83 = vld [vmem:[%s1 + $0x1d0] sm:$0xff]
  %v84 = vld [vmem:[%s1 + $0x1d8] sm:$0xff]
  %v85 = vld [vmem:[%s1 + $0x1e0] sm:$0xff]
  %v86 = vld [vmem:[%s1 + $0x1e8] sm:$0xff]
  %v87 = vld [vmem:[%s1 + $0x1f0] sm:$0xff]
  %v88 = vld [vmem:[%s1 + $0x1f8] sm:$0xff]
  %v89 = vld [vmem:[%s1 + $0x200] sm:$0xff]
  %v90 = vld [vmem:[%s1 + $0x208] sm:$0xff]
  %v91 = vld [vmem:[%s1 + $0x210] sm:$0xff]
  %v92 = vld [vmem:[%s1 + $0x218] sm:$0xff]
  %v93 = vld [vmem:[%s1 + $0x220] sm:$0xff]
  %v94 = vld [vmem:[%s1 + $0x228] sm:$0xff]
  %v95 = vld [vmem:[%s1 + $0x230] sm:$0xff]
  %v96 = vld [vmem:[%s1 + $0x238] sm:$0xff]
  %v97 = vld [vmem:[%s1 + $0x240] sm:$0xff]
  %v98 = vld [vmem:[%s1 + $0x248] sm:$0xff]
  %v99 = vld [vmem:[%s1 + $0x250] sm:$0xff]
  %v100 = vld [vmem:[%s1 + $0x258] sm:$0xff]
  %v101 = vld [vmem:[%s1 + $0x260] sm:$0xff]
  %v102 = vld [vmem:[%s1 + $0x268] sm:$0xff]
  %v103 = vld [vmem:[%s1 + $0x270] sm:$0xff]
  %v104 = vld [vmem:[%s1 + $0x278] sm:$0xff]
  %v105 = vld [vmem:[%s1 + $0x280] sm:$0xff]
  %v106 = vld [vmem:[%s1 + $0x288] sm:$0xff]
  %v107 = vld [vmem:[%s1 + $0x290] sm:$0xff]
  %v108 = vld [vmem:[%s1 + $0x298] sm:$0xff]
  %v109 = vld [vmem:[%s1 + $0x2a0] sm:$0xff]
  %v110 = vld [vmem:[%s1 + $0x2a8] sm:$0xff]
  %v111 = vld [vmem:[%s1 + $0x2b0] sm:$0xff]
  %v112 = vld [vmem:[%s1 + $0x2b8] sm:$0xff]
  %v113 = vld [vmem:[%s1 + $0x2c0] sm:$0xff]
  %v114 = vld [vmem:[%s1 + $0x2c8] sm:$0xff]
  %v115 = vld [vmem:[%s1 + $0x2d0] sm:$0xff]
  %v116 = vld [vmem:[%s1 + $0x2d8] sm:$0xff]
  %v117 = vld [vmem:[%s1 + $0x2e0] sm:$0xff]
  %v118 = vld [vmem:[%s1 + $0x2e8] sm:$0xff]
  %v119 = vld [vmem:[%s1 + $0x2f0] sm:$0xff]
  %v120 = vld [vmem:[%s1 + $0x2f8] sm:$0xff]
  %v121 = vld [vmem:[%s1 + $0x300] sm:$0xff]
  %v122 = vld [vmem:[%s1 + $0x308] sm:$0xff]
  %v123 = vld [vmem:[%s1 + $0x310] sm:$0xff]
  %v124 = vld [vmem:[%s1 + $0x318] sm:$0xff]
  %v125 = vld [vmem:[%s1 + $0x320] sm:$0xff]
  %v126 = vld [vmem:[%s1 + $0x328] sm:$0xff]
  %v127 = vld [vmem:[%s1 + $0x330] sm:$0xff]
  %v128 = vld [vmem:[%s1 + $0x338] sm:$0xff]
  %v129 = vld [vmem:[%s1 + $0x340] sm:$0xff]
  %v130 = vld [vmem:[%s1 + $0x348] sm:$0xff]
  %v131 = vld [vmem:[%s1 + $0x350] sm:$0xff]
  %v132 = vld [vmem:[%s1 + $0x358] sm:$0xff]
  %v133 = vld [vmem:[%s1 + $0x360] sm:$0xff]
  %v134 = vld [vmem:[%s1 + $0x368] sm:$0xff]
  %v135 = vld [vmem:[%s1 + $0x370] sm:$0xff]
  %v136 = vld [vmem:[%s1 + $0x378] sm:$0xff]
  %v137 = vld [vmem:[%s1 + $0x380] sm:$0xff]
  %v138 = vld [vmem:[%s1 + $0x388] sm:$0xff]
  %v139 = vld [vmem:[%s1 + $0x390] sm:$0xff]
  %v140 = vld [vmem:[%s1 + $0x398] sm:$0xff]
  %v141 = vld [vmem:[%s1 + $0x3a0] sm:$0xff]
  %v142 = vld [vmem:[%s1 + $0x3a8] sm:$0xff]
  %v143 = vld [vmem:[%s1 + $0x3b0] sm:$0xff]
  %v144 = vld [vmem:[%s1 + $0x3b8] sm:$0xff]
  %v145 = vld [vmem:[%s1 + $0x3c0] sm:$0xff]
  %v146 = vld [vmem:[%s1 + $0x3c8] sm:$0xff]
  %v147 = vld [vmem:[%s1 + $0x3d0] sm:$0xff]
  %v148 = vld [vmem:[%s1 + $0x3d8] sm:$0xff]
  %v149 = vld [vmem:[%s1 + $0x3e0] sm:$0xff]
  %v150 = vld [vmem:[%s1 + $0x3e8] sm:$0xff]
  %v151 = vld [vmem:[%s1 + $0x3f0] sm:$0xff]
  %v152 = vld [vmem:[%s1 + $0x3f8] sm:$0xff]
  %v153 = vld [vmem:[%s2] sm:$0xf]
  %v155 = vlaneseq
  %v156 = vshrl.u32 %v155, 7
  %v157 = vsub.s32 0, %v156
  %v158 = vrot.slane %v153, %v157
  %v159 = vlaneseq
  %v160 = vshrl.u32 %v159, 7
  %v161 = vsub.s32 1, %v160
  %v162 = vrot.slane %v153, %v161
  %v163 = vlaneseq
  %v164 = vshrl.u32 %v163, 7
  %v165 = vsub.s32 2, %v164
  %v166 = vrot.slane %v153, %v165
  %v167 = vlaneseq
  %v168 = vshrl.u32 %v167, 7
  %v169 = vsub.s32 3, %v168
  %v170 = vrot.slane %v153, %v169
  %v175 = vld [vmem:[#allocation2] sm:$0xff]
  %v176 = vld [vmem:[#allocation3] sm:$0xff]
  %v177 = vld [vmem:[#allocation4] sm:$0xff]
  %v178 = vld [vmem:[#allocation5] sm:$0xff]
  %v179 = vld [vmem:[#allocation5 + $0x8] sm:$0xff]
  %v180 = vld [vmem:[#allocation5 + $0x10] sm:$0xff]
  %v181 = vld [vmem:[#allocation5 + $0x18] sm:$0xff]
  %v182 = vld [vmem:[%s0] sm:$0xff]
  %v183 = vld [vmem:[%s0 + $0x8] sm:$0xff]
  %v184 = vld [vmem:[%s0 + $0x10] sm:$0xff]
  %v185 = vld [vmem:[%s0 + $0x18] sm:$0xff]
  %v186 = vadd.f32 %v182, %v178
  %v187 = vadd.f32 %v183, %v179
  %v188 = vadd.f32 %v184, %v180
  %v189 = vadd.f32 %v185, %v181
  %v190 = vxor.u32 %v186, 2147483648
  %v191 = vmul.f32 %v190, 1.442695
  %v192 = vpow.pop %v191
  %v193 = vadd.f32 %v192, 1.0
  %v194 = vrcp.pop %v193
  %v195 = vmul.f32 1.0, %v194
  %v196 = vxor.u32 %v187, 2147483648
  %v197 = vmul.f32 %v196, 1.442695
  %v198 = vpow.pop %v197
  %v199 = vadd.f32 %v198, 1.0
  %v200 = vrcp.pop %v199
  %v201 = vmul.f32 1.0, %v200
  %v202 = vtanh.pop %v188
  %v203 = vxor.u32 %v189, 2147483648
  %v204 = vmul.f32 %v203, 1.442695
  %v205 = vpow.pop %v204
  %v206 = vadd.f32 %v205, 1.0
  %v207 = vrcp.pop %v206
  %v208 = vmul.f32 1.0, %v207
  %v209 = vmul.f32 %v201, %v175
  %v210 = vmul.f32 %v195, %v202
  %v211 = vadd.f32 %v209, %v210
  %v212 = vtanh.pop %v211
  %v213 = vmul.f32 %v208, %v212
  %v214 = vpack.c.bf16 %v213, %v213
  %v215 = vpack.c.bf16 %v176, %v176
  %v344 = vunpack.c.l.b16 %v25
  %v345 = vunpack.c.h.b16 %v25
  %v346 = vunpack.c.l.b16 %v26
  %v347 = vunpack.c.h.b16 %v26
  %v348 = vunpack.c.l.b16 %v27
  %v349 = vunpack.c.h.b16 %v27
  %v350 = vunpack.c.l.b16 %v28
  %v351 = vunpack.c.h.b16 %v28
  %v352 = vunpack.c.l.b16 %v29
  %v353 = vunpack.c.h.b16 %v29
  %v354 = vunpack.c.l.b16 %v30
  %v355 = vunpack.c.h.b16 %v30
  %v356 = vunpack.c.l.b16 %v31
  %v357 = vunpack.c.h.b16 %v31
  %v358 = vunpack.c.l.b16 %v32
  %v359 = vunpack.c.h.b16 %v32
  %v360 = vunpack.c.l.b16 %v33
  %v361 = vunpack.c.h.b16 %v33
  %v362 = vunpack.c.l.b16 %v34
  %v363 = vunpack.c.h.b16 %v34
  %v364 = vunpack.c.l.b16 %v35
  %v365 = vunpack.c.h.b16 %v35
  %v366 = vunpack.c.l.b16 %v36
  %v367 = vunpack.c.h.b16 %v36
  %v368 = vunpack.c.l.b16 %v37
  %v369 = vunpack.c.h.b16 %v37
  %v370 = vunpack.c.l.b16 %v38
  %v371 = vunpack.c.h.b16 %v38
  %v372 = vunpack.c.l.b16 %v39
  %v373 = vunpack.c.h.b16 %v39
  %v374 = vunpack.c.l.b16 %v40
  %v375 = vunpack.c.h.b16 %v40
  %v376 = vunpack.c.l.b16 %v41
  %v377 = vunpack.c.h.b16 %v41
  %v378 = vunpack.c.l.b16 %v42
  %v379 = vunpack.c.h.b16 %v42
  %v380 = vunpack.c.l.b16 %v43
  %v381 = vunpack.c.h.b16 %v43
  %v382 = vunpack.c.l.b16 %v44
  %v383 = vunpack.c.h.b16 %v44
  %v384 = vunpack.c.l.b16 %v45
  %v385 = vunpack.c.h.b16 %v45
  %v386 = vunpack.c.l.b16 %v46
  %v387 = vunpack.c.h.b16 %v46
  %v388 = vunpack.c.l.b16 %v47
  %v389 = vunpack.c.h.b16 %v47
  %v390 = vunpack.c.l.b16 %v48
  %v391 = vunpack.c.h.b16 %v48
  %v392 = vunpack.c.l.b16 %v49
  %v393 = vunpack.c.h.b16 %v49
  %v394 = vunpack.c.l.b16 %v50
  %v395 = vunpack.c.h.b16 %v50
  %v396 = vunpack.c.l.b16 %v51
  %v397 = vunpack.c.h.b16 %v51
  %v398 = vunpack.c.l.b16 %v52
  %v399 = vunpack.c.h.b16 %v52
  %v400 = vunpack.c.l.b16 %v53
  %v401 = vunpack.c.h.b16 %v53
  %v402 = vunpack.c.l.b16 %v54
  %v403 = vunpack.c.h.b16 %v54
  %v404 = vunpack.c.l.b16 %v55
  %v405 = vunpack.c.h.b16 %v55
  %v406 = vunpack.c.l.b16 %v56
  %v407 = vunpack.c.h.b16 %v56
  %v408 = vunpack.c.l.b16 %v57
  %v409 = vunpack.c.h.b16 %v57
  %v410 = vunpack.c.l.b16 %v58
  %v411 = vunpack.c.h.b16 %v58
  %v412 = vunpack.c.l.b16 %v59
  %v413 = vunpack.c.h.b16 %v59
  %v414 = vunpack.c.l.b16 %v60
  %v415 = vunpack.c.h.b16 %v60
  %v416 = vunpack.c.l.b16 %v61
  %v417 = vunpack.c.h.b16 %v61
  %v418 = vunpack.c.l.b16 %v62
  %v419 = vunpack.c.h.b16 %v62
  %v420 = vunpack.c.l.b16 %v63
  %v421 = vunpack.c.h.b16 %v63
  %v422 = vunpack.c.l.b16 %v64
  %v423 = vunpack.c.h.b16 %v64
  %v424 = vunpack.c.l.b16 %v65
  %v425 = vunpack.c.h.b16 %v65
  %v426 = vunpack.c.l.b16 %v66
  %v427 = vunpack.c.h.b16 %v66
  %v428 = vunpack.c.l.b16 %v67
  %v429 = vunpack.c.h.b16 %v67
  %v430 = vunpack.c.l.b16 %v68
  %v431 = vunpack.c.h.b16 %v68
  %v432 = vunpack.c.l.b16 %v69
  %v433 = vunpack.c.h.b16 %v69
  %v434 = vunpack.c.l.b16 %v70
  %v435 = vunpack.c.h.b16 %v70
  %v436 = vunpack.c.l.b16 %v71
  %v437 = vunpack.c.h.b16 %v71
  %v438 = vunpack.c.l.b16 %v72
  %v439 = vunpack.c.h.b16 %v72
  %v440 = vunpack.c.l.b16 %v73
  %v441 = vunpack.c.h.b16 %v73
  %v442 = vunpack.c.l.b16 %v74
  %v443 = vunpack.c.h.b16 %v74
  %v444 = vunpack.c.l.b16 %v75
  %v445 = vunpack.c.h.b16 %v75
  %v446 = vunpack.c.l.b16 %v76
  %v447 = vunpack.c.h.b16 %v76
  %v448 = vunpack.c.l.b16 %v77
  %v449 = vunpack.c.h.b16 %v77
  %v450 = vunpack.c.l.b16 %v78
  %v451 = vunpack.c.h.b16 %v78
  %v452 = vunpack.c.l.b16 %v79
  %v453 = vunpack.c.h.b16 %v79
  %v454 = vunpack.c.l.b16 %v80
  %v455 = vunpack.c.h.b16 %v80
  %v456 = vunpack.c.l.b16 %v81
  %v457 = vunpack.c.h.b16 %v81
  %v458 = vunpack.c.l.b16 %v82
  %v459 = vunpack.c.h.b16 %v82
  %v460 = vunpack.c.l.b16 %v83
  %v461 = vunpack.c.h.b16 %v83
  %v462 = vunpack.c.l.b16 %v84
  %v463 = vunpack.c.h.b16 %v84
  %v464 = vunpack.c.l.b16 %v85
  %v465 = vunpack.c.h.b16 %v85
  %v466 = vunpack.c.l.b16 %v86
  %v467 = vunpack.c.h.b16 %v86
  %v468 = vunpack.c.l.b16 %v87
  %v469 = vunpack.c.h.b16 %v87
  %v470 = vunpack.c.l.b16 %v88
  %v471 = vunpack.c.h.b16 %v88
  %v472 = vunpack.c.l.b16 %v89
  %v473 = vunpack.c.h.b16 %v89
  %v474 = vunpack.c.l.b16 %v90
  %v475 = vunpack.c.h.b16 %v90
  %v476 = vunpack.c.l.b16 %v91
  %v477 = vunpack.c.h.b16 %v91
  %v478 = vunpack.c.l.b16 %v92
  %v479 = vunpack.c.h.b16 %v92
  %v480 = vunpack.c.l.b16 %v93
  %v481 = vunpack.c.h.b16 %v93
  %v482 = vunpack.c.l.b16 %v94
  %v483 = vunpack.c.h.b16 %v94
  %v484 = vunpack.c.l.b16 %v95
  %v485 = vunpack.c.h.b16 %v95
  %v486 = vunpack.c.l.b16 %v96
  %v487 = vunpack.c.h.b16 %v96
  %v488 = vunpack.c.l.b16 %v97
  %v489 = vunpack.c.h.b16 %v97
  %v490 = vunpack.c.l.b16 %v98
  %v491 = vunpack.c.h.b16 %v98
  %v492 = vunpack.c.l.b16 %v99
  %v493 = vunpack.c.h.b16 %v99
  %v494 = vunpack.c.l.b16 %v100
  %v495 = vunpack.c.h.b16 %v100
  %v496 = vunpack.c.l.b16 %v101
  %v497 = vunpack.c.h.b16 %v101
  %v498 = vunpack.c.l.b16 %v102
  %v499 = vunpack.c.h.b16 %v102
  %v500 = vunpack.c.l.b16 %v103
  %v501 = vunpack.c.h.b16 %v103
  %v502 = vunpack.c.l.b16 %v104
  %v503 = vunpack.c.h.b16 %v104
  %v504 = vunpack.c.l.b16 %v105
  %v505 = vunpack.c.h.b16 %v105
  %v506 = vunpack.c.l.b16 %v106
  %v507 = vunpack.c.h.b16 %v106
  %v508 = vunpack.c.l.b16 %v107
  %v509 = vunpack.c.h.b16 %v107
  %v510 = vunpack.c.l.b16 %v108
  %v511 = vunpack.c.h.b16 %v108
  %v512 = vunpack.c.l.b16 %v109
  %v513 = vunpack.c.h.b16 %v109
  %v514 = vunpack.c.l.b16 %v110
  %v515 = vunpack.c.h.b16 %v110
  %v516 = vunpack.c.l.b16 %v111
  %v517 = vunpack.c.h.b16 %v111
  %v518 = vunpack.c.l.b16 %v112
  %v519 = vunpack.c.h.b16 %v112
  %v520 = vunpack.c.l.b16 %v113
  %v521 = vunpack.c.h.b16 %v113
  %v522 = vunpack.c.l.b16 %v114
  %v523 = vunpack.c.h.b16 %v114
  %v524 = vunpack.c.l.b16 %v115
  %v525 = vunpack.c.h.b16 %v115
  %v526 = vunpack.c.l.b16 %v116
  %v527 = vunpack.c.h.b16 %v116
  %v528 = vunpack.c.l.b16 %v117
  %v529 = vunpack.c.h.b16 %v117
  %v530 = vunpack.c.l.b16 %v118
  %v531 = vunpack.c.h.b16 %v118
  %v532 = vunpack.c.l.b16 %v119
  %v533 = vunpack.c.h.b16 %v119
  %v534 = vunpack.c.l.b16 %v120
  %v535 = vunpack.c.h.b16 %v120
  %v536 = vunpack.c.l.b16 %v121
  %v537 = vunpack.c.h.b16 %v121
  %v538 = vunpack.c.l.b16 %v122
  %v539 = vunpack.c.h.b16 %v122
  %v540 = vunpack.c.l.b16 %v123
  %v541 = vunpack.c.h.b16 %v123
  %v542 = vunpack.c.l.b16 %v124
  %v543 = vunpack.c.h.b16 %v124
  %v544 = vunpack.c.l.b16 %v125
  %v545 = vunpack.c.h.b16 %v125
  %v546 = vunpack.c.l.b16 %v126
  %v547 = vunpack.c.h.b16 %v126
  %v548 = vunpack.c.l.b16 %v127
  %v549 = vunpack.c.h.b16 %v127
  %v550 = vunpack.c.l.b16 %v128
  %v551 = vunpack.c.h.b16 %v128
  %v552 = vunpack.c.l.b16 %v129
  %v553 = vunpack.c.h.b16 %v129
  %v554 = vunpack.c.l.b16 %v130
  %v555 = vunpack.c.h.b16 %v130
  %v556 = vunpack.c.l.b16 %v131
  %v557 = vunpack.c.h.b16 %v131
  %v558 = vunpack.c.l.b16 %v132
  %v559 = vunpack.c.h.b16 %v132
  %v560 = vunpack.c.l.b16 %v133
  %v561 = vunpack.c.h.b16 %v133
  %v562 = vunpack.c.l.b16 %v134
  %v563 = vunpack.c.h.b16 %v134
  %v564 = vunpack.c.l.b16 %v135
  %v565 = vunpack.c.h.b16 %v135
  %v566 = vunpack.c.l.b16 %v136
  %v567 = vunpack.c.h.b16 %v136
  %v568 = vunpack.c.l.b16 %v137
  %v569 = vunpack.c.h.b16 %v137
  %v570 = vunpack.c.l.b16 %v138
  %v571 = vunpack.c.h.b16 %v138
  %v572 = vunpack.c.l.b16 %v139
  %v573 = vunpack.c.h.b16 %v139
  %v574 = vunpack.c.l.b16 %v140
  %v575 = vunpack.c.h.b16 %v140
  %v576 = vunpack.c.l.b16 %v141
  %v577 = vunpack.c.h.b16 %v141
  %v578 = vunpack.c.l.b16 %v142
  %v579 = vunpack.c.h.b16 %v142
  %v580 = vunpack.c.l.b16 %v143
  %v581 = vunpack.c.h.b16 %v143
  %v582 = vunpack.c.l.b16 %v144
  %v583 = vunpack.c.h.b16 %v144
  %v584 = vunpack.c.l.b16 %v145
  %v585 = vunpack.c.h.b16 %v145
  %v586 = vunpack.c.l.b16 %v146
  %v587 = vunpack.c.h.b16 %v146
  %v588 = vunpack.c.l.b16 %v147
  %v589 = vunpack.c.h.b16 %v147
  %v590 = vunpack.c.l.b16 %v148
  %v591 = vunpack.c.h.b16 %v148
  %v592 = vunpack.c.l.b16 %v149
  %v593 = vunpack.c.h.b16 %v149
  %v594 = vunpack.c.l.b16 %v150
  %v595 = vunpack.c.h.b16 %v150
  %v596 = vunpack.c.l.b16 %v151
  %v597 = vunpack.c.h.b16 %v151
  %v598 = vunpack.c.l.b16 %v152
  %v599 = vunpack.c.h.b16 %v152
  %v600 = vpack.c.b16 %v352, %v344
  %v601 = vpack.c.b16 %v353, %v345
  %v602 = vpack.c.b16 %v354, %v346
  %v603 = vpack.c.b16 %v355, %v347
  %v604 = vpack.c.b16 %v356, %v348
  %v605 = vpack.c.b16 %v357, %v349
  %v606 = vpack.c.b16 %v358, %v350
  %v607 = vpack.c.b16 %v359, %v351
  %v608 = vpack.c.b16 %v368, %v360
  %v609 = vpack.c.b16 %v369, %v361
  %v610 = vpack.c.b16 %v370, %v362
  %v611 = vpack.c.b16 %v371, %v363
  %v612 = vpack.c.b16 %v372, %v364
  %v613 = vpack.c.b16 %v373, %v365
  %v614 = vpack.c.b16 %v374, %v366
  %v615 = vpack.c.b16 %v375, %v367
  %v616 = vpack.c.b16 %v384, %v376
  %v617 = vpack.c.b16 %v385, %v377
  %v618 = vpack.c.b16 %v386, %v378
  %v619 = vpack.c.b16 %v387, %v379
  %v620 = vpack.c.b16 %v388, %v380
  %v621 = vpack.c.b16 %v389, %v381
  %v622 = vpack.c.b16 %v390, %v382
  %v623 = vpack.c.b16 %v391, %v383
  %v624 = vpack.c.b16 %v400, %v392
  %v625 = vpack.c.b16 %v401, %v393
  %v626 = vpack.c.b16 %v402, %v394
  %v627 = vpack.c.b16 %v403, %v395
  %v628 = vpack.c.b16 %v404, %v396
  %v629 = vpack.c.b16 %v405, %v397
  %v630 = vpack.c.b16 %v406, %v398
  %v631 = vpack.c.b16 %v407, %v399
  %v632 = vpack.c.b16 %v416, %v408
  %v633 = vpack.c.b16 %v417, %v409
  %v634 = vpack.c.b16 %v418, %v410
  %v635 = vpack.c.b16 %v419, %v411
  %v636 = vpack.c.b16 %v420, %v412
  %v637 = vpack.c.b16 %v421, %v413
  %v638 = vpack.c.b16 %v422, %v414
  %v639 = vpack.c.b16 %v423, %v415
  %v640 = vpack.c.b16 %v432, %v424
  %v641 = vpack.c.b16 %v433, %v425
  %v642 = vpack.c.b16 %v434, %v426
  %v643 = vpack.c.b16 %v435, %v427
  %v644 = vpack.c.b16 %v436, %v428
  %v645 = vpack.c.b16 %v437, %v429
  %v646 = vpack.c.b16 %v438, %v430
  %v647 = vpack.c.b16 %v439, %v431
  %v648 = vpack.c.b16 %v448, %v440
  %v649 = vpack.c.b16 %v449, %v441
  %v650 = vpack.c.b16 %v450, %v442
  %v651 = vpack.c.b16 %v451, %v443
  %v652 = vpack.c.b16 %v452, %v444
  %v653 = vpack.c.b16 %v453, %v445
  %v654 = vpack.c.b16 %v454, %v446
  %v655 = vpack.c.b16 %v455, %v447
  %v656 = vpack.c.b16 %v464, %v456
  %v657 = vpack.c.b16 %v465, %v457
  %v658 = vpack.c.b16 %v466, %v458
  %v659 = vpack.c.b16 %v467, %v459
  %v660 = vpack.c.b16 %v468, %v460
  %v661 = vpack.c.b16 %v469, %v461
  %v662 = vpack.c.b16 %v470, %v462
  %v663 = vpack.c.b16 %v471, %v463
  %v664 = vpack.c.b16 %v480, %v472
  %v665 = vpack.c.b16 %v481, %v473
  %v666 = vpack.c.b16 %v482, %v474
  %v667 = vpack.c.b16 %v483, %v475
  %v668 = vpack.c.b16 %v484, %v476
  %v669 = vpack.c.b16 %v485, %v477
  %v670 = vpack.c.b16 %v486, %v478
  %v671 = vpack.c.b16 %v487, %v479
  %v672 = vpack.c.b16 %v496, %v488
  %v673 = vpack.c.b16 %v497, %v489
  %v674 = vpack.c.b16 %v498, %v490
  %v675 = vpack.c.b16 %v499, %v491
  %v676 = vpack.c.b16 %v500, %v492
  %v677 = vpack.c.b16 %v501, %v493
  %v678 = vpack.c.b16 %v502, %v494
  %v679 = vpack.c.b16 %v503, %v495
  %v680 = vpack.c.b16 %v512, %v504
  %v681 = vpack.c.b16 %v513, %v505
  %v682 = vpack.c.b16 %v514, %v506
  %v683 = vpack.c.b16 %v515, %v507
  %v684 = vpack.c.b16 %v516, %v508
  %v685 = vpack.c.b16 %v517, %v509
  %v686 = vpack.c.b16 %v518, %v510
  %v687 = vpack.c.b16 %v519, %v511
  %v688 = vpack.c.b16 %v528, %v520
  %v689 = vpack.c.b16 %v529, %v521
  %v690 = vpack.c.b16 %v530, %v522
  %v691 = vpack.c.b16 %v531, %v523
  %v692 = vpack.c.b16 %v532, %v524
  %v693 = vpack.c.b16 %v533, %v525
  %v694 = vpack.c.b16 %v534, %v526
  %v695 = vpack.c.b16 %v535, %v527
  %v696 = vpack.c.b16 %v544, %v536
  %v697 = vpack.c.b16 %v545, %v537
  %v698 = vpack.c.b16 %v546, %v538
  %v699 = vpack.c.b16 %v547, %v539
  %v700 = vpack.c.b16 %v548, %v540
  %v701 = vpack.c.b16 %v549, %v541
  %v702 = vpack.c.b16 %v550, %v542
  %v703 = vpack.c.b16 %v551, %v543
  %v704 = vpack.c.b16 %v560, %v552
  %v705 = vpack.c.b16 %v561, %v553
  %v706 = vpack.c.b16 %v562, %v554
  %v707 = vpack.c.b16 %v563, %v555
  %v708 = vpack.c.b16 %v564, %v556
  %v709 = vpack.c.b16 %v565, %v557
  %v710 = vpack.c.b16 %v566, %v558
  %v711 = vpack.c.b16 %v567, %v559
  %v712 = vpack.c.b16 %v576, %v568
  %v713 = vpack.c.b16 %v577, %v569
  %v714 = vpack.c.b16 %v578, %v570
  %v715 = vpack.c.b16 %v579, %v571
  %v716 = vpack.c.b16 %v580, %v572
  %v717 = vpack.c.b16 %v581, %v573
  %v718 = vpack.c.b16 %v582, %v574
  %v719 = vpack.c.b16 %v583, %v575
  %v720 = vpack.c.b16 %v592, %v584
  %v721 = vpack.c.b16 %v593, %v585
  %v722 = vpack.c.b16 %v594, %v586
  %v723 = vpack.c.b16 %v595, %v587
  %v724 = vpack.c.b16 %v596, %v588
  %v725 = vpack.c.b16 %v597, %v589
  %v726 = vpack.c.b16 %v598, %v590
  %v727 = vpack.c.b16 %v599, %v591
  %856 = vmatprep.subr.bf16.mxu0 %v657
  %857 = vmatpush1.bf16.msra.mxu0 %v656
  %858 = vmatprep.subr.bf16.mxu0 %v649
  %859 = vmatpush1.bf16.msra.mxu0 %v648
  %860 = vmatprep.subr.bf16.mxu0 %v641
  %861 = vmatpush1.bf16.msra.mxu0 %v640
  %862 = vmatprep.subr.bf16.mxu0 %v633
  %863 = vmatpush1.bf16.msra.mxu0 %v632
  %864 = vmatprep.subr.bf16.mxu0 %v625
  %865 = vmatpush1.bf16.msra.mxu0 %v624
  %866 = vmatprep.subr.bf16.mxu0 %v617
  %867 = vmatpush1.bf16.msra.mxu0 %v616
  %868 = vmatprep.subr.bf16.mxu0 %v609
  %869 = vmatpush1.bf16.msra.mxu0 %v608
  %870 = vmatprep.subr.bf16.mxu0 %v601
  %871 = vmatpush1.bf16.msra.mxu0 %v600
  %872 = vmatprep.subr.bf16.mxu0 %v721
  %873 = vmatpush2.bf16.msra.mxu0 %v720
  %874 = vmatprep.subr.bf16.mxu0 %v713
  %875 = vmatpush2.bf16.msra.mxu0 %v712
  %876 = vmatprep.subr.bf16.mxu0 %v705
  %877 = vmatpush2.bf16.msra.mxu0 %v704
  %878 = vmatprep.subr.bf16.mxu0 %v697
  %879 = vmatpush2.bf16.msra.mxu0 %v696
  %880 = vmatprep.subr.bf16.mxu0 %v689
  %881 = vmatpush2.bf16.msra.mxu0 %v688
  %882 = vmatprep.subr.bf16.mxu0 %v681
  %883 = vmatpush2.bf16.msra.mxu0 %v680
  %884 = vmatprep.subr.bf16.mxu0 %v673
  %885 = vmatpush2.bf16.msra.mxu0 %v672
  %886 = vmatprep.subr.bf16.mxu0 %v665
  %887 = vmatpush2.bf16.msra.mxu0 %v664
  %888 = vmatprep.mubr.bf16.mxu0 %v215
  %889 = vmatmul.mubr.bf16.gmra.mxu0 %v214
  %v890 = vpop.f32.mrf.mxu0
  %v891 = vadd.f32 0.0, %v890
  %v892 = vpop.f32.mrf.mxu0
  %v893 = vadd.f32 0.0, %v892
  %v894 = vpop.f32.mrf.mxu0
  %v895 = vpop.f32.mrf.mxu0
  %896 = vdwg.mxu0
  %897 = vmatprep.subr.bf16.mxu0 %v659
  %898 = vmatpush1.bf16.msra.mxu0 %v658
  %899 = vmatprep.subr.bf16.mxu0 %v651
  %900 = vmatpush1.bf16.msra.mxu0 %v650
  %901 = vmatprep.subr.bf16.mxu0 %v643
  %902 = vmatpush1.bf16.msra.mxu0 %v642
  %903 = vmatprep.subr.bf16.mxu0 %v635
  %904 = vmatpush1.bf16.msra.mxu0 %v634
  %905 = vmatprep.subr.bf16.mxu0 %v627
  %906 = vmatpush1.bf16.msra.mxu0 %v626
  %907 = vmatprep.subr.bf16.mxu0 %v619
  %908 = vmatpush1.bf16.msra.mxu0 %v618
  %909 = vmatprep.subr.bf16.mxu0 %v611
  %910 = vmatpush1.bf16.msra.mxu0 %v610
  %911 = vmatprep.subr.bf16.mxu0 %v603
  %912 = vmatpush1.bf16.msra.mxu0 %v602
  %913 = vmatprep.subr.bf16.mxu0 %v723
  %914 = vmatpush2.bf16.msra.mxu0 %v722
  %915 = vmatprep.subr.bf16.mxu0 %v715
  %916 = vmatpush2.bf16.msra.mxu0 %v714
  %917 = vmatprep.subr.bf16.mxu0 %v707
  %918 = vmatpush2.bf16.msra.mxu0 %v706
  %919 = vmatprep.subr.bf16.mxu0 %v699
  %920 = vmatpush2.bf16.msra.mxu0 %v698
  %921 = vmatprep.subr.bf16.mxu0 %v691
  %922 = vmatpush2.bf16.msra.mxu0 %v690
  %923 = vmatprep.subr.bf16.mxu0 %v683
  %924 = vmatpush2.bf16.msra.mxu0 %v682
  %925 = vmatprep.subr.bf16.mxu0 %v675
  %926 = vmatpush2.bf16.msra.mxu0 %v674
  %927 = vmatprep.subr.bf16.mxu0 %v667
  %928 = vmatpush2.bf16.msra.mxu0 %v666
  %929 = vmatprep.mubr.bf16.mxu0 %v215
  %930 = vmatmul.mubr.bf16.gmra.mxu0 %v214
  %v931 = vpop.f32.mrf.mxu0
  %v932 = vadd.f32 0.0, %v931
  %v933 = vpop.f32.mrf.mxu0
  %v934 = vadd.f32 0.0, %v933
  %v935 = vpop.f32.mrf.mxu0
  %v936 = vpop.f32.mrf.mxu0
  %937 = vdwg.mxu0
  %938 = vmatprep.subr.bf16.mxu0 %v661
  %939 = vmatpush1.bf16.msra.mxu0 %v660
  %940 = vmatprep.subr.bf16.mxu0 %v653
  %941 = vmatpush1.bf16.msra.mxu0 %v652
  %942 = vmatprep.subr.bf16.mxu0 %v645
  %943 = vmatpush1.bf16.msra.mxu0 %v644
  %944 = vmatprep.subr.bf16.mxu0 %v637
  %945 = vmatpush1.bf16.msra.mxu0 %v636
  %946 = vmatprep.subr.bf16.mxu0 %v629
  %947 = vmatpush1.bf16.msra.mxu0 %v628
  %948 = vmatprep.subr.bf16.mxu0 %v621
  %949 = vmatpush1.bf16.msra.mxu0 %v620
  %950 = vmatprep.subr.bf16.mxu0 %v613
  %951 = vmatpush1.bf16.msra.mxu0 %v612
  %952 = vmatprep.subr.bf16.mxu0 %v605
  %953 = vmatpush1.bf16.msra.mxu0 %v604
  %954 = vmatprep.subr.bf16.mxu0 %v725
  %955 = vmatpush2.bf16.msra.mxu0 %v724
  %956 = vmatprep.subr.bf16.mxu0 %v717
  %957 = vmatpush2.bf16.msra.mxu0 %v716
  %958 = vmatprep.subr.bf16.mxu0 %v709
  %959 = vmatpush2.bf16.msra.mxu0 %v708
  %960 = vmatprep.subr.bf16.mxu0 %v701
  %961 = vmatpush2.bf16.msra.mxu0 %v700
  %962 = vmatprep.subr.bf16.mxu0 %v693
  %963 = vmatpush2.bf16.msra.mxu0 %v692
  %964 = vmatprep.subr.bf16.mxu0 %v685
  %965 = vmatpush2.bf16.msra.mxu0 %v684
  %966 = vmatprep.subr.bf16.mxu0 %v677
  %967 = vmatpush2.bf16.msra.mxu0 %v676
  %968 = vmatprep.subr.bf16.mxu0 %v669
  %969 = vmatpush2.bf16.msra.mxu0 %v668
  %970 = vmatprep.mubr.bf16.mxu0 %v215
  %971 = vmatmul.mubr.bf16.gmra.mxu0 %v214
  %v972 = vpop.f32.mrf.mxu0
  %v973 = vadd.f32 0.0, %v972
  %v974 = vpop.f32.mrf.mxu0
  %v975 = vadd.f32 0.0, %v974
  %v976 = vpop.f32.mrf.mxu0
  %v977 = vpop.f32.mrf.mxu0
  %978 = vdwg.mxu0
  %979 = vmatprep.subr.bf16.mxu0 %v663
  %980 = vmatpush1.bf16.msra.mxu0 %v662
  %981 = vmatprep.subr.bf16.mxu0 %v655
  %982 = vmatpush1.bf16.msra.mxu0 %v654
  %983 = vmatprep.subr.bf16.mxu0 %v647
  %984 = vmatpush1.bf16.msra.mxu0 %v646
  %985 = vmatprep.subr.bf16.mxu0 %v639
  %986 = vmatpush1.bf16.msra.mxu0 %v638
  %987 = vmatprep.subr.bf16.mxu0 %v631
  %988 = vmatpush1.bf16.msra.mxu0 %v630
  %989 = vmatprep.subr.bf16.mxu0 %v623
  %990 = vmatpush1.bf16.msra.mxu0 %v622
  %991 = vmatprep.subr.bf16.mxu0 %v615
  %992 = vmatpush1.bf16.msra.mxu0 %v614
  %993 = vmatprep.subr.bf16.mxu0 %v607
  %994 = vmatpush1.bf16.msra.mxu0 %v606
  %995 = vmatprep.subr.bf16.mxu0 %v727
  %996 = vmatpush2.bf16.msra.mxu0 %v726
  %997 = vmatprep.subr.bf16.mxu0 %v719
  %998 = vmatpush2.bf16.msra.mxu0 %v718
  %999 = vmatprep.subr.bf16.mxu0 %v711
  %1000 = vmatpush2.bf16.msra.mxu0 %v710
  %1001 = vmatprep.subr.bf16.mxu0 %v703
  %1002 = vmatpush2.bf16.msra.mxu0 %v702
  %1003 = vmatprep.subr.bf16.mxu0 %v695
  %1004 = vmatpush2.bf16.msra.mxu0 %v694
  %1005 = vmatprep.subr.bf16.mxu0 %v687
  %1006 = vmatpush2.bf16.msra.mxu0 %v686
  %1007 = vmatprep.subr.bf16.mxu0 %v679
  %1008 = vmatpush2.bf16.msra.mxu0 %v678
  %1009 = vmatprep.subr.bf16.mxu0 %v671
  %1010 = vmatpush2.bf16.msra.mxu0 %v670
  %1011 = vmatprep.mubr.bf16.mxu0 %v215
  %1012 = vmatmul.mubr.bf16.gmra.mxu0 %v214
  %v1013 = vpop.f32.mrf.mxu0
  %v1014 = vadd.f32 0.0, %v1013
  %v1015 = vpop.f32.mrf.mxu0
  %v1016 = vadd.f32 0.0, %v1015
  %v1017 = vpop.f32.mrf.mxu0
  %v1018 = vpop.f32.mrf.mxu0
  %1019 = vdwg.mxu0
  %v1020 = vadd.f32 %v891, %v158
  %v1021 = vadd.f32 %v893, %v162
  %v1022 = vadd.f32 %v932, %v166
  %v1023 = vadd.f32 %v934, %v170
  %v1024 = vxor.u32 %v1020, 2147483648
  %v1025 = vmul.f32 %v1024, 1.442695
  %v1026 = vpow.pop %v1025
  %v1027 = vadd.f32 %v1026, 1.0
  %v1028 = vrcp.pop %v1027
  %v1029 = vmul.f32 1.0, %v1028
  %v1030 = vxor.u32 %v1021, 2147483648
  %v1031 = vmul.f32 %v1030, 1.442695
  %v1032 = vpow.pop %v1031
  %v1033 = vadd.f32 %v1032, 1.0
  %v1034 = vrcp.pop %v1033
  %v1035 = vmul.f32 1.0, %v1034
  %v1036 = vtanh.pop %v1022
  %v1037 = vxor.u32 %v1023, 2147483648
  %v1038 = vmul.f32 %v1037, 1.442695
  %v1039 = vpow.pop %v1038
  %v1040 = vadd.f32 %v1039, 1.0
  %v1041 = vrcp.pop %v1040
  %v1042 = vmul.f32 1.0, %v1041
  %v1043 = vmul.f32 %v1035, %v177
  %v1044 = vmul.f32 %v1029, %v1036
  %v1045 = vadd.f32 %v1043, %v1044
  %v1046 = vtanh.pop %v1045
  %v1047 = vmul.f32 %v1042, %v1046
  %1048 = vst [vmem:[%s3] sm:$0xff] %v1047
  %s1049 = scalar_lea.vmem %s0, 32
  %v1050 = vld [vmem:[%s1049] sm:$0xff]
  %v1051 = vld [vmem:[%s1049 + $0x8] sm:$0xff]
  %v1052 = vld [vmem:[%s1049 + $0x10] sm:$0xff]
  %v1053 = vld [vmem:[%s1049 + $0x18] sm:$0xff]
  %v1054 = vadd.f32 %v1050, %v973
  %v1055 = vadd.f32 %v1051, %v975
  %v1056 = vadd.f32 %v1052, %v1014
  %v1057 = vadd.f32 %v1053, %v1016
  %v1058 = vxor.u32 %v1054, 2147483648
  %v1059 = vmul.f32 %v1058, 1.442695
  %v1060 = vpow.pop %v1059
  %v1061 = vadd.f32 %v1060, 1.0
  %v1062 = vrcp.pop %v1061
  %v1063 = vmul.f32 1.0, %v1062
  %v1064 = vxor.u32 %v1055, 2147483648
  %v1065 = vmul.f32 %v1064, 1.442695
  %v1066 = vpow.pop %v1065
  %v1067 = vadd.f32 %v1066, 1.0
  %v1068 = vrcp.pop %v1067
  %v1069 = vmul.f32 1.0, %v1068
  %v1070 = vtanh.pop %v1056
  %v1071 = vxor.u32 %v1057, 2147483648
  %v1072 = vmul.f32 %v1071, 1.442695
  %v1073 = vpow.pop %v1072
  %v1074 = vadd.f32 %v1073, 1.0
  %v1075 = vrcp.pop %v1074
  %v1076 = vmul.f32 1.0, %v1075
  %v1077 = vmul.f32 %v1069, %v211
  %v1078 = vmul.f32 %v1063, %v1070
  %v1079 = vadd.f32 %v1077, %v1078
  %v1080 = vtanh.pop %v1079
  %v1081 = vmul.f32 %v1076, %v1080
  %v1082 = vpack.c.bf16 %v1081, %v1081
  %v1083 = vpack.c.bf16 %v1047, %v1047
  %1084 = vmatprep.subr.bf16.mxu0 %v657
  %1085 = vmatpush1.bf16.msra.mxu0 %v656
  %1086 = vmatprep.subr.bf16.mxu0 %v649
  %1087 = vmatpush1.bf16.msra.mxu0 %v648
  %1088 = vmatprep.subr.bf16.mxu0 %v641
  %1089 = vmatpush1.bf16.msra.mxu0 %v640
  %1090 = vmatprep.subr.bf16.mxu0 %v633
  %1091 = vmatpush1.bf16.msra.mxu0 %v632
  %1092 = vmatprep.subr.bf16.mxu0 %v625
  %1093 = vmatpush1.bf16.msra.mxu0 %v624
  %1094 = vmatprep.subr.bf16.mxu0 %v617
  %1095 = vmatpush1.bf16.msra.mxu0 %v616
  %1096 = vmatprep.subr.bf16.mxu0 %v609
  %1097 = vmatpush1.bf16.msra.mxu0 %v608
  %1098 = vmatprep.subr.bf16.mxu0 %v601
  %1099 = vmatpush1.bf16.msra.mxu0 %v600
  %1100 = vmatprep.subr.bf16.mxu0 %v721
  %1101 = vmatpush2.bf16.msra.mxu0 %v720
  %1102 = vmatprep.subr.bf16.mxu0 %v713
  %1103 = vmatpush2.bf16.msra.mxu0 %v712
  %1104 = vmatprep.subr.bf16.mxu0 %v705
  %1105 = vmatpush2.bf16.msra.mxu0 %v704
  %1106 = vmatprep.subr.bf16.mxu0 %v697
  %1107 = vmatpush2.bf16.msra.mxu0 %v696
  %1108 = vmatprep.subr.bf16.mxu0 %v689
  %1109 = vmatpush2.bf16.msra.mxu0 %v688
  %1110 = vmatprep.subr.bf16.mxu0 %v681
  %1111 = vmatpush2.bf16.msra.mxu0 %v680
  %1112 = vmatprep.subr.bf16.mxu0 %v673
  %1113 = vmatpush2.bf16.msra.mxu0 %v672
  %1114 = vmatprep.subr.bf16.mxu0 %v665
  %1115 = vmatpush2.bf16.msra.mxu0 %v664
  %1116 = vmatprep.mubr.bf16.mxu0 %v1083
  %1117 = vmatmul.mubr.bf16.gmra.mxu0 %v1082
  %v1118 = vpop.f32.mrf.mxu0
  %v1119 = vadd.f32 0.0, %v1118
  %v1120 = vpop.f32.mrf.mxu0
  %v1121 = vadd.f32 0.0, %v1120
  %v1122 = vpop.f32.mrf.mxu0
  %v1123 = vpop.f32.mrf.mxu0
  %1124 = vdwg.mxu0
  %1125 = vmatprep.subr.bf16.mxu0 %v659
  %1126 = vmatpush1.bf16.msra.mxu0 %v658
  %1127 = vmatprep.subr.bf16.mxu0 %v651
  %1128 = vmatpush1.bf16.msra.mxu0 %v650
  %1129 = vmatprep.subr.bf16.mxu0 %v643
  %1130 = vmatpush1.bf16.msra.mxu0 %v642
  %1131 = vmatprep.subr.bf16.mxu0 %v635
  %1132 = vmatpush1.bf16.msra.mxu0 %v634
  %1133 = vmatprep.subr.bf16.mxu0 %v627
  %1134 = vmatpush1.bf16.msra.mxu0 %v626
  %1135 = vmatprep.subr.bf16.mxu0 %v619
  %1136 = vmatpush1.bf16.msra.mxu0 %v618
  %1137 = vmatprep.subr.bf16.mxu0 %v611
  %1138 = vmatpush1.bf16.msra.mxu0 %v610
  %1139 = vmatprep.subr.bf16.mxu0 %v603
  %1140 = vmatpush1.bf16.msra.mxu0 %v602
  %1141 = vmatprep.subr.bf16.mxu0 %v723
  %1142 = vmatpush2.bf16.msra.mxu0 %v722
  %1143 = vmatprep.subr.bf16.mxu0 %v715
  %1144 = vmatpush2.bf16.msra.mxu0 %v714
  %1145 = vmatprep.subr.bf16.mxu0 %v707
  %1146 = vmatpush2.bf16.msra.mxu0 %v706
  %1147 = vmatprep.subr.bf16.mxu0 %v699
  %1148 = vmatpush2.bf16.msra.mxu0 %v698
  %1149 = vmatprep.subr.bf16.mxu0 %v691
  %1150 = vmatpush2.bf16.msra.mxu0 %v690
  %1151 = vmatprep.subr.bf16.mxu0 %v683
  %1152 = vmatpush2.bf16.msra.mxu0 %v682
  %1153 = vmatprep.subr.bf16.mxu0 %v675
  %1154 = vmatpush2.bf16.msra.mxu0 %v674
  %1155 = vmatprep.subr.bf16.mxu0 %v667
  %1156 = vmatpush2.bf16.msra.mxu0 %v666
  %1157 = vmatprep.mubr.bf16.mxu0 %v1083
  %1158 = vmatmul.mubr.bf16.gmra.mxu0 %v1082
  %v1159 = vpop.f32.mrf.mxu0
  %v1160 = vadd.f32 0.0, %v1159
  %v1161 = vpop.f32.mrf.mxu0
  %v1162 = vadd.f32 0.0, %v1161
  %v1163 = vpop.f32.mrf.mxu0
  %v1164 = vpop.f32.mrf.mxu0
  %1165 = vdwg.mxu0
  %1166 = vmatprep.subr.bf16.mxu0 %v661
  %1167 = vmatpush1.bf16.msra.mxu0 %v660
  %1168 = vmatprep.subr.bf16.mxu0 %v653
  %1169 = vmatpush1.bf16.msra.mxu0 %v652
  %1170 = vmatprep.subr.bf16.mxu0 %v645
  %1171 = vmatpush1.bf16.msra.mxu0 %v644
  %1172 = vmatprep.subr.bf16.mxu0 %v637
  %1173 = vmatpush1.bf16.msra.mxu0 %v636
  %1174 = vmatprep.subr.bf16.mxu0 %v629
  %1175 = vmatpush1.bf16.msra.mxu0 %v628
  %1176 = vmatprep.subr.bf16.mxu0 %v621
  %1177 = vmatpush1.bf16.msra.mxu0 %v620
  %1178 = vmatprep.subr.bf16.mxu0 %v613
  %1179 = vmatpush1.bf16.msra.mxu0 %v612
  %1180 = vmatprep.subr.bf16.mxu0 %v605
  %1181 = vmatpush1.bf16.msra.mxu0 %v604
  %1182 = vmatprep.subr.bf16.mxu0 %v725
  %1183 = vmatpush2.bf16.msra.mxu0 %v724
  %1184 = vmatprep.subr.bf16.mxu0 %v717
  %1185 = vmatpush2.bf16.msra.mxu0 %v716
  %1186 = vmatprep.subr.bf16.mxu0 %v709
  %1187 = vmatpush2.bf16.msra.mxu0 %v708
  %1188 = vmatprep.subr.bf16.mxu0 %v701
  %1189 = vmatpush2.bf16.msra.mxu0 %v700
  %1190 = vmatprep.subr.bf16.mxu0 %v693
  %1191 = vmatpush2.bf16.msra.mxu0 %v692
  %1192 = vmatprep.subr.bf16.mxu0 %v685
  %1193 = vmatpush2.bf16.msra.mxu0 %v684
  %1194 = vmatprep.subr.bf16.mxu0 %v677
  %1195 = vmatpush2.bf16.msra.mxu0 %v676
  %1196 = vmatprep.subr.bf16.mxu0 %v669
  %1197 = vmatpush2.bf16.msra.mxu0 %v668
  %1198 = vmatprep.mubr.bf16.mxu0 %v1083
  %1199 = vmatmul.mubr.bf16.gmra.mxu0 %v1082
  %v1200 = vpop.f32.mrf.mxu0
  %v1201 = vadd.f32 0.0, %v1200
  %v1202 = vpop.f32.mrf.mxu0
  %v1203 = vadd.f32 0.0, %v1202
  %v1204 = vpop.f32.mrf.mxu0
  %v1205 = vpop.f32.mrf.mxu0
  %1206 = vdwg.mxu0
  %1207 = vmatprep.subr.bf16.mxu0 %v663
  %1208 = vmatpush1.bf16.msra.mxu0 %v662
  %1209 = vmatprep.subr.bf16.mxu0 %v655
  %1210 = vmatpush1.bf16.msra.mxu0 %v654
  %1211 = vmatprep.subr.bf16.mxu0 %v647
  %1212 = vmatpush1.bf16.msra.mxu0 %v646
  %1213 = vmatprep.subr.bf16.mxu0 %v639
  %1214 = vmatpush1.bf16.msra.mxu0 %v638
  %1215 = vmatprep.subr.bf16.mxu0 %v631
  %1216 = vmatpush1.bf16.msra.mxu0 %v630
  %1217 = vmatprep.subr.bf16.mxu0 %v623
  %1218 = vmatpush1.bf16.msra.mxu0 %v622
  %1219 = vmatprep.subr.bf16.mxu0 %v615
  %1220 = vmatpush1.bf16.msra.mxu0 %v614
  %1221 = vmatprep.subr.bf16.mxu0 %v607
  %1222 = vmatpush1.bf16.msra.mxu0 %v606
  %1223 = vmatprep.subr.bf16.mxu0 %v727
  %1224 = vmatpush2.bf16.msra.mxu0 %v726
  %1225 = vmatprep.subr.bf16.mxu0 %v719
  %1226 = vmatpush2.bf16.msra.mxu0 %v718
  %1227 = vmatprep.subr.bf16.mxu0 %v711
  %1228 = vmatpush2.bf16.msra.mxu0 %v710
  %1229 = vmatprep.subr.bf16.mxu0 %v703
  %1230 = vmatpush2.bf16.msra.mxu0 %v702
  %1231 = vmatprep.subr.bf16.mxu0 %v695
  %1232 = vmatpush2.bf16.msra.mxu0 %v694
  %1233 = vmatprep.subr.bf16.mxu0 %v687
  %1234 = vmatpush2.bf16.msra.mxu0 %v686
  %1235 = vmatprep.subr.bf16.mxu0 %v679
  %1236 = vmatpush2.bf16.msra.mxu0 %v678
  %1237 = vmatprep.subr.bf16.mxu0 %v671
  %1238 = vmatpush2.bf16.msra.mxu0 %v670
  %1239 = vmatprep.mubr.bf16.mxu0 %v1083
  %1240 = vmatmul.mubr.bf16.gmra.mxu0 %v1082
  %v1241 = vpop.f32.mrf.mxu0
  %v1242 = vadd.f32 0.0, %v1241
  %v1243 = vpop.f32.mrf.mxu0
  %v1244 = vadd.f32 0.0, %v1243
  %v1245 = vpop.f32.mrf.mxu0
  %v1246 = vpop.f32.mrf.mxu0
  %1247 = vdwg.mxu0
  %v1248 = vadd.f32 %v1119, %v158
  %v1249 = vadd.f32 %v1121, %v162
  %v1250 = vadd.f32 %v1160, %v166
  %v1251 = vadd.f32 %v1162, %v170
  %v1252 = vxor.u32 %v1248, 2147483648
  %v1253 = vmul.f32 %v1252, 1.442695
  %v1254 = vpow.pop %v1253
  %v1255 = vadd.f32 %v1254, 1.0
  %v1256 = vrcp.pop %v1255
  %v1257 = vmul.f32 1.0, %v1256
  %v1258 = vxor.u32 %v1249, 2147483648
  %v1259 = vmul.f32 %v1258, 1.442695
  %v1260 = vpow.pop %v1259
  %v1261 = vadd.f32 %v1260, 1.0
  %v1262 = vrcp.pop %v1261
  %v1263 = vmul.f32 1.0, %v1262
  %v1264 = vtanh.pop %v1250
  %v1265 = vxor.u32 %v1251, 2147483648
  %v1266 = vmul.f32 %v1265, 1.442695
  %v1267 = vpow.pop %v1266
  %v1268 = vadd.f32 %v1267, 1.0
  %v1269 = vrcp.pop %v1268
  %v1270 = vmul.f32 1.0, %v1269
  %v1271 = vmul.f32 %v1263, %v1045
  %v1272 = vmul.f32 %v1257, %v1264
  %v1273 = vadd.f32 %v1271, %v1272
  %v1274 = vtanh.pop %v1273
  %v1275 = vmul.f32 %v1270, %v1274
  %s1276 = scalar_lea.vmem %s3, 8
  %1277 = vst [vmem:[%s1276] sm:$0xff] %v1275
  %s1278 = scalar_lea.vmem %s0, 64
  %v1279 = vld [vmem:[%s1278] sm:$0xff]
  %v1280 = vld [vmem:[%s1278 + $0x8] sm:$0xff]
  %v1281 = vld [vmem:[%s1278 + $0x10] sm:$0xff]
  %v1282 = vld [vmem:[%s1278 + $0x18] sm:$0xff]
  %v1283 = vadd.f32 %v1279, %v1201
  %v1284 = vadd.f32 %v1280, %v1203
  %v1285 = vadd.f32 %v1281, %v1242
  %v1286 = vadd.f32 %v1282, %v1244
  %v1287 = vxor.u32 %v1283, 2147483648
  %v1288 = vmul.f32 %v1287, 1.442695
  %v1289 = vpow.pop %v1288
  %v1290 = vadd.f32 %v1289, 1.0
  %v1291 = vrcp.pop %v1290
  %v1292 = vmul.f32 1.0, %v1291
  %v1293 = vxor.u32 %v1284, 2147483648
  %v1294 = vmul.f32 %v1293, 1.442695
  %v1295 = vpow.pop %v1294
  %v1296 = vadd.f32 %v1295, 1.0
  %v1297 = vrcp.pop %v1296
  %v1298 = vmul.f32 1.0, %v1297
  %v1299 = vtanh.pop %v1285
  %v1300 = vxor.u32 %v1286, 2147483648
  %v1301 = vmul.f32 %v1300, 1.442695
  %v1302 = vpow.pop %v1301
  %v1303 = vadd.f32 %v1302, 1.0
  %v1304 = vrcp.pop %v1303
  %v1305 = vmul.f32 1.0, %v1304
  %v1306 = vmul.f32 %v1298, %v1079
  %v1307 = vmul.f32 %v1292, %v1299
  %v1308 = vadd.f32 %v1306, %v1307
  %v1309 = vtanh.pop %v1308
  %v1310 = vmul.f32 %v1305, %v1309
  %v1311 = vpack.c.bf16 %v1310, %v1310
  %v1312 = vpack.c.bf16 %v1275, %v1275
  %1313 = vmatprep.subr.bf16.mxu0 %v657
  %1314 = vmatpush1.bf16.msra.mxu0 %v656
  %1315 = vmatprep.subr.bf16.mxu0 %v649
  %1316 = vmatpush1.bf16.msra.mxu0 %v648
  %1317 = vmatprep.subr.bf16.mxu0 %v641
  %1318 = vmatpush1.bf16.msra.mxu0 %v640
  %1319 = vmatprep.subr.bf16.mxu0 %v633
  %1320 = vmatpush1.bf16.msra.mxu0 %v632
  %1321 = vmatprep.subr.bf16.mxu0 %v625
  %1322 = vmatpush1.bf16.msra.mxu0 %v624
  %1323 = vmatprep.subr.bf16.mxu0 %v617
  %1324 = vmatpush1.bf16.msra.mxu0 %v616
  %1325 = vmatprep.subr.bf16.mxu0 %v609
  %1326 = vmatpush1.bf16.msra.mxu0 %v608
  %1327 = vmatprep.subr.bf16.mxu0 %v601
  %1328 = vmatpush1.bf16.msra.mxu0 %v600
  %1329 = vmatprep.subr.bf16.mxu0 %v721
  %1330 = vmatpush2.bf16.msra.mxu0 %v720
  %1331 = vmatprep.subr.bf16.mxu0 %v713
  %1332 = vmatpush2.bf16.msra.mxu0 %v712
  %1333 = vmatprep.subr.bf16.mxu0 %v705
  %1334 = vmatpush2.bf16.msra.mxu0 %v704
  %1335 = vmatprep.subr.bf16.mxu0 %v697
  %1336 = vmatpush2.bf16.msra.mxu0 %v696
  %1337 = vmatprep.subr.bf16.mxu0 %v689
  %1338 = vmatpush2.bf16.msra.mxu0 %v688
  %1339 = vmatprep.subr.bf16.mxu0 %v681
  %1340 = vmatpush2.bf16.msra.mxu0 %v680
  %1341 = vmatprep.subr.bf16.mxu0 %v673
  %1342 = vmatpush2.bf16.msra.mxu0 %v672
  %1343 = vmatprep.subr.bf16.mxu0 %v665
  %1344 = vmatpush2.bf16.msra.mxu0 %v664
  %1345 = vmatprep.mubr.bf16.mxu0 %v1312
  %1346 = vmatmul.mubr.bf16.gmra.mxu0 %v1311
  %v1347 = vpop.f32.mrf.mxu0
  %v1348 = vadd.f32 0.0, %v1347
  %v1349 = vpop.f32.mrf.mxu0
  %v1350 = vadd.f32 0.0, %v1349
  %v1351 = vpop.f32.mrf.mxu0
  %v1352 = vpop.f32.mrf.mxu0
  %1353 = vdwg.mxu0
  %1354 = vmatprep.subr.bf16.mxu0 %v659
  %1355 = vmatpush1.bf16.msra.mxu0 %v658
  %1356 = vmatprep.subr.bf16.mxu0 %v651
  %1357 = vmatpush1.bf16.msra.mxu0 %v650
  %1358 = vmatprep.subr.bf16.mxu0 %v643
  %1359 = vmatpush1.bf16.msra.mxu0 %v642
  %1360 = vmatprep.subr.bf16.mxu0 %v635
  %1361 = vmatpush1.bf16.msra.mxu0 %v634
  %1362 = vmatprep.subr.bf16.mxu0 %v627
  %1363 = vmatpush1.bf16.msra.mxu0 %v626
  %1364 = vmatprep.subr.bf16.mxu0 %v619
  %1365 = vmatpush1.bf16.msra.mxu0 %v618
  %1366 = vmatprep.subr.bf16.mxu0 %v611
  %1367 = vmatpush1.bf16.msra.mxu0 %v610
  %1368 = vmatprep.subr.bf16.mxu0 %v603
  %1369 = vmatpush1.bf16.msra.mxu0 %v602
  %1370 = vmatprep.subr.bf16.mxu0 %v723
  %1371 = vmatpush2.bf16.msra.mxu0 %v722
  %1372 = vmatprep.subr.bf16.mxu0 %v715
  %1373 = vmatpush2.bf16.msra.mxu0 %v714
  %1374 = vmatprep.subr.bf16.mxu0 %v707
  %1375 = vmatpush2.bf16.msra.mxu0 %v706
  %1376 = vmatprep.subr.bf16.mxu0 %v699
  %1377 = vmatpush2.bf16.msra.mxu0 %v698
  %1378 = vmatprep.subr.bf16.mxu0 %v691
  %1379 = vmatpush2.bf16.msra.mxu0 %v690
  %1380 = vmatprep.subr.bf16.mxu0 %v683
  %1381 = vmatpush2.bf16.msra.mxu0 %v682
  %1382 = vmatprep.subr.bf16.mxu0 %v675
  %1383 = vmatpush2.bf16.msra.mxu0 %v674
  %1384 = vmatprep.subr.bf16.mxu0 %v667
  %1385 = vmatpush2.bf16.msra.mxu0 %v666
  %1386 = vmatprep.mubr.bf16.mxu0 %v1312
  %1387 = vmatmul.mubr.bf16.gmra.mxu0 %v1311
  %v1388 = vpop.f32.mrf.mxu0
  %v1389 = vadd.f32 0.0, %v1388
  %v1390 = vpop.f32.mrf.mxu0
  %v1391 = vadd.f32 0.0, %v1390
  %v1392 = vpop.f32.mrf.mxu0
  %v1393 = vpop.f32.mrf.mxu0
  %1394 = vdwg.mxu0
  %1395 = vmatprep.subr.bf16.mxu0 %v661
  %1396 = vmatpush1.bf16.msra.mxu0 %v660
  %1397 = vmatprep.subr.bf16.mxu0 %v653
  %1398 = vmatpush1.bf16.msra.mxu0 %v652
  %1399 = vmatprep.subr.bf16.mxu0 %v645
  %1400 = vmatpush1.bf16.msra.mxu0 %v644
  %1401 = vmatprep.subr.bf16.mxu0 %v637
  %1402 = vmatpush1.bf16.msra.mxu0 %v636
  %1403 = vmatprep.subr.bf16.mxu0 %v629
  %1404 = vmatpush1.bf16.msra.mxu0 %v628
  %1405 = vmatprep.subr.bf16.mxu0 %v621
  %1406 = vmatpush1.bf16.msra.mxu0 %v620
  %1407 = vmatprep.subr.bf16.mxu0 %v613
  %1408 = vmatpush1.bf16.msra.mxu0 %v612
  %1409 = vmatprep.subr.bf16.mxu0 %v605
  %1410 = vmatpush1.bf16.msra.mxu0 %v604
  %1411 = vmatprep.subr.bf16.mxu0 %v725
  %1412 = vmatpush2.bf16.msra.mxu0 %v724
  %1413 = vmatprep.subr.bf16.mxu0 %v717
  %1414 = vmatpush2.bf16.msra.mxu0 %v716
  %1415 = vmatprep.subr.bf16.mxu0 %v709
  %1416 = vmatpush2.bf16.msra.mxu0 %v708
  %1417 = vmatprep.subr.bf16.mxu0 %v701
  %1418 = vmatpush2.bf16.msra.mxu0 %v700
  %1419 = vmatprep.subr.bf16.mxu0 %v693
  %1420 = vmatpush2.bf16.msra.mxu0 %v692
  %1421 = vmatprep.subr.bf16.mxu0 %v685
  %1422 = vmatpush2.bf16.msra.mxu0 %v684
  %1423 = vmatprep.subr.bf16.mxu0 %v677
  %1424 = vmatpush2.bf16.msra.mxu0 %v676
  %1425 = vmatprep.subr.bf16.mxu0 %v669
  %1426 = vmatpush2.bf16.msra.mxu0 %v668
  %1427 = vmatprep.mubr.bf16.mxu0 %v1312
  %1428 = vmatmul.mubr.bf16.gmra.mxu0 %v1311
  %v1429 = vpop.f32.mrf.mxu0
  %v1430 = vadd.f32 0.0, %v1429
  %v1431 = vpop.f32.mrf.mxu0
  %v1432 = vadd.f32 0.0, %v1431
  %v1433 = vpop.f32.mrf.mxu0
  %v1434 = vpop.f32.mrf.mxu0
  %1435 = vdwg.mxu0
  %1436 = vmatprep.subr.bf16.mxu0 %v663
  %1437 = vmatpush1.bf16.msra.mxu0 %v662
  %1438 = vmatprep.subr.bf16.mxu0 %v655
  %1439 = vmatpush1.bf16.msra.mxu0 %v654
  %1440 = vmatprep.subr.bf16.mxu0 %v647
  %1441 = vmatpush1.bf16.msra.mxu0 %v646
  %1442 = vmatprep.subr.bf16.mxu0 %v639
  %1443 = vmatpush1.bf16.msra.mxu0 %v638
  %1444 = vmatprep.subr.bf16.mxu0 %v631
  %1445 = vmatpush1.bf16.msra.mxu0 %v630
  %1446 = vmatprep.subr.bf16.mxu0 %v623
  %1447 = vmatpush1.bf16.msra.mxu0 %v622
  %1448 = vmatprep.subr.bf16.mxu0 %v615
  %1449 = vmatpush1.bf16.msra.mxu0 %v614
  %1450 = vmatprep.subr.bf16.mxu0 %v607
  %1451 = vmatpush1.bf16.msra.mxu0 %v606
  %1452 = vmatprep.subr.bf16.mxu0 %v727
  %1453 = vmatpush2.bf16.msra.mxu0 %v726
  %1454 = vmatprep.subr.bf16.mxu0 %v719
  %1455 = vmatpush2.bf16.msra.mxu0 %v718
  %1456 = vmatprep.subr.bf16.mxu0 %v711
  %1457 = vmatpush2.bf16.msra.mxu0 %v710
  %1458 = vmatprep.subr.bf16.mxu0 %v703
  %1459 = vmatpush2.bf16.msra.mxu0 %v702
  %1460 = vmatprep.subr.bf16.mxu0 %v695
  %1461 = vmatpush2.bf16.msra.mxu0 %v694
  %1462 = vmatprep.subr.bf16.mxu0 %v687
  %1463 = vmatpush2.bf16.msra.mxu0 %v686
  %1464 = vmatprep.subr.bf16.mxu0 %v679
  %1465 = vmatpush2.bf16.msra.mxu0 %v678
  %1466 = vmatprep.subr.bf16.mxu0 %v671
  %1467 = vmatpush2.bf16.msra.mxu0 %v670
  %1468 = vmatprep.mubr.bf16.mxu0 %v1312
  %1469 = vmatmul.mubr.bf16.gmra.mxu0 %v1311
  %v1470 = vpop.f32.mrf.mxu0
  %v1471 = vadd.f32 0.0, %v1470
  %v1472 = vpop.f32.mrf.mxu0
  %v1473 = vadd.f32 0.0, %v1472
  %v1474 = vpop.f32.mrf.mxu0
  %v1475 = vpop.f32.mrf.mxu0
  %1476 = vdwg.mxu0
  %v1477 = vadd.f32 %v1348, %v158
  %v1478 = vadd.f32 %v1350, %v162
  %v1479 = vadd.f32 %v1389, %v166
  %v1480 = vadd.f32 %v1391, %v170
  %v1481 = vxor.u32 %v1477, 2147483648
  %v1482 = vmul.f32 %v1481, 1.442695
  %v1483 = vpow.pop %v1482
  %v1484 = vadd.f32 %v1483, 1.0
  %v1485 = vrcp.pop %v1484
  %v1486 = vmul.f32 1.0, %v1485
  %v1487 = vxor.u32 %v1478, 2147483648
  %v1488 = vmul.f32 %v1487, 1.442695
  %v1489 = vpow.pop %v1488
  %v1490 = vadd.f32 %v1489, 1.0
  %v1491 = vrcp.pop %v1490
  %v1492 = vmul.f32 1.0, %v1491
  %v1493 = vtanh.pop %v1479
  %v1494 = vxor.u32 %v1480, 2147483648
  %v1495 = vmul.f32 %v1494, 1.442695
  %v1496 = vpow.pop %v1495
  %v1497 = vadd.f32 %v1496, 1.0
  %v1498 = vrcp.pop %v1497
  %v1499 = vmul.f32 1.0, %v1498
  %v1500 = vmul.f32 %v1492, %v1273
  %v1501 = vmul.f32 %v1486, %v1493
  %v1502 = vadd.f32 %v1500, %v1501
  %v1503 = vtanh.pop %v1502
  %v1504 = vmul.f32 %v1499, %v1503
  %s1505 = scalar_lea.vmem %s3, 16
  %1506 = vst [vmem:[%s1505] sm:$0xff] %v1504
  %s1507 = scalar_lea.vmem %s0, 96
  %v1508 = vld [vmem:[%s1507] sm:$0xff]
  %v1509 = vld [vmem:[%s1507 + $0x8] sm:$0xff]
  %v1510 = vld [vmem:[%s1507 + $0x10] sm:$0xff]
  %v1511 = vld [vmem:[%s1507 + $0x18] sm:$0xff]
  %v1512 = vadd.f32 %v1508, %v1430
  %v1513 = vadd.f32 %v1509, %v1432
  %v1514 = vadd.f32 %v1510, %v1471
  %v1515 = vadd.f32 %v1511, %v1473
  %v1516 = vxor.u32 %v1512, 2147483648
  %v1517 = vmul.f32 %v1516, 1.442695
  %v1518 = vpow.pop %v1517
  %v1519 = vadd.f32 %v1518, 1.0
  %v1520 = vrcp.pop %v1519
  %v1521 = vmul.f32 1.0, %v1520
  %v1522 = vxor.u32 %v1513, 2147483648
  %v1523 = vmul.f32 %v1522, 1.442695
  %v1524 = vpow.pop %v1523
  %v1525 = vadd.f32 %v1524, 1.0
  %v1526 = vrcp.pop %v1525
  %v1527 = vmul.f32 1.0, %v1526
  %v1528 = vtanh.pop %v1514
  %v1529 = vxor.u32 %v1515, 2147483648
  %v1530 = vmul.f32 %v1529, 1.442695
  %v1531 = vpow.pop %v1530
  %v1532 = vadd.f32 %v1531, 1.0
  %v1533 = vrcp.pop %v1532
  %v1534 = vmul.f32 1.0, %v1533
  %v1535 = vmul.f32 %v1527, %v1308
  %v1536 = vmul.f32 %v1521, %v1528
  %v1537 = vadd.f32 %v1535, %v1536
  %v1538 = vtanh.pop %v1537
  %v1539 = vmul.f32 %v1534, %v1538
  %v1540 = vpack.c.bf16 %v1539, %v1539
  %v1541 = vpack.c.bf16 %v1504, %v1504
  %1542 = vmatprep.subr.bf16.mxu0 %v657
  %1543 = vmatpush1.bf16.msra.mxu0 %v656
  %1544 = vmatprep.subr.bf16.mxu0 %v649
  %1545 = vmatpush1.bf16.msra.mxu0 %v648
  %1546 = vmatprep.subr.bf16.mxu0 %v641
  %1547 = vmatpush1.bf16.msra.mxu0 %v640
  %1548 = vmatprep.subr.bf16.mxu0 %v633
  %1549 = vmatpush1.bf16.msra.mxu0 %v632
  %1550 = vmatprep.subr.bf16.mxu0 %v625
  %1551 = vmatpush1.bf16.msra.mxu0 %v624
  %1552 = vmatprep.subr.bf16.mxu0 %v617
  %1553 = vmatpush1.bf16.msra.mxu0 %v616
  %1554 = vmatprep.subr.bf16.mxu0 %v609
  %1555 = vmatpush1.bf16.msra.mxu0 %v608
  %1556 = vmatprep.subr.bf16.mxu0 %v601
  %1557 = vmatpush1.bf16.msra.mxu0 %v600
  %1558 = vmatprep.subr.bf16.mxu0 %v721
  %1559 = vmatpush2.bf16.msra.mxu0 %v720
  %1560 = vmatprep.subr.bf16.mxu0 %v713
  %1561 = vmatpush2.bf16.msra.mxu0 %v712
  %1562 = vmatprep.subr.bf16.mxu0 %v705
  %1563 = vmatpush2.bf16.msra.mxu0 %v704
  %1564 = vmatprep.subr.bf16.mxu0 %v697
  %1565 = vmatpush2.bf16.msra.mxu0 %v696
  %1566 = vmatprep.subr.bf16.mxu0 %v689
  %1567 = vmatpush2.bf16.msra.mxu0 %v688
  %1568 = vmatprep.subr.bf16.mxu0 %v681
  %1569 = vmatpush2.bf16.msra.mxu0 %v680
  %1570 = vmatprep.subr.bf16.mxu0 %v673
  %1571 = vmatpush2.bf16.msra.mxu0 %v672
  %1572 = vmatprep.subr.bf16.mxu0 %v665
  %1573 = vmatpush2.bf16.msra.mxu0 %v664
  %1574 = vmatprep.mubr.bf16.mxu0 %v1541
  %1575 = vmatmul.mubr.bf16.gmra.mxu0 %v1540
  %v1576 = vpop.f32.mrf.mxu0
  %v1577 = vadd.f32 0.0, %v1576
  %v1578 = vpop.f32.mrf.mxu0
  %v1579 = vadd.f32 0.0, %v1578
  %v1580 = vpop.f32.mrf.mxu0
  %v1581 = vpop.f32.mrf.mxu0
  %1582 = vdwg.mxu0
  %1583 = vmatprep.subr.bf16.mxu0 %v659
  %1584 = vmatpush1.bf16.msra.mxu0 %v658
  %1585 = vmatprep.subr.bf16.mxu0 %v651
  %1586 = vmatpush1.bf16.msra.mxu0 %v650
  %1587 = vmatprep.subr.bf16.mxu0 %v643
  %1588 = vmatpush1.bf16.msra.mxu0 %v642
  %1589 = vmatprep.subr.bf16.mxu0 %v635
  %1590 = vmatpush1.bf16.msra.mxu0 %v634
  %1591 = vmatprep.subr.bf16.mxu0 %v627
  %1592 = vmatpush1.bf16.msra.mxu0 %v626
  %1593 = vmatprep.subr.bf16.mxu0 %v619
  %1594 = vmatpush1.bf16.msra.mxu0 %v618
  %1595 = vmatprep.subr.bf16.mxu0 %v611
  %1596 = vmatpush1.bf16.msra.mxu0 %v610
  %1597 = vmatprep.subr.bf16.mxu0 %v603
  %1598 = vmatpush1.bf16.msra.mxu0 %v602
  %1599 = vmatprep.subr.bf16.mxu0 %v723
  %1600 = vmatpush2.bf16.msra.mxu0 %v722
  %1601 = vmatprep.subr.bf16.mxu0 %v715
  %1602 = vmatpush2.bf16.msra.mxu0 %v714
  %1603 = vmatprep.subr.bf16.mxu0 %v707
  %1604 = vmatpush2.bf16.msra.mxu0 %v706
  %1605 = vmatprep.subr.bf16.mxu0 %v699
  %1606 = vmatpush2.bf16.msra.mxu0 %v698
  %1607 = vmatprep.subr.bf16.mxu0 %v691
  %1608 = vmatpush2.bf16.msra.mxu0 %v690
  %1609 = vmatprep.subr.bf16.mxu0 %v683
  %1610 = vmatpush2.bf16.msra.mxu0 %v682
  %1611 = vmatprep.subr.bf16.mxu0 %v675
  %1612 = vmatpush2.bf16.msra.mxu0 %v674
  %1613 = vmatprep.subr.bf16.mxu0 %v667
  %1614 = vmatpush2.bf16.msra.mxu0 %v666
  %1615 = vmatprep.mubr.bf16.mxu0 %v1541
  %1616 = vmatmul.mubr.bf16.gmra.mxu0 %v1540
  %v1617 = vpop.f32.mrf.mxu0
  %v1618 = vadd.f32 0.0, %v1617
  %v1619 = vpop.f32.mrf.mxu0
  %v1620 = vadd.f32 0.0, %v1619
  %v1621 = vpop.f32.mrf.mxu0
  %v1622 = vpop.f32.mrf.mxu0
  %1623 = vdwg.mxu0
  %1624 = vmatprep.subr.bf16.mxu0 %v661
  %1625 = vmatpush1.bf16.msra.mxu0 %v660
  %1626 = vmatprep.subr.bf16.mxu0 %v653
  %1627 = vmatpush1.bf16.msra.mxu0 %v652
  %1628 = vmatprep.subr.bf16.mxu0 %v645
  %1629 = vmatpush1.bf16.msra.mxu0 %v644
  %1630 = vmatprep.subr.bf16.mxu0 %v637
  %1631 = vmatpush1.bf16.msra.mxu0 %v636
  %1632 = vmatprep.subr.bf16.mxu0 %v629
  %1633 = vmatpush1.bf16.msra.mxu0 %v628
  %1634 = vmatprep.subr.bf16.mxu0 %v621
  %1635 = vmatpush1.bf16.msra.mxu0 %v620
  %1636 = vmatprep.subr.bf16.mxu0 %v613
  %1637 = vmatpush1.bf16.msra.mxu0 %v612
  %1638 = vmatprep.subr.bf16.mxu0 %v605
  %1639 = vmatpush1.bf16.msra.mxu0 %v604
  %1640 = vmatprep.subr.bf16.mxu0 %v725
  %1641 = vmatpush2.bf16.msra.mxu0 %v724
  %1642 = vmatprep.subr.bf16.mxu0 %v717
  %1643 = vmatpush2.bf16.msra.mxu0 %v716
  %1644 = vmatprep.subr.bf16.mxu0 %v709
  %1645 = vmatpush2.bf16.msra.mxu0 %v708
  %1646 = vmatprep.subr.bf16.mxu0 %v701
  %1647 = vmatpush2.bf16.msra.mxu0 %v700
  %1648 = vmatprep.subr.bf16.mxu0 %v693
  %1649 = vmatpush2.bf16.msra.mxu0 %v692
  %1650 = vmatprep.subr.bf16.mxu0 %v685
  %1651 = vmatpush2.bf16.msra.mxu0 %v684
  %1652 = vmatprep.subr.bf16.mxu0 %v677
  %1653 = vmatpush2.bf16.msra.mxu0 %v676
  %1654 = vmatprep.subr.bf16.mxu0 %v669
  %1655 = vmatpush2.bf16.msra.mxu0 %v668
  %1656 = vmatprep.mubr.bf16.mxu0 %v1541
  %1657 = vmatmul.mubr.bf16.gmra.mxu0 %v1540
  %v1658 = vpop.f32.mrf.mxu0
  %v1659 = vadd.f32 0.0, %v1658
  %v1660 = vpop.f32.mrf.mxu0
  %v1661 = vadd.f32 0.0, %v1660
  %v1662 = vpop.f32.mrf.mxu0
  %v1663 = vpop.f32.mrf.mxu0
  %1664 = vdwg.mxu0
  %1665 = vmatprep.subr.bf16.mxu0 %v663
  %1666 = vmatpush1.bf16.msra.mxu0 %v662
  %1667 = vmatprep.subr.bf16.mxu0 %v655
  %1668 = vmatpush1.bf16.msra.mxu0 %v654
  %1669 = vmatprep.subr.bf16.mxu0 %v647
  %1670 = vmatpush1.bf16.msra.mxu0 %v646
  %1671 = vmatprep.subr.bf16.mxu0 %v639
  %1672 = vmatpush1.bf16.msra.mxu0 %v638
  %1673 = vmatprep.subr.bf16.mxu0 %v631
  %1674 = vmatpush1.bf16.msra.mxu0 %v630
  %1675 = vmatprep.subr.bf16.mxu0 %v623
  %1676 = vmatpush1.bf16.msra.mxu0 %v622
  %1677 = vmatprep.subr.bf16.mxu0 %v615
  %1678 = vmatpush1.bf16.msra.mxu0 %v614
  %1679 = vmatprep.subr.bf16.mxu0 %v607
  %1680 = vmatpush1.bf16.msra.mxu0 %v606
  %1681 = vmatprep.subr.bf16.mxu0 %v727
  %1682 = vmatpush2.bf16.msra.mxu0 %v726
  %1683 = vmatprep.subr.bf16.mxu0 %v719
  %1684 = vmatpush2.bf16.msra.mxu0 %v718
  %1685 = vmatprep.subr.bf16.mxu0 %v711
  %1686 = vmatpush2.bf16.msra.mxu0 %v710
  %1687 = vmatprep.subr.bf16.mxu0 %v703
  %1688 = vmatpush2.bf16.msra.mxu0 %v702
  %1689 = vmatprep.subr.bf16.mxu0 %v695
  %1690 = vmatpush2.bf16.msra.mxu0 %v694
  %1691 = vmatprep.subr.bf16.mxu0 %v687
  %1692 = vmatpush2.bf16.msra.mxu0 %v686
  %1693 = vmatprep.subr.bf16.mxu0 %v679
  %1694 = vmatpush2.bf16.msra.mxu0 %v678
  %1695 = vmatprep.subr.bf16.mxu0 %v671
  %1696 = vmatpush2.bf16.msra.mxu0 %v670
  %1697 = vmatprep.mubr.bf16.mxu0 %v1541
  %1698 = vmatmul.mubr.bf16.gmra.mxu0 %v1540
  %v1699 = vpop.f32.mrf.mxu0
  %v1700 = vadd.f32 0.0, %v1699
  %v1701 = vpop.f32.mrf.mxu0
  %v1702 = vadd.f32 0.0, %v1701
  %v1703 = vpop.f32.mrf.mxu0
  %v1704 = vpop.f32.mrf.mxu0
  %1705 = vdwg.mxu0
  %v1706 = vadd.f32 %v1577, %v158
  %v1707 = vadd.f32 %v1579, %v162
  %v1708 = vadd.f32 %v1618, %v166
  %v1709 = vadd.f32 %v1620, %v170
  %v1710 = vxor.u32 %v1706, 2147483648
  %v1711 = vmul.f32 %v1710, 1.442695
  %v1712 = vpow.pop %v1711
  %v1713 = vadd.f32 %v1712, 1.0
  %v1714 = vrcp.pop %v1713
  %v1715 = vmul.f32 1.0, %v1714
  %v1716 = vxor.u32 %v1707, 2147483648
  %v1717 = vmul.f32 %v1716, 1.442695
  %v1718 = vpow.pop %v1717
  %v1719 = vadd.f32 %v1718, 1.0
  %v1720 = vrcp.pop %v1719
  %v1721 = vmul.f32 1.0, %v1720
  %v1722 = vtanh.pop %v1708
  %v1723 = vxor.u32 %v1709, 2147483648
  %v1724 = vmul.f32 %v1723, 1.442695
  %v1725 = vpow.pop %v1724
  %v1726 = vadd.f32 %v1725, 1.0
  %v1727 = vrcp.pop %v1726
  %v1728 = vmul.f32 1.0, %v1727
  %v1729 = vmul.f32 %v1721, %v1502
  %v1730 = vmul.f32 %v1715, %v1722
  %v1731 = vadd.f32 %v1729, %v1730
  %v1732 = vtanh.pop %v1731
  %v1733 = vmul.f32 %v1728, %v1732
  %s1734 = scalar_lea.vmem %s3, 24
  %1735 = vst [vmem:[%s1734] sm:$0xff] %v1733
  %s1736 = scalar_lea.vmem %s0, 128
  %v1737 = vld [vmem:[%s1736] sm:$0xff]
  %v1738 = vld [vmem:[%s1736 + $0x8] sm:$0xff]
  %v1739 = vld [vmem:[%s1736 + $0x10] sm:$0xff]
  %v1740 = vld [vmem:[%s1736 + $0x18] sm:$0xff]
  %v1741 = vadd.f32 %v1737, %v1659
  %v1742 = vadd.f32 %v1738, %v1661
  %v1743 = vadd.f32 %v1739, %v1700
  %v1744 = vadd.f32 %v1740, %v1702
  %v1745 = vxor.u32 %v1741, 2147483648
  %v1746 = vmul.f32 %v1745, 1.442695
  %v1747 = vpow.pop %v1746
  %v1748 = vadd.f32 %v1747, 1.0
  %v1749 = vrcp.pop %v1748
  %v1750 = vmul.f32 1.0, %v1749
  %v1751 = vxor.u32 %v1742, 2147483648
  %v1752 = vmul.f32 %v1751, 1.442695
  %v1753 = vpow.pop %v1752
  %v1754 = vadd.f32 %v1753, 1.0
  %v1755 = vrcp.pop %v1754
  %v1756 = vmul.f32 1.0, %v1755
  %v1757 = vtanh.pop %v1743
  %v1758 = vxor.u32 %v1744, 2147483648
  %v1759 = vmul.f32 %v1758, 1.442695
  %v1760 = vpow.pop %v1759
  %v1761 = vadd.f32 %v1760, 1.0
  %v1762 = vrcp.pop %v1761
  %v1763 = vmul.f32 1.0, %v1762
  %v1764 = vmul.f32 %v1756, %v1537
  %v1765 = vmul.f32 %v1750, %v1757
  %v1766 = vadd.f32 %v1764, %v1765
  %v1767 = vtanh.pop %v1766
  %v1768 = vmul.f32 %v1763, %v1767
  %v1769 = vpack.c.bf16 %v1768, %v1768
  %v1770 = vpack.c.bf16 %v1733, %v1733
  %1771 = vmatprep.subr.bf16.mxu0 %v657
  %1772 = vmatpush1.bf16.msra.mxu0 %v656
  %1773 = vmatprep.subr.bf16.mxu0 %v649
  %1774 = vmatpush1.bf16.msra.mxu0 %v648
  %1775 = vmatprep.subr.bf16.mxu0 %v641
  %1776 = vmatpush1.bf16.msra.mxu0 %v640
  %1777 = vmatprep.subr.bf16.mxu0 %v633
  %1778 = vmatpush1.bf16.msra.mxu0 %v632
  %1779 = vmatprep.subr.bf16.mxu0 %v625
  %1780 = vmatpush1.bf16.msra.mxu0 %v624
  %1781 = vmatprep.subr.bf16.mxu0 %v617
  %1782 = vmatpush1.bf16.msra.mxu0 %v616
  %1783 = vmatprep.subr.bf16.mxu0 %v609
  %1784 = vmatpush1.bf16.msra.mxu0 %v608
  %1785 = vmatprep.subr.bf16.mxu0 %v601
  %1786 = vmatpush1.bf16.msra.mxu0 %v600
  %1787 = vmatprep.subr.bf16.mxu0 %v721
  %1788 = vmatpush2.bf16.msra.mxu0 %v720
  %1789 = vmatprep.subr.bf16.mxu0 %v713
  %1790 = vmatpush2.bf16.msra.mxu0 %v712
  %1791 = vmatprep.subr.bf16.mxu0 %v705
  %1792 = vmatpush2.bf16.msra.mxu0 %v704
  %1793 = vmatprep.subr.bf16.mxu0 %v697
  %1794 = vmatpush2.bf16.msra.mxu0 %v696
  %1795 = vmatprep.subr.bf16.mxu0 %v689
  %1796 = vmatpush2.bf16.msra.mxu0 %v688
  %1797 = vmatprep.subr.bf16.mxu0 %v681
  %1798 = vmatpush2.bf16.msra.mxu0 %v680
  %1799 = vmatprep.subr.bf16.mxu0 %v673
  %1800 = vmatpush2.bf16.msra.mxu0 %v672
  %1801 = vmatprep.subr.bf16.mxu0 %v665
  %1802 = vmatpush2.bf16.msra.mxu0 %v664
  %1803 = vmatprep.mubr.bf16.mxu0 %v1770
  %1804 = vmatmul.mubr.bf16.gmra.mxu0 %v1769
  %v1805 = vpop.f32.mrf.mxu0
  %v1806 = vadd.f32 0.0, %v1805
  %v1807 = vpop.f32.mrf.mxu0
  %v1808 = vadd.f32 0.0, %v1807
  %v1809 = vpop.f32.mrf.mxu0
  %v1810 = vpop.f32.mrf.mxu0
  %1811 = vdwg.mxu0
  %1812 = vmatprep.subr.bf16.mxu0 %v659
  %1813 = vmatpush1.bf16.msra.mxu0 %v658
  %1814 = vmatprep.subr.bf16.mxu0 %v651
  %1815 = vmatpush1.bf16.msra.mxu0 %v650
  %1816 = vmatprep.subr.bf16.mxu0 %v643
  %1817 = vmatpush1.bf16.msra.mxu0 %v642
  %1818 = vmatprep.subr.bf16.mxu0 %v635
  %1819 = vmatpush1.bf16.msra.mxu0 %v634
  %1820 = vmatprep.subr.bf16.mxu0 %v627
  %1821 = vmatpush1.bf16.msra.mxu0 %v626
  %1822 = vmatprep.subr.bf16.mxu0 %v619
  %1823 = vmatpush1.bf16.msra.mxu0 %v618
  %1824 = vmatprep.subr.bf16.mxu0 %v611
  %1825 = vmatpush1.bf16.msra.mxu0 %v610
  %1826 = vmatprep.subr.bf16.mxu0 %v603
  %1827 = vmatpush1.bf16.msra.mxu0 %v602
  %1828 = vmatprep.subr.bf16.mxu0 %v723
  %1829 = vmatpush2.bf16.msra.mxu0 %v722
  %1830 = vmatprep.subr.bf16.mxu0 %v715
  %1831 = vmatpush2.bf16.msra.mxu0 %v714
  %1832 = vmatprep.subr.bf16.mxu0 %v707
  %1833 = vmatpush2.bf16.msra.mxu0 %v706
  %1834 = vmatprep.subr.bf16.mxu0 %v699
  %1835 = vmatpush2.bf16.msra.mxu0 %v698
  %1836 = vmatprep.subr.bf16.mxu0 %v691
  %1837 = vmatpush2.bf16.msra.mxu0 %v690
  %1838 = vmatprep.subr.bf16.mxu0 %v683
  %1839 = vmatpush2.bf16.msra.mxu0 %v682
  %1840 = vmatprep.subr.bf16.mxu0 %v675
  %1841 = vmatpush2.bf16.msra.mxu0 %v674
  %1842 = vmatprep.subr.bf16.mxu0 %v667
  %1843 = vmatpush2.bf16.msra.mxu0 %v666
  %1844 = vmatprep.mubr.bf16.mxu0 %v1770
  %1845 = vmatmul.mubr.bf16.gmra.mxu0 %v1769
  %v1846 = vpop.f32.mrf.mxu0
  %v1847 = vadd.f32 0.0, %v1846
  %v1848 = vpop.f32.mrf.mxu0
  %v1849 = vadd.f32 0.0, %v1848
  %v1850 = vpop.f32.mrf.mxu0
  %v1851 = vpop.f32.mrf.mxu0
  %1852 = vdwg.mxu0
  %1853 = vmatprep.subr.bf16.mxu0 %v661
  %1854 = vmatpush1.bf16.msra.mxu0 %v660
  %1855 = vmatprep.subr.bf16.mxu0 %v653
  %1856 = vmatpush1.bf16.msra.mxu0 %v652
  %1857 = vmatprep.subr.bf16.mxu0 %v645
  %1858 = vmatpush1.bf16.msra.mxu0 %v644
  %1859 = vmatprep.subr.bf16.mxu0 %v637
  %1860 = vmatpush1.bf16.msra.mxu0 %v636
  %1861 = vmatprep.subr.bf16.mxu0 %v629
  %1862 = vmatpush1.bf16.msra.mxu0 %v628
  %1863 = vmatprep.subr.bf16.mxu0 %v621
  %1864 = vmatpush1.bf16.msra.mxu0 %v620
  %1865 = vmatprep.subr.bf16.mxu0 %v613
  %1866 = vmatpush1.bf16.msra.mxu0 %v612
  %1867 = vmatprep.subr.bf16.mxu0 %v605
  %1868 = vmatpush1.bf16.msra.mxu0 %v604
  %1869 = vmatprep.subr.bf16.mxu0 %v725
  %1870 = vmatpush2.bf16.msra.mxu0 %v724
  %1871 = vmatprep.subr.bf16.mxu0 %v717
  %1872 = vmatpush2.bf16.msra.mxu0 %v716
  %1873 = vmatprep.subr.bf16.mxu0 %v709
  %1874 = vmatpush2.bf16.msra.mxu0 %v708
  %1875 = vmatprep.subr.bf16.mxu0 %v701
  %1876 = vmatpush2.bf16.msra.mxu0 %v700
  %1877 = vmatprep.subr.bf16.mxu0 %v693
  %1878 = vmatpush2.bf16.msra.mxu0 %v692
  %1879 = vmatprep.subr.bf16.mxu0 %v685
  %1880 = vmatpush2.bf16.msra.mxu0 %v684
  %1881 = vmatprep.subr.bf16.mxu0 %v677
  %1882 = vmatpush2.bf16.msra.mxu0 %v676
  %1883 = vmatprep.subr.bf16.mxu0 %v669
  %1884 = vmatpush2.bf16.msra.mxu0 %v668
  %1885 = vmatprep.mubr.bf16.mxu0 %v1770
  %1886 = vmatmul.mubr.bf16.gmra.mxu0 %v1769
  %v1887 = vpop.f32.mrf.mxu0
  %v1888 = vadd.f32 0.0, %v1887
  %v1889 = vpop.f32.mrf.mxu0
  %v1890 = vadd.f32 0.0, %v1889
  %v1891 = vpop.f32.mrf.mxu0
  %v1892 = vpop.f32.mrf.mxu0
  %1893 = vdwg.mxu0
  %1894 = vmatprep.subr.bf16.mxu0 %v663
  %1895 = vmatpush1.bf16.msra.mxu0 %v662
  %1896 = vmatprep.subr.bf16.mxu0 %v655
  %1897 = vmatpush1.bf16.msra.mxu0 %v654
  %1898 = vmatprep.subr.bf16.mxu0 %v647
  %1899 = vmatpush1.bf16.msra.mxu0 %v646
  %1900 = vmatprep.subr.bf16.mxu0 %v639
  %1901 = vmatpush1.bf16.msra.mxu0 %v638
  %1902 = vmatprep.subr.bf16.mxu0 %v631
  %1903 = vmatpush1.bf16.msra.mxu0 %v630
  %1904 = vmatprep.subr.bf16.mxu0 %v623
  %1905 = vmatpush1.bf16.msra.mxu0 %v622
  %1906 = vmatprep.subr.bf16.mxu0 %v615
  %1907 = vmatpush1.bf16.msra.mxu0 %v614
  %1908 = vmatprep.subr.bf16.mxu0 %v607
  %1909 = vmatpush1.bf16.msra.mxu0 %v606
  %1910 = vmatprep.subr.bf16.mxu0 %v727
  %1911 = vmatpush2.bf16.msra.mxu0 %v726
  %1912 = vmatprep.subr.bf16.mxu0 %v719
  %1913 = vmatpush2.bf16.msra.mxu0 %v718
  %1914 = vmatprep.subr.bf16.mxu0 %v711
  %1915 = vmatpush2.bf16.msra.mxu0 %v710
  %1916 = vmatprep.subr.bf16.mxu0 %v703
  %1917 = vmatpush2.bf16.msra.mxu0 %v702
  %1918 = vmatprep.subr.bf16.mxu0 %v695
  %1919 = vmatpush2.bf16.msra.mxu0 %v694
  %1920 = vmatprep.subr.bf16.mxu0 %v687
  %1921 = vmatpush2.bf16.msra.mxu0 %v686
  %1922 = vmatprep.subr.bf16.mxu0 %v679
  %1923 = vmatpush2.bf16.msra.mxu0 %v678
  %1924 = vmatprep.subr.bf16.mxu0 %v671
  %1925 = vmatpush2.bf16.msra.mxu0 %v670
  %1926 = vmatprep.mubr.bf16.mxu0 %v1770
  %1927 = vmatmul.mubr.bf16.gmra.mxu0 %v1769
  %v1928 = vpop.f32.mrf.mxu0
  %v1929 = vadd.f32 0.0, %v1928
  %v1930 = vpop.f32.mrf.mxu0
  %v1931 = vadd.f32 0.0, %v1930
  %v1932 = vpop.f32.mrf.mxu0
  %v1933 = vpop.f32.mrf.mxu0
  %1934 = vdwg.mxu0
  %v1935 = vadd.f32 %v1806, %v158
  %v1936 = vadd.f32 %v1808, %v162
  %v1937 = vadd.f32 %v1847, %v166
  %v1938 = vadd.f32 %v1849, %v170
  %v1939 = vxor.u32 %v1935, 2147483648
  %v1940 = vmul.f32 %v1939, 1.442695
  %v1941 = vpow.pop %v1940
  %v1942 = vadd.f32 %v1941, 1.0
  %v1943 = vrcp.pop %v1942
  %v1944 = vmul.f32 1.0, %v1943
  %v1945 = vxor.u32 %v1936, 2147483648
  %v1946 = vmul.f32 %v1945, 1.442695
  %v1947 = vpow.pop %v1946
  %v1948 = vadd.f32 %v1947, 1.0
  %v1949 = vrcp.pop %v1948
  %v1950 = vmul.f32 1.0, %v1949
  %v1951 = vtanh.pop %v1937
  %v1952 = vxor.u32 %v1938, 2147483648
  %v1953 = vmul.f32 %v1952, 1.442695
  %v1954 = vpow.pop %v1953
  %v1955 = vadd.f32 %v1954, 1.0
  %v1956 = vrcp.pop %v1955
  %v1957 = vmul.f32 1.0, %v1956
  %v1958 = vmul.f32 %v1950, %v1731
  %v1959 = vmul.f32 %v1944, %v1951
  %v1960 = vadd.f32 %v1958, %v1959
  %v1961 = vtanh.pop %v1960
  %v1962 = vmul.f32 %v1957, %v1961
  %s1963 = scalar_lea.vmem %s3, 32
  %1964 = vst [vmem:[%s1963] sm:$0xff] %v1962
  %s1965 = scalar_lea.vmem %s0, 160
  %v1966 = vld [vmem:[%s1965] sm:$0xff]
  %v1967 = vld [vmem:[%s1965 + $0x8] sm:$0xff]
  %v1968 = vld [vmem:[%s1965 + $0x10] sm:$0xff]
  %v1969 = vld [vmem:[%s1965 + $0x18] sm:$0xff]
  %v1970 = vadd.f32 %v1966, %v1888
  %v1971 = vadd.f32 %v1967, %v1890
  %v1972 = vadd.f32 %v1968, %v1929
  %v1973 = vadd.f32 %v1969, %v1931
  %v1974 = vxor.u32 %v1970, 2147483648
  %v1975 = vmul.f32 %v1974, 1.442695
  %v1976 = vpow.pop %v1975
  %v1977 = vadd.f32 %v1976, 1.0
  %v1978 = vrcp.pop %v1977
  %v1979 = vmul.f32 1.0, %v1978
  %v1980 = vxor.u32 %v1971, 2147483648
  %v1981 = vmul.f32 %v1980, 1.442695
  %v1982 = vpow.pop %v1981
  %v1983 = vadd.f32 %v1982, 1.0
  %v1984 = vrcp.pop %v1983
  %v1985 = vmul.f32 1.0, %v1984
  %v1986 = vtanh.pop %v1972
  %v1987 = vxor.u32 %v1973, 2147483648
  %v1988 = vmul.f32 %v1987, 1.442695
  %v1989 = vpow.pop %v1988
  %v1990 = vadd.f32 %v1989, 1.0
  %v1991 = vrcp.pop %v1990
  %v1992 = vmul.f32 1.0, %v1991
  %v1993 = vmul.f32 %v1985, %v1766
  %v1994 = vmul.f32 %v1979, %v1986
  %v1995 = vadd.f32 %v1993, %v1994
  %v1996 = vtanh.pop %v1995
  %v1997 = vmul.f32 %v1992, %v1996
  %v1998 = vpack.c.bf16 %v1997, %v1997
  %v1999 = vpack.c.bf16 %v1962, %v1962
  %2000 = vmatprep.subr.bf16.mxu0 %v657
  %2001 = vmatpush1.bf16.msra.mxu0 %v656
  %2002 = vmatprep.subr.bf16.mxu0 %v649
  %2003 = vmatpush1.bf16.msra.mxu0 %v648
  %2004 = vmatprep.subr.bf16.mxu0 %v641
  %2005 = vmatpush1.bf16.msra.mxu0 %v640
  %2006 = vmatprep.subr.bf16.mxu0 %v633
  %2007 = vmatpush1.bf16.msra.mxu0 %v632
  %2008 = vmatprep.subr.bf16.mxu0 %v625
  %2009 = vmatpush1.bf16.msra.mxu0 %v624
  %2010 = vmatprep.subr.bf16.mxu0 %v617
  %2011 = vmatpush1.bf16.msra.mxu0 %v616
  %2012 = vmatprep.subr.bf16.mxu0 %v609
  %2013 = vmatpush1.bf16.msra.mxu0 %v608
  %2014 = vmatprep.subr.bf16.mxu0 %v601
  %2015 = vmatpush1.bf16.msra.mxu0 %v600
  %2016 = vmatprep.subr.bf16.mxu0 %v721
  %2017 = vmatpush2.bf16.msra.mxu0 %v720
  %2018 = vmatprep.subr.bf16.mxu0 %v713
  %2019 = vmatpush2.bf16.msra.mxu0 %v712
  %2020 = vmatprep.subr.bf16.mxu0 %v705
  %2021 = vmatpush2.bf16.msra.mxu0 %v704
  %2022 = vmatprep.subr.bf16.mxu0 %v697
  %2023 = vmatpush2.bf16.msra.mxu0 %v696
  %2024 = vmatprep.subr.bf16.mxu0 %v689
  %2025 = vmatpush2.bf16.msra.mxu0 %v688
  %2026 = vmatprep.subr.bf16.mxu0 %v681
  %2027 = vmatpush2.bf16.msra.mxu0 %v680
  %2028 = vmatprep.subr.bf16.mxu0 %v673
  %2029 = vmatpush2.bf16.msra.mxu0 %v672
  %2030 = vmatprep.subr.bf16.mxu0 %v665
  %2031 = vmatpush2.bf16.msra.mxu0 %v664
  %2032 = vmatprep.mubr.bf16.mxu0 %v1999
  %2033 = vmatmul.mubr.bf16.gmra.mxu0 %v1998
  %v2034 = vpop.f32.mrf.mxu0
  %v2035 = vadd.f32 0.0, %v2034
  %v2036 = vpop.f32.mrf.mxu0
  %v2037 = vadd.f32 0.0, %v2036
  %v2038 = vpop.f32.mrf.mxu0
  %v2039 = vpop.f32.mrf.mxu0
  %2040 = vdwg.mxu0
  %2041 = vmatprep.subr.bf16.mxu0 %v659
  %2042 = vmatpush1.bf16.msra.mxu0 %v658
  %2043 = vmatprep.subr.bf16.mxu0 %v651
  %2044 = vmatpush1.bf16.msra.mxu0 %v650
  %2045 = vmatprep.subr.bf16.mxu0 %v643
  %2046 = vmatpush1.bf16.msra.mxu0 %v642
  %2047 = vmatprep.subr.bf16.mxu0 %v635
  %2048 = vmatpush1.bf16.msra.mxu0 %v634
  %2049 = vmatprep.subr.bf16.mxu0 %v627
  %2050 = vmatpush1.bf16.msra.mxu0 %v626
  %2051 = vmatprep.subr.bf16.mxu0 %v619
  %2052 = vmatpush1.bf16.msra.mxu0 %v618
  %2053 = vmatprep.subr.bf16.mxu0 %v611
  %2054 = vmatpush1.bf16.msra.mxu0 %v610
  %2055 = vmatprep.subr.bf16.mxu0 %v603
  %2056 = vmatpush1.bf16.msra.mxu0 %v602
  %2057 = vmatprep.subr.bf16.mxu0 %v723
  %2058 = vmatpush2.bf16.msra.mxu0 %v722
  %2059 = vmatprep.subr.bf16.mxu0 %v715
  %2060 = vmatpush2.bf16.msra.mxu0 %v714
  %2061 = vmatprep.subr.bf16.mxu0 %v707
  %2062 = vmatpush2.bf16.msra.mxu0 %v706
  %2063 = vmatprep.subr.bf16.mxu0 %v699
  %2064 = vmatpush2.bf16.msra.mxu0 %v698
  %2065 = vmatprep.subr.bf16.mxu0 %v691
  %2066 = vmatpush2.bf16.msra.mxu0 %v690
  %2067 = vmatprep.subr.bf16.mxu0 %v683
  %2068 = vmatpush2.bf16.msra.mxu0 %v682
  %2069 = vmatprep.subr.bf16.mxu0 %v675
  %2070 = vmatpush2.bf16.msra.mxu0 %v674
  %2071 = vmatprep.subr.bf16.mxu0 %v667
  %2072 = vmatpush2.bf16.msra.mxu0 %v666
  %2073 = vmatprep.mubr.bf16.mxu0 %v1999
  %2074 = vmatmul.mubr.bf16.gmra.mxu0 %v1998
  %v2075 = vpop.f32.mrf.mxu0
  %v2076 = vadd.f32 0.0, %v2075
  %v2077 = vpop.f32.mrf.mxu0
  %v2078 = vadd.f32 0.0, %v2077
  %v2079 = vpop.f32.mrf.mxu0
  %v2080 = vpop.f32.mrf.mxu0
  %2081 = vdwg.mxu0
  %2082 = vmatprep.subr.bf16.mxu0 %v661
  %2083 = vmatpush1.bf16.msra.mxu0 %v660
  %2084 = vmatprep.subr.bf16.mxu0 %v653
  %2085 = vmatpush1.bf16.msra.mxu0 %v652
  %2086 = vmatprep.subr.bf16.mxu0 %v645
  %2087 = vmatpush1.bf16.msra.mxu0 %v644
  %2088 = vmatprep.subr.bf16.mxu0 %v637
  %2089 = vmatpush1.bf16.msra.mxu0 %v636
  %2090 = vmatprep.subr.bf16.mxu0 %v629
  %2091 = vmatpush1.bf16.msra.mxu0 %v628
  %2092 = vmatprep.subr.bf16.mxu0 %v621
  %2093 = vmatpush1.bf16.msra.mxu0 %v620
  %2094 = vmatprep.subr.bf16.mxu0 %v613
  %2095 = vmatpush1.bf16.msra.mxu0 %v612
  %2096 = vmatprep.subr.bf16.mxu0 %v605
  %2097 = vmatpush1.bf16.msra.mxu0 %v604
  %2098 = vmatprep.subr.bf16.mxu0 %v725
  %2099 = vmatpush2.bf16.msra.mxu0 %v724
  %2100 = vmatprep.subr.bf16.mxu0 %v717
  %2101 = vmatpush2.bf16.msra.mxu0 %v716
  %2102 = vmatprep.subr.bf16.mxu0 %v709
  %2103 = vmatpush2.bf16.msra.mxu0 %v708
  %2104 = vmatprep.subr.bf16.mxu0 %v701
  %2105 = vmatpush2.bf16.msra.mxu0 %v700
  %2106 = vmatprep.subr.bf16.mxu0 %v693
  %2107 = vmatpush2.bf16.msra.mxu0 %v692
  %2108 = vmatprep.subr.bf16.mxu0 %v685
  %2109 = vmatpush2.bf16.msra.mxu0 %v684
  %2110 = vmatprep.subr.bf16.mxu0 %v677
  %2111 = vmatpush2.bf16.msra.mxu0 %v676
  %2112 = vmatprep.subr.bf16.mxu0 %v669
  %2113 = vmatpush2.bf16.msra.mxu0 %v668
  %2114 = vmatprep.mubr.bf16.mxu0 %v1999
  %2115 = vmatmul.mubr.bf16.gmra.mxu0 %v1998
  %v2116 = vpop.f32.mrf.mxu0
  %v2117 = vadd.f32 0.0, %v2116
  %v2118 = vpop.f32.mrf.mxu0
  %v2119 = vadd.f32 0.0, %v2118
  %v2120 = vpop.f32.mrf.mxu0
  %v2121 = vpop.f32.mrf.mxu0
  %2122 = vdwg.mxu0
  %2123 = vmatprep.subr.bf16.mxu0 %v663
  %2124 = vmatpush1.bf16.msra.mxu0 %v662
  %2125 = vmatprep.subr.bf16.mxu0 %v655
  %2126 = vmatpush1.bf16.msra.mxu0 %v654
  %2127 = vmatprep.subr.bf16.mxu0 %v647
  %2128 = vmatpush1.bf16.msra.mxu0 %v646
  %2129 = vmatprep.subr.bf16.mxu0 %v639
  %2130 = vmatpush1.bf16.msra.mxu0 %v638
  %2131 = vmatprep.subr.bf16.mxu0 %v631
  %2132 = vmatpush1.bf16.msra.mxu0 %v630
  %2133 = vmatprep.subr.bf16.mxu0 %v623
  %2134 = vmatpush1.bf16.msra.mxu0 %v622
  %2135 = vmatprep.subr.bf16.mxu0 %v615
  %2136 = vmatpush1.bf16.msra.mxu0 %v614
  %2137 = vmatprep.subr.bf16.mxu0 %v607
  %2138 = vmatpush1.bf16.msra.mxu0 %v606
  %2139 = vmatprep.subr.bf16.mxu0 %v727
  %2140 = vmatpush2.bf16.msra.mxu0 %v726
  %2141 = vmatprep.subr.bf16.mxu0 %v719
  %2142 = vmatpush2.bf16.msra.mxu0 %v718
  %2143 = vmatprep.subr.bf16.mxu0 %v711
  %2144 = vmatpush2.bf16.msra.mxu0 %v710
  %2145 = vmatprep.subr.bf16.mxu0 %v703
  %2146 = vmatpush2.bf16.msra.mxu0 %v702
  %2147 = vmatprep.subr.bf16.mxu0 %v695
  %2148 = vmatpush2.bf16.msra.mxu0 %v694
  %2149 = vmatprep.subr.bf16.mxu0 %v687
  %2150 = vmatpush2.bf16.msra.mxu0 %v686
  %2151 = vmatprep.subr.bf16.mxu0 %v679
  %2152 = vmatpush2.bf16.msra.mxu0 %v678
  %2153 = vmatprep.subr.bf16.mxu0 %v671
  %2154 = vmatpush2.bf16.msra.mxu0 %v670
  %2155 = vmatprep.mubr.bf16.mxu0 %v1999
  %2156 = vmatmul.mubr.bf16.gmra.mxu0 %v1998
  %v2157 = vpop.f32.mrf.mxu0
  %v2158 = vadd.f32 0.0, %v2157
  %v2159 = vpop.f32.mrf.mxu0
  %v2160 = vadd.f32 0.0, %v2159
  %v2161 = vpop.f32.mrf.mxu0
  %v2162 = vpop.f32.mrf.mxu0
  %2163 = vdwg.mxu0
  %v2164 = vadd.f32 %v2035, %v158
  %v2165 = vadd.f32 %v2037, %v162
  %v2166 = vadd.f32 %v2076, %v166
  %v2167 = vadd.f32 %v2078, %v170
  %v2168 = vxor.u32 %v2164, 2147483648
  %v2169 = vmul.f32 %v2168, 1.442695
  %v2170 = vpow.pop %v2169
  %v2171 = vadd.f32 %v2170, 1.0
  %v2172 = vrcp.pop %v2171
  %v2173 = vmul.f32 1.0, %v2172
  %v2174 = vxor.u32 %v2165, 2147483648
  %v2175 = vmul.f32 %v2174, 1.442695
  %v2176 = vpow.pop %v2175
  %v2177 = vadd.f32 %v2176, 1.0
  %v2178 = vrcp.pop %v2177
  %v2179 = vmul.f32 1.0, %v2178
  %v2180 = vtanh.pop %v2166
  %v2181 = vxor.u32 %v2167, 2147483648
  %v2182 = vmul.f32 %v2181, 1.442695
  %v2183 = vpow.pop %v2182
  %v2184 = vadd.f32 %v2183, 1.0
  %v2185 = vrcp.pop %v2184
  %v2186 = vmul.f32 1.0, %v2185
  %v2187 = vmul.f32 %v2179, %v1960
  %v2188 = vmul.f32 %v2173, %v2180
  %v2189 = vadd.f32 %v2187, %v2188
  %v2190 = vtanh.pop %v2189
  %v2191 = vmul.f32 %v2186, %v2190
  %s2192 = scalar_lea.vmem %s3, 40
  %2193 = vst [vmem:[%s2192] sm:$0xff] %v2191
  %s2194 = scalar_lea.vmem %s0, 192
  %v2195 = vld [vmem:[%s2194] sm:$0xff]
  %v2196 = vld [vmem:[%s2194 + $0x8] sm:$0xff]
  %v2197 = vld [vmem:[%s2194 + $0x10] sm:$0xff]
  %v2198 = vld [vmem:[%s2194 + $0x18] sm:$0xff]
  %v2199 = vadd.f32 %v2195, %v2117
  %v2200 = vadd.f32 %v2196, %v2119
  %v2201 = vadd.f32 %v2197, %v2158
  %v2202 = vadd.f32 %v2198, %v2160
  %v2203 = vxor.u32 %v2199, 2147483648
  %v2204 = vmul.f32 %v2203, 1.442695
  %v2205 = vpow.pop %v2204
  %v2206 = vadd.f32 %v2205, 1.0
  %v2207 = vrcp.pop %v2206
  %v2208 = vmul.f32 1.0, %v2207
  %v2209 = vxor.u32 %v2200, 2147483648
  %v2210 = vmul.f32 %v2209, 1.442695
  %v2211 = vpow.pop %v2210
  %v2212 = vadd.f32 %v2211, 1.0
  %v2213 = vrcp.pop %v2212
  %v2214 = vmul.f32 1.0, %v2213
  %v2215 = vtanh.pop %v2201
  %v2216 = vxor.u32 %v2202, 2147483648
  %v2217 = vmul.f32 %v2216, 1.442695
  %v2218 = vpow.pop %v2217
  %v2219 = vadd.f32 %v2218, 1.0
  %v2220 = vrcp.pop %v2219
  %v2221 = vmul.f32 1.0, %v2220
  %v2222 = vmul.f32 %v2214, %v1995
  %v2223 = vmul.f32 %v2208, %v2215
  %v2224 = vadd.f32 %v2222, %v2223
  %v2225 = vtanh.pop %v2224
  %v2226 = vmul.f32 %v2221, %v2225
  %v2227 = vpack.c.bf16 %v2226, %v2226
  %v2228 = vpack.c.bf16 %v2191, %v2191
  %2229 = vmatprep.subr.bf16.mxu0 %v657
  %2230 = vmatpush1.bf16.msra.mxu0 %v656
  %2231 = vmatprep.subr.bf16.mxu0 %v649
  %2232 = vmatpush1.bf16.msra.mxu0 %v648
  %2233 = vmatprep.subr.bf16.mxu0 %v641
  %2234 = vmatpush1.bf16.msra.mxu0 %v640
  %2235 = vmatprep.subr.bf16.mxu0 %v633
  %2236 = vmatpush1.bf16.msra.mxu0 %v632
  %2237 = vmatprep.subr.bf16.mxu0 %v625
  %2238 = vmatpush1.bf16.msra.mxu0 %v624
  %2239 = vmatprep.subr.bf16.mxu0 %v617
  %2240 = vmatpush1.bf16.msra.mxu0 %v616
  %2241 = vmatprep.subr.bf16.mxu0 %v609
  %2242 = vmatpush1.bf16.msra.mxu0 %v608
  %2243 = vmatprep.subr.bf16.mxu0 %v601
  %2244 = vmatpush1.bf16.msra.mxu0 %v600
  %2245 = vmatprep.subr.bf16.mxu0 %v721
  %2246 = vmatpush2.bf16.msra.mxu0 %v720
  %2247 = vmatprep.subr.bf16.mxu0 %v713
  %2248 = vmatpush2.bf16.msra.mxu0 %v712
  %2249 = vmatprep.subr.bf16.mxu0 %v705
  %2250 = vmatpush2.bf16.msra.mxu0 %v704
  %2251 = vmatprep.subr.bf16.mxu0 %v697
  %2252 = vmatpush2.bf16.msra.mxu0 %v696
  %2253 = vmatprep.subr.bf16.mxu0 %v689
  %2254 = vmatpush2.bf16.msra.mxu0 %v688
  %2255 = vmatprep.subr.bf16.mxu0 %v681
  %2256 = vmatpush2.bf16.msra.mxu0 %v680
  %2257 = vmatprep.subr.bf16.mxu0 %v673
  %2258 = vmatpush2.bf16.msra.mxu0 %v672
  %2259 = vmatprep.subr.bf16.mxu0 %v665
  %2260 = vmatpush2.bf16.msra.mxu0 %v664
  %2261 = vmatprep.mubr.bf16.mxu0 %v2228
  %2262 = vmatmul.mubr.bf16.gmra.mxu0 %v2227
  %v2263 = vpop.f32.mrf.mxu0
  %v2264 = vadd.f32 0.0, %v2263
  %v2265 = vpop.f32.mrf.mxu0
  %v2266 = vadd.f32 0.0, %v2265
  %v2267 = vpop.f32.mrf.mxu0
  %v2268 = vpop.f32.mrf.mxu0
  %2269 = vdwg.mxu0
  %2270 = vmatprep.subr.bf16.mxu0 %v659
  %2271 = vmatpush1.bf16.msra.mxu0 %v658
  %2272 = vmatprep.subr.bf16.mxu0 %v651
  %2273 = vmatpush1.bf16.msra.mxu0 %v650
  %2274 = vmatprep.subr.bf16.mxu0 %v643
  %2275 = vmatpush1.bf16.msra.mxu0 %v642
  %2276 = vmatprep.subr.bf16.mxu0 %v635
  %2277 = vmatpush1.bf16.msra.mxu0 %v634
  %2278 = vmatprep.subr.bf16.mxu0 %v627
  %2279 = vmatpush1.bf16.msra.mxu0 %v626
  %2280 = vmatprep.subr.bf16.mxu0 %v619
  %2281 = vmatpush1.bf16.msra.mxu0 %v618
  %2282 = vmatprep.subr.bf16.mxu0 %v611
  %2283 = vmatpush1.bf16.msra.mxu0 %v610
  %2284 = vmatprep.subr.bf16.mxu0 %v603
  %2285 = vmatpush1.bf16.msra.mxu0 %v602
  %2286 = vmatprep.subr.bf16.mxu0 %v723
  %2287 = vmatpush2.bf16.msra.mxu0 %v722
  %2288 = vmatprep.subr.bf16.mxu0 %v715
  %2289 = vmatpush2.bf16.msra.mxu0 %v714
  %2290 = vmatprep.subr.bf16.mxu0 %v707
  %2291 = vmatpush2.bf16.msra.mxu0 %v706
  %2292 = vmatprep.subr.bf16.mxu0 %v699
  %2293 = vmatpush2.bf16.msra.mxu0 %v698
  %2294 = vmatprep.subr.bf16.mxu0 %v691
  %2295 = vmatpush2.bf16.msra.mxu0 %v690
  %2296 = vmatprep.subr.bf16.mxu0 %v683
  %2297 = vmatpush2.bf16.msra.mxu0 %v682
  %2298 = vmatprep.subr.bf16.mxu0 %v675
  %2299 = vmatpush2.bf16.msra.mxu0 %v674
  %2300 = vmatprep.subr.bf16.mxu0 %v667
  %2301 = vmatpush2.bf16.msra.mxu0 %v666
  %2302 = vmatprep.mubr.bf16.mxu0 %v2228
  %2303 = vmatmul.mubr.bf16.gmra.mxu0 %v2227
  %v2304 = vpop.f32.mrf.mxu0
  %v2305 = vadd.f32 0.0, %v2304
  %v2306 = vpop.f32.mrf.mxu0
  %v2307 = vadd.f32 0.0, %v2306
  %v2308 = vpop.f32.mrf.mxu0
  %v2309 = vpop.f32.mrf.mxu0
  %2310 = vdwg.mxu0
  %2311 = vmatprep.subr.bf16.mxu0 %v661
  %2312 = vmatpush1.bf16.msra.mxu0 %v660
  %2313 = vmatprep.subr.bf16.mxu0 %v653
  %2314 = vmatpush1.bf16.msra.mxu0 %v652
  %2315 = vmatprep.subr.bf16.mxu0 %v645
  %2316 = vmatpush1.bf16.msra.mxu0 %v644
  %2317 = vmatprep.subr.bf16.mxu0 %v637
  %2318 = vmatpush1.bf16.msra.mxu0 %v636
  %2319 = vmatprep.subr.bf16.mxu0 %v629
  %2320 = vmatpush1.bf16.msra.mxu0 %v628
  %2321 = vmatprep.subr.bf16.mxu0 %v621
  %2322 = vmatpush1.bf16.msra.mxu0 %v620
  %2323 = vmatprep.subr.bf16.mxu0 %v613
  %2324 = vmatpush1.bf16.msra.mxu0 %v612
  %2325 = vmatprep.subr.bf16.mxu0 %v605
  %2326 = vmatpush1.bf16.msra.mxu0 %v604
  %2327 = vmatprep.subr.bf16.mxu0 %v725
  %2328 = vmatpush2.bf16.msra.mxu0 %v724
  %2329 = vmatprep.subr.bf16.mxu0 %v717
  %2330 = vmatpush2.bf16.msra.mxu0 %v716
  %2331 = vmatprep.subr.bf16.mxu0 %v709
  %2332 = vmatpush2.bf16.msra.mxu0 %v708
  %2333 = vmatprep.subr.bf16.mxu0 %v701
  %2334 = vmatpush2.bf16.msra.mxu0 %v700
  %2335 = vmatprep.subr.bf16.mxu0 %v693
  %2336 = vmatpush2.bf16.msra.mxu0 %v692
  %2337 = vmatprep.subr.bf16.mxu0 %v685
  %2338 = vmatpush2.bf16.msra.mxu0 %v684
  %2339 = vmatprep.subr.bf16.mxu0 %v677
  %2340 = vmatpush2.bf16.msra.mxu0 %v676
  %2341 = vmatprep.subr.bf16.mxu0 %v669
  %2342 = vmatpush2.bf16.msra.mxu0 %v668
  %2343 = vmatprep.mubr.bf16.mxu0 %v2228
  %2344 = vmatmul.mubr.bf16.gmra.mxu0 %v2227
  %v2345 = vpop.f32.mrf.mxu0
  %v2346 = vadd.f32 0.0, %v2345
  %v2347 = vpop.f32.mrf.mxu0
  %v2348 = vadd.f32 0.0, %v2347
  %v2349 = vpop.f32.mrf.mxu0
  %v2350 = vpop.f32.mrf.mxu0
  %2351 = vdwg.mxu0
  %2352 = vmatprep.subr.bf16.mxu0 %v663
  %2353 = vmatpush1.bf16.msra.mxu0 %v662
  %2354 = vmatprep.subr.bf16.mxu0 %v655
  %2355 = vmatpush1.bf16.msra.mxu0 %v654
  %2356 = vmatprep.subr.bf16.mxu0 %v647
  %2357 = vmatpush1.bf16.msra.mxu0 %v646
  %2358 = vmatprep.subr.bf16.mxu0 %v639
  %2359 = vmatpush1.bf16.msra.mxu0 %v638
  %2360 = vmatprep.subr.bf16.mxu0 %v631
  %2361 = vmatpush1.bf16.msra.mxu0 %v630
  %2362 = vmatprep.subr.bf16.mxu0 %v623
  %2363 = vmatpush1.bf16.msra.mxu0 %v622
  %2364 = vmatprep.subr.bf16.mxu0 %v615
  %2365 = vmatpush1.bf16.msra.mxu0 %v614
  %2366 = vmatprep.subr.bf16.mxu0 %v607
  %2367 = vmatpush1.bf16.msra.mxu0 %v606
  %2368 = vmatprep.subr.bf16.mxu0 %v727
  %2369 = vmatpush2.bf16.msra.mxu0 %v726
  %2370 = vmatprep.subr.bf16.mxu0 %v719
  %2371 = vmatpush2.bf16.msra.mxu0 %v718
  %2372 = vmatprep.subr.bf16.mxu0 %v711
  %2373 = vmatpush2.bf16.msra.mxu0 %v710
  %2374 = vmatprep.subr.bf16.mxu0 %v703
  %2375 = vmatpush2.bf16.msra.mxu0 %v702
  %2376 = vmatprep.subr.bf16.mxu0 %v695
  %2377 = vmatpush2.bf16.msra.mxu0 %v694
  %2378 = vmatprep.subr.bf16.mxu0 %v687
  %2379 = vmatpush2.bf16.msra.mxu0 %v686
  %2380 = vmatprep.subr.bf16.mxu0 %v679
  %2381 = vmatpush2.bf16.msra.mxu0 %v678
  %2382 = vmatprep.subr.bf16.mxu0 %v671
  %2383 = vmatpush2.bf16.msra.mxu0 %v670
  %2384 = vmatprep.mubr.bf16.mxu0 %v2228
  %2385 = vmatmul.mubr.bf16.gmra.mxu0 %v2227
  %v2386 = vpop.f32.mrf.mxu0
  %v2387 = vadd.f32 0.0, %v2386
  %v2388 = vpop.f32.mrf.mxu0
  %v2389 = vadd.f32 0.0, %v2388
  %v2390 = vpop.f32.mrf.mxu0
  %v2391 = vpop.f32.mrf.mxu0
  %2392 = vdwg.mxu0
  %v2393 = vadd.f32 %v2264, %v158
  %v2394 = vadd.f32 %v2266, %v162
  %v2395 = vadd.f32 %v2305, %v166
  %v2396 = vadd.f32 %v2307, %v170
  %v2397 = vxor.u32 %v2393, 2147483648
  %v2398 = vmul.f32 %v2397, 1.442695
  %v2399 = vpow.pop %v2398
  %v2400 = vadd.f32 %v2399, 1.0
  %v2401 = vrcp.pop %v2400
  %v2402 = vmul.f32 1.0, %v2401
  %v2403 = vxor.u32 %v2394, 2147483648
  %v2404 = vmul.f32 %v2403, 1.442695
  %v2405 = vpow.pop %v2404
  %v2406 = vadd.f32 %v2405, 1.0
  %v2407 = vrcp.pop %v2406
  %v2408 = vmul.f32 1.0, %v2407
  %v2409 = vtanh.pop %v2395
  %v2410 = vxor.u32 %v2396, 2147483648
  %v2411 = vmul.f32 %v2410, 1.442695
  %v2412 = vpow.pop %v2411
  %v2413 = vadd.f32 %v2412, 1.0
  %v2414 = vrcp.pop %v2413
  %v2415 = vmul.f32 1.0, %v2414
  %v2416 = vmul.f32 %v2408, %v2189
  %v2417 = vmul.f32 %v2402, %v2409
  %v2418 = vadd.f32 %v2416, %v2417
  %v2419 = vtanh.pop %v2418
  %v2420 = vmul.f32 %v2415, %v2419
  %s2421 = scalar_lea.vmem %s3, 48
  %2422 = vst [vmem:[%s2421] sm:$0xff] %v2420
  %s2423 = scalar_lea.vmem %s0, 224
  %v2424 = vld [vmem:[%s2423] sm:$0xff]
  %v2425 = vld [vmem:[%s2423 + $0x8] sm:$0xff]
  %v2426 = vld [vmem:[%s2423 + $0x10] sm:$0xff]
  %v2427 = vld [vmem:[%s2423 + $0x18] sm:$0xff]
  %v2428 = vadd.f32 %v2424, %v2346
  %v2429 = vadd.f32 %v2425, %v2348
  %v2430 = vadd.f32 %v2426, %v2387
  %v2431 = vadd.f32 %v2427, %v2389
  %v2432 = vxor.u32 %v2428, 2147483648
  %v2433 = vmul.f32 %v2432, 1.442695
  %v2434 = vpow.pop %v2433
  %v2435 = vadd.f32 %v2434, 1.0
  %v2436 = vrcp.pop %v2435
  %v2437 = vmul.f32 1.0, %v2436
  %v2438 = vxor.u32 %v2429, 2147483648
  %v2439 = vmul.f32 %v2438, 1.442695
  %v2440 = vpow.pop %v2439
  %v2441 = vadd.f32 %v2440, 1.0
  %v2442 = vrcp.pop %v2441
  %v2443 = vmul.f32 1.0, %v2442
  %v2444 = vtanh.pop %v2430
  %v2445 = vxor.u32 %v2431, 2147483648
  %v2446 = vmul.f32 %v2445, 1.442695
  %v2447 = vpow.pop %v2446
  %v2448 = vadd.f32 %v2447, 1.0
  %v2449 = vrcp.pop %v2448
  %v2450 = vmul.f32 1.0, %v2449
  %v2451 = vmul.f32 %v2443, %v2224
  %v2452 = vmul.f32 %v2437, %v2444
  %v2453 = vadd.f32 %v2451, %v2452
  %v2454 = vtanh.pop %v2453
  %v2455 = vmul.f32 %v2450, %v2454
  %v2456 = vpack.c.bf16 %v2455, %v2455
  %v2457 = vpack.c.bf16 %v2420, %v2420
  %2458 = vmatprep.subr.bf16.mxu0 %v657
  %2459 = vmatpush1.bf16.msra.mxu0 %v656
  %2460 = vmatprep.subr.bf16.mxu0 %v649
  %2461 = vmatpush1.bf16.msra.mxu0 %v648
  %2462 = vmatprep.subr.bf16.mxu0 %v641
  %2463 = vmatpush1.bf16.msra.mxu0 %v640
  %2464 = vmatprep.subr.bf16.mxu0 %v633
  %2465 = vmatpush1.bf16.msra.mxu0 %v632
  %2466 = vmatprep.subr.bf16.mxu0 %v625
  %2467 = vmatpush1.bf16.msra.mxu0 %v624
  %2468 = vmatprep.subr.bf16.mxu0 %v617
  %2469 = vmatpush1.bf16.msra.mxu0 %v616
  %2470 = vmatprep.subr.bf16.mxu0 %v609
  %2471 = vmatpush1.bf16.msra.mxu0 %v608
  %2472 = vmatprep.subr.bf16.mxu0 %v601
  %2473 = vmatpush1.bf16.msra.mxu0 %v600
  %2474 = vmatprep.subr.bf16.mxu0 %v721
  %2475 = vmatpush2.bf16.msra.mxu0 %v720
  %2476 = vmatprep.subr.bf16.mxu0 %v713
  %2477 = vmatpush2.bf16.msra.mxu0 %v712
  %2478 = vmatprep.subr.bf16.mxu0 %v705
  %2479 = vmatpush2.bf16.msra.mxu0 %v704
  %2480 = vmatprep.subr.bf16.mxu0 %v697
  %2481 = vmatpush2.bf16.msra.mxu0 %v696
  %2482 = vmatprep.subr.bf16.mxu0 %v689
  %2483 = vmatpush2.bf16.msra.mxu0 %v688
  %2484 = vmatprep.subr.bf16.mxu0 %v681
  %2485 = vmatpush2.bf16.msra.mxu0 %v680
  %2486 = vmatprep.subr.bf16.mxu0 %v673
  %2487 = vmatpush2.bf16.msra.mxu0 %v672
  %2488 = vmatprep.subr.bf16.mxu0 %v665
  %2489 = vmatpush2.bf16.msra.mxu0 %v664
  %2490 = vmatprep.mubr.bf16.mxu0 %v2457
  %2491 = vmatmul.mubr.bf16.gmra.mxu0 %v2456
  %v2492 = vpop.f32.mrf.mxu0
  %v2493 = vadd.f32 0.0, %v2492
  %v2494 = vpop.f32.mrf.mxu0
  %v2495 = vadd.f32 0.0, %v2494
  %v2496 = vpop.f32.mrf.mxu0
  %v2497 = vpop.f32.mrf.mxu0
  %2498 = vdwg.mxu0
  %2499 = vmatprep.subr.bf16.mxu0 %v659
  %2500 = vmatpush1.bf16.msra.mxu0 %v658
  %2501 = vmatprep.subr.bf16.mxu0 %v651
  %2502 = vmatpush1.bf16.msra.mxu0 %v650
  %2503 = vmatprep.subr.bf16.mxu0 %v643
  %2504 = vmatpush1.bf16.msra.mxu0 %v642
  %2505 = vmatprep.subr.bf16.mxu0 %v635
  %2506 = vmatpush1.bf16.msra.mxu0 %v634
  %2507 = vmatprep.subr.bf16.mxu0 %v627
  %2508 = vmatpush1.bf16.msra.mxu0 %v626
  %2509 = vmatprep.subr.bf16.mxu0 %v619
  %2510 = vmatpush1.bf16.msra.mxu0 %v618
  %2511 = vmatprep.subr.bf16.mxu0 %v611
  %2512 = vmatpush1.bf16.msra.mxu0 %v610
  %2513 = vmatprep.subr.bf16.mxu0 %v603
  %2514 = vmatpush1.bf16.msra.mxu0 %v602
  %2515 = vmatprep.subr.bf16.mxu0 %v723
  %2516 = vmatpush2.bf16.msra.mxu0 %v722
  %2517 = vmatprep.subr.bf16.mxu0 %v715
  %2518 = vmatpush2.bf16.msra.mxu0 %v714
  %2519 = vmatprep.subr.bf16.mxu0 %v707
  %2520 = vmatpush2.bf16.msra.mxu0 %v706
  %2521 = vmatprep.subr.bf16.mxu0 %v699
  %2522 = vmatpush2.bf16.msra.mxu0 %v698
  %2523 = vmatprep.subr.bf16.mxu0 %v691
  %2524 = vmatpush2.bf16.msra.mxu0 %v690
  %2525 = vmatprep.subr.bf16.mxu0 %v683
  %2526 = vmatpush2.bf16.msra.mxu0 %v682
  %2527 = vmatprep.subr.bf16.mxu0 %v675
  %2528 = vmatpush2.bf16.msra.mxu0 %v674
  %2529 = vmatprep.subr.bf16.mxu0 %v667
  %2530 = vmatpush2.bf16.msra.mxu0 %v666
  %2531 = vmatprep.mubr.bf16.mxu0 %v2457
  %2532 = vmatmul.mubr.bf16.gmra.mxu0 %v2456
  %v2533 = vpop.f32.mrf.mxu0
  %v2534 = vadd.f32 0.0, %v2533
  %v2535 = vpop.f32.mrf.mxu0
  %v2536 = vadd.f32 0.0, %v2535
  %v2537 = vpop.f32.mrf.mxu0
  %v2538 = vpop.f32.mrf.mxu0
  %2539 = vdwg.mxu0
  %2540 = vmatprep.subr.bf16.mxu0 %v661
  %2541 = vmatpush1.bf16.msra.mxu0 %v660
  %2542 = vmatprep.subr.bf16.mxu0 %v653
  %2543 = vmatpush1.bf16.msra.mxu0 %v652
  %2544 = vmatprep.subr.bf16.mxu0 %v645
  %2545 = vmatpush1.bf16.msra.mxu0 %v644
  %2546 = vmatprep.subr.bf16.mxu0 %v637
  %2547 = vmatpush1.bf16.msra.mxu0 %v636
  %2548 = vmatprep.subr.bf16.mxu0 %v629
  %2549 = vmatpush1.bf16.msra.mxu0 %v628
  %2550 = vmatprep.subr.bf16.mxu0 %v621
  %2551 = vmatpush1.bf16.msra.mxu0 %v620
  %2552 = vmatprep.subr.bf16.mxu0 %v613
  %2553 = vmatpush1.bf16.msra.mxu0 %v612
  %2554 = vmatprep.subr.bf16.mxu0 %v605
  %2555 = vmatpush1.bf16.msra.mxu0 %v604
  %2556 = vmatprep.subr.bf16.mxu0 %v725
  %2557 = vmatpush2.bf16.msra.mxu0 %v724
  %2558 = vmatprep.subr.bf16.mxu0 %v717
  %2559 = vmatpush2.bf16.msra.mxu0 %v716
  %2560 = vmatprep.subr.bf16.mxu0 %v709
  %2561 = vmatpush2.bf16.msra.mxu0 %v708
  %2562 = vmatprep.subr.bf16.mxu0 %v701
  %2563 = vmatpush2.bf16.msra.mxu0 %v700
  %2564 = vmatprep.subr.bf16.mxu0 %v693
  %2565 = vmatpush2.bf16.msra.mxu0 %v692
  %2566 = vmatprep.subr.bf16.mxu0 %v685
  %2567 = vmatpush2.bf16.msra.mxu0 %v684
  %2568 = vmatprep.subr.bf16.mxu0 %v677
  %2569 = vmatpush2.bf16.msra.mxu0 %v676
  %2570 = vmatprep.subr.bf16.mxu0 %v669
  %2571 = vmatpush2.bf16.msra.mxu0 %v668
  %2572 = vmatprep.mubr.bf16.mxu0 %v2457
  %2573 = vmatmul.mubr.bf16.gmra.mxu0 %v2456
  %v2574 = vpop.f32.mrf.mxu0
  %v2575 = vadd.f32 0.0, %v2574
  %v2576 = vpop.f32.mrf.mxu0
  %v2577 = vadd.f32 0.0, %v2576
  %v2578 = vpop.f32.mrf.mxu0
  %v2579 = vpop.f32.mrf.mxu0
  %2580 = vdwg.mxu0
  %2581 = vmatprep.subr.bf16.mxu0 %v663
  %2582 = vmatpush1.bf16.msra.mxu0 %v662
  %2583 = vmatprep.subr.bf16.mxu0 %v655
  %2584 = vmatpush1.bf16.msra.mxu0 %v654
  %2585 = vmatprep.subr.bf16.mxu0 %v647
  %2586 = vmatpush1.bf16.msra.mxu0 %v646
  %2587 = vmatprep.subr.bf16.mxu0 %v639
  %2588 = vmatpush1.bf16.msra.mxu0 %v638
  %2589 = vmatprep.subr.bf16.mxu0 %v631
  %2590 = vmatpush1.bf16.msra.mxu0 %v630
  %2591 = vmatprep.subr.bf16.mxu0 %v623
  %2592 = vmatpush1.bf16.msra.mxu0 %v622
  %2593 = vmatprep.subr.bf16.mxu0 %v615
  %2594 = vmatpush1.bf16.msra.mxu0 %v614
  %2595 = vmatprep.subr.bf16.mxu0 %v607
  %2596 = vmatpush1.bf16.msra.mxu0 %v606
  %2597 = vmatprep.subr.bf16.mxu0 %v727
  %2598 = vmatpush2.bf16.msra.mxu0 %v726
  %2599 = vmatprep.subr.bf16.mxu0 %v719
  %2600 = vmatpush2.bf16.msra.mxu0 %v718
  %2601 = vmatprep.subr.bf16.mxu0 %v711
  %2602 = vmatpush2.bf16.msra.mxu0 %v710
  %2603 = vmatprep.subr.bf16.mxu0 %v703
  %2604 = vmatpush2.bf16.msra.mxu0 %v702
  %2605 = vmatprep.subr.bf16.mxu0 %v695
  %2606 = vmatpush2.bf16.msra.mxu0 %v694
  %2607 = vmatprep.subr.bf16.mxu0 %v687
  %2608 = vmatpush2.bf16.msra.mxu0 %v686
  %2609 = vmatprep.subr.bf16.mxu0 %v679
  %2610 = vmatpush2.bf16.msra.mxu0 %v678
  %2611 = vmatprep.subr.bf16.mxu0 %v671
  %2612 = vmatpush2.bf16.msra.mxu0 %v670
  %2613 = vmatprep.mubr.bf16.mxu0 %v2457
  %2614 = vmatmul.mubr.bf16.gmra.mxu0 %v2456
  %v2615 = vpop.f32.mrf.mxu0
  %v2616 = vadd.f32 0.0, %v2615
  %v2617 = vpop.f32.mrf.mxu0
  %v2618 = vadd.f32 0.0, %v2617
  %v2619 = vpop.f32.mrf.mxu0
  %v2620 = vpop.f32.mrf.mxu0
  %2621 = vdwg.mxu0
  %v2622 = vadd.f32 %v2493, %v158
  %v2623 = vadd.f32 %v2495, %v162
  %v2624 = vadd.f32 %v2534, %v166
  %v2625 = vadd.f32 %v2536, %v170
  %v2626 = vxor.u32 %v2622, 2147483648
  %v2627 = vmul.f32 %v2626, 1.442695
  %v2628 = vpow.pop %v2627
  %v2629 = vadd.f32 %v2628, 1.0
  %v2630 = vrcp.pop %v2629
  %v2631 = vmul.f32 1.0, %v2630
  %v2632 = vxor.u32 %v2623, 2147483648
  %v2633 = vmul.f32 %v2632, 1.442695
  %v2634 = vpow.pop %v2633
  %v2635 = vadd.f32 %v2634, 1.0
  %v2636 = vrcp.pop %v2635
  %v2637 = vmul.f32 1.0, %v2636
  %v2638 = vtanh.pop %v2624
  %v2639 = vxor.u32 %v2625, 2147483648
  %v2640 = vmul.f32 %v2639, 1.442695
  %v2641 = vpow.pop %v2640
  %v2642 = vadd.f32 %v2641, 1.0
  %v2643 = vrcp.pop %v2642
  %v2644 = vmul.f32 1.0, %v2643
  %v2645 = vmul.f32 %v2637, %v2418
  %v2646 = vmul.f32 %v2631, %v2638
  %v2647 = vadd.f32 %v2645, %v2646
  %v2648 = vtanh.pop %v2647
  %v2649 = vmul.f32 %v2644, %v2648
  %s2650 = scalar_lea.vmem %s3, 56
  %2651 = vst [vmem:[%s2650] sm:$0xff] %v2649
  %2652 = vst [vmem:[#allocation2] sm:$0xff] %v2453
  %2653 = vst [vmem:[#allocation3] sm:$0xff] %v2649
  %2654 = vst [vmem:[#allocation4] sm:$0xff] %v2647
  %2655 = vst [vmem:[#allocation5] sm:$0xff] %v2575
  %2656 = vst [vmem:[#allocation5 + $0x8] sm:$0xff] %v2577
  %2657 = vst [vmem:[#allocation5 + $0x10] sm:$0xff] %v2616
  %2658 = vst [vmem:[#allocation5 + $0x18] sm:$0xff] %v2618
  // Predicated region
  $region18: #{mann_forward.1} parent=0 // pred_check
    _
  $region19: #{mann_forward.1} parent=0 // pred_check_branch
    %2660 = sbr.rel (0) target = $region21
  $region20: #{mann_forward.1} parent=0 // pred_region
    _
  $region21: #{mann_forward.1} parent=0 // pred_fallthru
    _
  // Predicated region
  $region22: #{mann_forward.1} parent=0 // pred_check
    _
  $region23: #{mann_forward.1} parent=0 // pred_check_branch
    %2662 = sbr.rel (0) target = $region25
  $region24: #{mann_forward.1} parent=0 // pred_region
    _
  $region25: #{mann_forward.1} parent=0 // pred_fallthru
    _

</llo_original>
